<compile_context>
chip_gen: v7x
topology: tpu7x:2x2x1
jax: 0.10.0
libtpu: 0.0.40
codegen_flags: <defaults>
</compile_context>

<pallas_src>
import functools
import math

import jax
import jax.numpy as jnp
from jax.experimental import pallas as pl
from jax.experimental.pallas import tpu as pltpu

_BF = jnp.bfloat16


# ---------------------------------------------------------------------------
# helpers
# ---------------------------------------------------------------------------
def _round_up(x, m):
    return ((x + m - 1) // m) * m


def _pick_rows(n, target):
    """Row-tile size + padded row count for an (N, D) activation."""
    n8 = _round_up(n, 8)
    if n8 <= target:
        return n8, n8
    return target, _round_up(n8, target)


def _pad_rows(x, n_pad):
    n = x.shape[0]
    if n == n_pad:
        return x
    return jnp.pad(x, ((0, n_pad - n), (0, 0)))


def _ln(x, g, b, eps=1e-5):
    mu = jnp.mean(x, axis=-1, keepdims=True)
    var = jnp.mean(jnp.square(x - mu), axis=-1, keepdims=True)
    return (x - mu) * jax.lax.rsqrt(var + eps) * g + b


# ---------------------------------------------------------------------------
# row-tiled kernels (embedding / FFN / LN / final head)
# ---------------------------------------------------------------------------
def _embed_kernel(x_ref, add_ref, w_ref, o_ref):
    # o = x @ (2*W_in) + (2*b_in + 2*PE + relative-PE offset)   (per batch elem)
    o_ref[0] = (jnp.dot(x_ref[0].astype(_BF), w_ref[...],
                        preferred_element_type=jnp.float32) + add_ref[...])


def _ln_kernel(x_ref, g_ref, b_ref, o_ref):
    o_ref[...] = _ln(x_ref[...], g_ref[...], b_ref[...])


def _ffn_res_ln_kernel(x_ref, w1_ref, b1_ref, w2_ref, b2_ref, g_ref, beta_ref,
                       o_ref):
    # o = LN(x + relu(x @ W1 + b1) @ W2 + b2)    (relu output kept in bf16)
    x = x_ref[...]
    h = jnp.dot(x.astype(_BF), w1_ref[...],
                preferred_element_type=jnp.float32) + b1_ref[...]
    h = jnp.maximum(h, 0.0).astype(_BF)
    y = x + jnp.dot(h, w2_ref[...],
                    preferred_element_type=jnp.float32) + b2_ref[...]
    o_ref[...] = _ln(y, g_ref[...], beta_ref[...])


def _final_kernel(y_ref, src_ref, dg_ref, db_ref, ng_ref, nb_ref, w_ref, b_ref,
                  o_ref):
    # o = (LN_norm(LN_dec(y) + src)) @ W_fc_pad + b_fc_pad   (lane-dense out)
    z = _ln(y_ref[...], dg_ref[...], db_ref[...])
    z = z + src_ref[...]
    z = _ln(z, ng_ref[...], nb_ref[...])
    o_ref[...] = (jnp.dot(z.astype(_BF), w_ref[...],
                          preferred_element_type=jnp.float32) + b_ref[...])


# ---------------------------------------------------------------------------
# fused multi-head-attention block kernels (grid over batch, all heads/step)
# ---------------------------------------------------------------------------
def _self_attn_block_kernel(x_ref, wqkv_ref, bqkv_ref, wout_ref, bout_ref,
                            g_ref, beta_ref, o_ref, *, nhead, causal):
    # o = LN(x + OutProj(Attn(x @ Wqkv)))        1/sqrt(dh) folded into W_q
    x = x_ref[0]                                            # (S, D) f32
    s_len, d_model = x.shape
    dh = d_model // nhead
    qkv = (jnp.dot(x.astype(_BF), wqkv_ref[...],
                   preferred_element_type=jnp.float32) + bqkv_ref[...])
    if causal:
        rows = jax.lax.broadcasted_iota(jnp.int32, (s_len, s_len), 0)
        cols = jax.lax.broadcasted_iota(jnp.int32, (s_len, s_len), 1)
        masked = cols > rows
    acc = jnp.zeros((s_len, d_model), jnp.float32)
    for h in range(nhead):                                  # unrolled over heads
        q_h = qkv[:, h * dh:(h + 1) * dh].astype(_BF)
        k_h = qkv[:, d_model + h * dh: d_model + (h + 1) * dh].astype(_BF)
        v_h = qkv[:, 2 * d_model + h * dh: 2 * d_model + (h + 1) * dh].astype(_BF)
        s = jax.lax.dot_general(q_h, k_h, (((1,), (1,)), ((), ())),
                                preferred_element_type=jnp.float32)   # (S, S)
        if causal:
            s = jnp.where(masked, -jnp.inf, s)
        m = jnp.max(s, axis=-1, keepdims=True)
        p = jnp.exp(s - m)
        inv_l = pl.reciprocal(jnp.sum(p, axis=-1, keepdims=True), approx=True)
        o_h = jnp.dot(p.astype(_BF), v_h,
                      preferred_element_type=jnp.float32) * inv_l     # (S, dh)
        # per-head slice of the out-projection (avoids a lane-dim concat)
        acc = acc + jnp.dot(o_h.astype(_BF), wout_ref[h * dh:(h + 1) * dh, :],
                            preferred_element_type=jnp.float32)
    y = x + acc + bout_ref[...]
    o_ref[0] = _ln(y, g_ref[...], beta_ref[...])


def _cross_attn_block_kernel(x_ref, mem_ref, wq_ref, bq_ref, wkv_ref, bkv_ref,
                             wout_ref, bout_ref, g_ref, beta_ref, o_ref, *,
                             nhead):
    # o = LN(x + OutProj(Attn(x @ Wq, mem @ Wkv)))   (no mask)
    x = x_ref[0]                                            # (T, D) f32
    mem = mem_ref[0]                                        # (S, D) f32
    t_len, d_model = x.shape
    dh = d_model // nhead
    q = (jnp.dot(x.astype(_BF), wq_ref[...],
                 preferred_element_type=jnp.float32) + bq_ref[...])   # (T, D)
    kv = (jnp.dot(mem.astype(_BF), wkv_ref[...],
                  preferred_element_type=jnp.float32) + bkv_ref[...])  # (S, 2D)
    acc = jnp.zeros((t_len, d_model), jnp.float32)
    for h in range(nhead):
        q_h = q[:, h * dh:(h + 1) * dh].astype(_BF)
        k_h = kv[:, h * dh:(h + 1) * dh].astype(_BF)
        v_h = kv[:, d_model + h * dh: d_model + (h + 1) * dh].astype(_BF)
        s = jax.lax.dot_general(q_h, k_h, (((1,), (1,)), ((), ())),
                                preferred_element_type=jnp.float32)   # (T, S)
        m = jnp.max(s, axis=-1, keepdims=True)
        p = jnp.exp(s - m)
        inv_l = pl.reciprocal(jnp.sum(p, axis=-1, keepdims=True), approx=True)
        o_h = jnp.dot(p.astype(_BF), v_h,
                      preferred_element_type=jnp.float32) * inv_l
        acc = acc + jnp.dot(o_h.astype(_BF), wout_ref[h * dh:(h + 1) * dh, :],
                            preferred_element_type=jnp.float32)
    y = x + acc + bout_ref[...]
    o_ref[0] = _ln(y, g_ref[...], beta_ref[...])


# ---------------------------------------------------------------------------
# pallas_call wrappers
# ---------------------------------------------------------------------------
def _row_call(kernel, row_ins, full_ins, dout, *, target_rows=512,
              out_dtype=jnp.float32):
    """Run `kernel` over row tiles of flattened (N, D) activations.

    row_ins  : arrays tiled along the token axis
    full_ins : weights/biases passed whole (constant index_map -> resident)
    """
    n = row_ins[0].shape[0]
    brows, n_pad = _pick_rows(n, target_rows)
    padded = [_pad_rows(a, n_pad) for a in row_ins]

    in_specs = [pl.BlockSpec((brows, a.shape[1]), lambda i: (i, 0))
                for a in padded]
    in_specs += [pl.BlockSpec(a.shape, lambda i, nd=a.ndim: (0,) * nd)
                 for a in full_ins]

    out = pl.pallas_call(
        kernel,
        out_shape=jax.ShapeDtypeStruct((n_pad, dout), out_dtype),
        grid=(n_pad // brows,),
        in_specs=in_specs,
        out_specs=pl.BlockSpec((brows, dout), lambda i: (i, 0)),
        compiler_params=pltpu.CompilerParams(
            dimension_semantics=("parallel",)),
    )(*padded, *full_ins)
    if n_pad != n:
        out = out[:n]
    return out


def _batch_call(kernel, batch_ins, full_ins, out_shape,
                out_dtype=jnp.float32):
    """Grid over the leading batch axis; batch_ins get (1, ...) blocks."""
    bsz = batch_ins[0].shape[0]
    in_specs = []
    for a in batch_ins:
        nd = a.ndim
        in_specs.append(pl.BlockSpec((1,) + a.shape[1:],
                                     lambda b, nd=nd: (b,) + (0,) * (nd - 1)))
    for a in full_ins:
        nd = a.ndim
        in_specs.append(pl.BlockSpec(a.shape, lambda b, nd=nd: (0,) * nd))
    nd_out = len(out_shape)
    return pl.pallas_call(
        kernel,
        out_shape=jax.ShapeDtypeStruct(out_shape, out_dtype),
        grid=(bsz,),
        in_specs=in_specs,
        out_specs=pl.BlockSpec((1,) + tuple(out_shape[1:]),
                               lambda b: (b,) + (0,) * (nd_out - 1)),
        compiler_params=pltpu.CompilerParams(
            dimension_semantics=("parallel",)),
    )(*batch_ins, *full_ins)


# ---------------------------------------------------------------------------
# Transformer blocks (post-norm, relu — nn.Transformer defaults)
# ---------------------------------------------------------------------------
def _self_attn_block(x, p, nhead, *, causal):
    B, S, D = x.shape
    kernel = functools.partial(_self_attn_block_kernel, nhead=nhead,
                               causal=causal)
    return _batch_call(kernel, [x],
                       [p['w_qkv'], p['b_qkv'], p['w_out'], p['b_out'],
                        p['ln_g'], p['ln_b']],
                       (B, S, D))


def _cross_attn_block(x, mem, p, nhead):
    B, T, D = x.shape
    kernel = functools.partial(_cross_attn_block_kernel, nhead=nhead)
    return _batch_call(kernel, [x, mem],
                       [p['w_q'], p['b_q'], p['w_kv'], p['b_kv'],
                        p['w_out'], p['b_out'], p['ln_g'], p['ln_b']],
                       (B, T, D))


def _ffn_block(x, p):
    B, S, D = x.shape
    y = _row_call(_ffn_res_ln_kernel, [x.reshape(B * S, D)],
                  [p['w1'], p['b1'], p['w2'], p['b2'], p['ln_g'], p['ln_b']],
                  D, target_rows=256)
    return y.reshape(B, S, D)


def _embed(x, add, w_in2):
    B, S, _ = x.shape
    D = add.shape[1]
    return _batch_call(_embed_kernel, [x], [add, w_in2], (B, S, D))


# ---------------------------------------------------------------------------
# Full forward
# ---------------------------------------------------------------------------
@functools.partial(jax.jit, static_argnames=('nhead', 'output_size'))
def vanilla_transformer_forward(params, src, tgt, *, nhead, output_size):
    S, B, _ = src.shape
    T = tgt.shape[0]
    D = params['norm_g'].shape[-1]
    # final residual `out + src` (from the reference module) needs S == T
    assert S == T, "VanillaTransformer requires equal src/tgt lengths"

    src_b = jnp.transpose(src, (1, 0, 2))     # (B, S, Din), tiny one-time move
    tgt_b = jnp.transpose(tgt, (1, 0, 2))

    # x -> 2*(input_fc(x) + PE) + ((L-1)/2 - i)
    # 2x folded into W_in; bias + PE + offset folded into one (S, D) add
    off = (S - 1) / 2.0 - jnp.arange(S, dtype=jnp.float32)
    add = 2.0 * params['pe_table'][:S] + params['b_in2'] + off[:, None]

    src_x = _embed(src_b, add, params['w_in2'])          # (B, S, D) f32
    tgt_x = _embed(tgt_b, add, params['w_in2'])

    # encoder (causal src_mask, per the reference default)
    mem = src_x
    for p in params['enc_layers']:
        mem = _self_attn_block(mem, p['sa'], nhead, causal=True)
        mem = _ffn_block(mem, p['ff'])
    mem = _row_call(_ln_kernel, [mem.reshape(B * S, D)],
                    [params['enc_norm_g'], params['enc_norm_b']],
                    D).reshape(B, S, D)

    # decoder (causal tgt_mask, unmasked cross attention)
    out = tgt_x
    for p in params['dec_layers']:
        out = _self_attn_block(out, p['sa'], nhead, causal=True)
        out = _cross_attn_block(out, mem, p['ca'], nhead)
        out = _ffn_block(out, p['ff'])

    # fused: decoder final norm + residual(src_x) + self.norm + fc_out (padded)
    y = _row_call(_final_kernel,
                  [out.reshape(B * T, D), src_x.reshape(B * S, D)],
                  [params['dec_norm_g'], params['dec_norm_b'],
                   params['norm_g'], params['norm_b'],
                   params['w_fc_pad'], params['b_fc_pad']],
                  params['w_fc_pad'].shape[1])
    y = y[:, :output_size].reshape(B, T, output_size)
    return jnp.transpose(y, (1, 0, 2))                   # (T, B, output_size)


# ---------------------------------------------------------------------------
# Parameters: torch-convention init, then one-time kernel-layout preparation
# ---------------------------------------------------------------------------
def sinusoidal_pe(max_len, d_model):
    positions = jnp.arange(max_len, dtype=jnp.float32)[:, None]
    div = jnp.exp(jnp.arange(0, d_model, 2, dtype=jnp.float32)
                  * (-math.log(10000.0) / d_model))
    pe = jnp.zeros((max_len, d_model), jnp.float32)
    pe = pe.at[:, 0::2].set(jnp.sin(positions * div))
    pe = pe.at[:, 1::2].set(jnp.cos(positions * div))
    return pe


class KeyGen:
    def __init__(self, key):
        self.key = key

    def __call__(self):
        self.key, sub = jax.random.split(self.key)
        return sub


def _init_mha(kg, d_model, scale=0.1):
    return dict(
        in_proj_w=scale * jax.random.normal(kg(), (3 * d_model, d_model), jnp.float32),
        in_proj_b=jnp.zeros((3 * d_model,), jnp.float32),
        out_proj_w=scale * jax.random.normal(kg(), (d_model, d_model), jnp.float32),
        out_proj_b=jnp.zeros((d_model,), jnp.float32),
    )


def _init_ff_ln(kg, d_model, dff, n_ln, scale=0.1):
    p = dict(
        ff_w1=scale * jax.random.normal(kg(), (dff, d_model), jnp.float32),
        ff_b1=jnp.zeros((dff,), jnp.float32),
        ff_w2=scale * jax.random.normal(kg(), (d_model, dff), jnp.float32),
        ff_b2=jnp.zeros((d_model,), jnp.float32),
    )
    for i in range(1, n_ln + 1):
        p[f'ln{i}_g'] = jnp.ones((d_model,), jnp.float32)
        p[f'ln{i}_b'] = jnp.zeros((d_model,), jnp.float32)
    return p


def init_params(key, input_size, output_size, d_model, dff, n_enc, n_dec,
                max_len=64, scale=0.1):
    kg = KeyGen(key)
    params = dict(
        input_fc_w=scale * jax.random.normal(kg(), (d_model, input_size), jnp.float32),
        input_fc_b=jnp.zeros((d_model,), jnp.float32),
        fc_out_w=scale * jax.random.normal(kg(), (output_size, d_model), jnp.float32),
        fc_out_b=jnp.zeros((output_size,), jnp.float32),
        norm_g=jnp.ones((d_model,), jnp.float32),
        norm_b=jnp.zeros((d_model,), jnp.float32),
        enc_norm_g=jnp.ones((d_model,), jnp.float32),
        enc_norm_b=jnp.zeros((d_model,), jnp.float32),
        dec_norm_g=jnp.ones((d_model,), jnp.float32),
        dec_norm_b=jnp.zeros((d_model,), jnp.float32),
        pe_table=sinusoidal_pe(max_len, d_model),
    )
    enc_layers = []
    for _ in range(n_enc):
        p = dict(self_attn=_init_mha(kg, d_model, scale))
        p.update(_init_ff_ln(kg, d_model, dff, n_ln=2, scale=scale))
        enc_layers.append(p)
    dec_layers = []
    for _ in range(n_dec):
        p = dict(self_attn=_init_mha(kg, d_model, scale),
                 cross_attn=_init_mha(kg, d_model, scale))
        p.update(_init_ff_ln(kg, d_model, dff, n_ln=3, scale=scale))
        dec_layers.append(p)
    params['enc_layers'] = enc_layers
    params['dec_layers'] = dec_layers
    return params


def prepare_params(raw, output_size, nhead):
    """One-time conversion: torch (Dout,Din) weights -> pre-transposed bf16
    kernel layout; 1/sqrt(head_dim) folded into Q weights; 2x PE factor folded
    into W_in; biases/gammas as (1,D) f32 rows; fc_out lane-padded to 128."""
    D = raw['input_fc_w'].shape[0]
    q_scale = 1.0 / math.sqrt(D // nhead)

    def bf(w):
        return w.astype(_BF)

    def row(b):
        return b.reshape(1, -1).astype(jnp.float32)

    def prep_sa(m, g, b):
        w = m['in_proj_w'].T                      # (D, 3D) cols = [Q | K | V]
        bias = m['in_proj_b']
        w = w.at[:, :D].multiply(q_scale)         # fold softmax scale into Q
        bias = bias.at[:D].multiply(q_scale)
        return dict(w_qkv=bf(w), b_qkv=row(bias),
                    w_out=bf(m['out_proj_w'].T), b_out=row(m['out_proj_b']),
                    ln_g=row(g), ln_b=row(b))

    def prep_ca(m, g, b):
        w, bias = m['in_proj_w'], m['in_proj_b']
        return dict(w_q=bf(w[:D].T * q_scale), b_q=row(bias[:D] * q_scale),
                    w_kv=bf(w[D:].T), b_kv=row(bias[D:]),
                    w_out=bf(m['out_proj_w'].T), b_out=row(m['out_proj_b']),
                    ln_g=row(g), ln_b=row(b))

    def prep_ff(p, g, b):
        return dict(w1=bf(p['ff_w1'].T), b1=row(p['ff_b1']),
                    w2=bf(p['ff_w2'].T), b2=row(p['ff_b2']),
                    ln_g=row(g), ln_b=row(b))

    out = dict(
        w_in2=bf(2.0 * raw['input_fc_w'].T),      # 2x from PE + relative-PE
        b_in2=row(2.0 * raw['input_fc_b']),
        enc_norm_g=row(raw['enc_norm_g']), enc_norm_b=row(raw['enc_norm_b']),
        dec_norm_g=row(raw['dec_norm_g']), dec_norm_b=row(raw['dec_norm_b']),
        norm_g=row(raw['norm_g']), norm_b=row(raw['norm_b']),
        pe_table=raw['pe_table'].astype(jnp.float32),
    )
    out_pad = _round_up(max(output_size, 1), 128)     # lane-dense fc_out
    w_fc = raw['fc_out_w'].T                           # (D, output_size)
    w_pad = jnp.zeros((D, out_pad), jnp.float32).at[:, :output_size].set(w_fc)
    b_pad = jnp.zeros((1, out_pad), jnp.float32).at[:, :output_size].set(
        raw['fc_out_b'][None])
    out['w_fc_pad'] = bf(w_pad)
    out['b_fc_pad'] = b_pad

    out['enc_layers'] = [
        dict(sa=prep_sa(p['self_attn'], p['ln1_g'], p['ln1_b']),
             ff=prep_ff(p, p['ln2_g'], p['ln2_b']))
        for p in raw['enc_layers']]
    out['dec_layers'] = [
        dict(sa=prep_sa(p['self_attn'], p['ln1_g'], p['ln1_b']),
             ca=prep_ca(p['cross_attn'], p['ln2_g'], p['ln2_b']),
             ff=prep_ff(p, p['ln3_g'], p['ln3_b']))
        for p in raw['dec_layers']]
    return out


# ---------------------------------------------------------------------------
if __name__ == "__main__":
    INPUT_SIZE, OUTPUT_SIZE = 4, 1
    D_MODEL, NHEAD, DFF = 32, 4, 64
    N_ENC, N_DEC = 2, 2
    SEQ, BATCH = 8, 2

    root = jax.random.PRNGKey(0)
    k_src, k_tgt, k_par = jax.random.split(root, 3)
    src = jax.random.normal(k_src, (SEQ, BATCH, INPUT_SIZE), jnp.float32)
    tgt = jax.random.normal(k_tgt, (SEQ, BATCH, INPUT_SIZE), jnp.float32)

    raw = init_params(k_par, INPUT_SIZE, OUTPUT_SIZE, D_MODEL, DFF,
                      N_ENC, N_DEC, max_len=64)
    params = prepare_params(raw, OUTPUT_SIZE, NHEAD)

    out = vanilla_transformer_forward(params, src, tgt,
                                      nhead=NHEAD, output_size=OUTPUT_SIZE)
    out = jax.block_until_ready(out)

    assert out.shape == (SEQ, BATCH, OUTPUT_SIZE), out.shape
    assert bool(jnp.all(jnp.isfinite(out)))
    print("KERNEL_OK")
</pallas_src>

<mosaic_0001>
module attributes {stable_mosaic.version = 11 : i64} {
  func.func @_ln_kernel(%arg0: i32, %arg1: memref<16x32xf32, #tpu.memory_space<vmem>>, %arg2: memref<1x32xf32, #tpu.memory_space<vmem>>, %arg3: memref<1x32xf32, #tpu.memory_space<vmem>>, %arg4: memref<16x32xf32, #tpu.memory_space<vmem>>) attributes {dimension_semantics = [#tpu.dimension_semantics<parallel>], iteration_bounds = array<i64: 1>, scalar_prefetch = 0 : i64, scratch_operands = 0 : i64, tpu.core_type = #tpu.core_type<tc>, window_params = [{transform_indices = @transform_0, window_bounds = array<i64: 16, 32>}, {pipeline_mode = #tpu.pipeline_mode<synchronous>, transform_indices = @transform_1, window_bounds = array<i64: 1, 32>}, {pipeline_mode = #tpu.pipeline_mode<synchronous>, transform_indices = @transform_2, window_bounds = array<i64: 1, 32>}, {transform_indices = @transform_3, window_bounds = array<i64: 16, 32>}]} {
    %c0 = arith.constant 0 : index
    %c0_0 = arith.constant 0 : index
    %0 = vector.load %arg1[%c0, %c0_0] : memref<16x32xf32, #tpu.memory_space<vmem>>, vector<16x32xf32>
    %c0_1 = arith.constant 0 : index
    %c0_2 = arith.constant 0 : index
    %1 = vector.load %arg2[%c0_1, %c0_2] : memref<1x32xf32, #tpu.memory_space<vmem>>, vector<1x32xf32>
    %c0_3 = arith.constant 0 : index
    %c0_4 = arith.constant 0 : index
    %2 = vector.load %arg3[%c0_3, %c0_4] : memref<1x32xf32, #tpu.memory_space<vmem>>, vector<1x32xf32>
    %cst = arith.constant dense<0.000000e+00> : vector<16xf32>
    %3 = vector.multi_reduction <add>, %0, %cst [1] : vector<16x32xf32> to vector<16xf32>
    %4 = vector.shape_cast %3 : vector<16xf32> to vector<16x1xf32>
    %cst_5 = arith.constant 3.200000e+01 : f32
    %5 = vector.broadcast %cst_5 : f32 to vector<16x1xf32>
    %6 = arith.divf %4, %5 : vector<16x1xf32>
    %7 = vector.broadcast %6 : vector<16x1xf32> to vector<16x32xf32>
    %8 = arith.subf %0, %7 : vector<16x32xf32>
    %9 = arith.mulf %8, %8 : vector<16x32xf32>
    %cst_6 = arith.constant dense<0.000000e+00> : vector<16xf32>
    %10 = vector.multi_reduction <add>, %9, %cst_6 [1] : vector<16x32xf32> to vector<16xf32>
    %11 = vector.shape_cast %10 : vector<16xf32> to vector<16x1xf32>
    %cst_7 = arith.constant 3.200000e+01 : f32
    %12 = vector.broadcast %cst_7 : f32 to vector<16x1xf32>
    %13 = arith.divf %11, %12 : vector<16x1xf32>
    %14 = vector.broadcast %6 : vector<16x1xf32> to vector<16x32xf32>
    %15 = arith.subf %0, %14 : vector<16x32xf32>
    %cst_8 = arith.constant 9.99999974E-6 : f32
    %16 = vector.broadcast %cst_8 : f32 to vector<16x1xf32>
    %17 = arith.addf %13, %16 : vector<16x1xf32>
    %18 = math.rsqrt %17 : vector<16x1xf32>
    %19 = vector.broadcast %18 : vector<16x1xf32> to vector<16x32xf32>
    %20 = arith.mulf %15, %19 : vector<16x32xf32>
    %21 = vector.broadcast %1 : vector<1x32xf32> to vector<16x32xf32>
    %22 = arith.mulf %20, %21 : vector<16x32xf32>
    %23 = vector.broadcast %2 : vector<1x32xf32> to vector<16x32xf32>
    %24 = arith.addf %22, %23 : vector<16x32xf32>
    %c0_9 = arith.constant 0 : index
    %c0_10 = arith.constant 0 : index
    %25 = vector.load %arg4[%c0_9, %c0_10] : memref<16x32xf32, #tpu.memory_space<vmem>>, vector<16x32xf32>
    tpu.vector_store %arg4[%c0_9, %c0_10], %24 {strides = array<i32>} : memref<16x32xf32, #tpu.memory_space<vmem>>, vector<16x32xf32>,
    return
  }
  func.func @transform_0(%arg0: i32) -> (i32, i32) {
    %c0_i32 = arith.constant 0 : i32
    %c0_i32_0 = arith.constant 0 : i32
    return %arg0, %c0_i32 : i32, i32
  }
  func.func @transform_1(%arg0: i32) -> (i32, i32) {
    %c0_i32 = arith.constant 0 : i32
    %c0_i32_0 = arith.constant 0 : i32
    %c0_i32_1 = arith.constant 0 : i32
    return %c0_i32, %c0_i32_0 : i32, i32
  }
  func.func @transform_2(%arg0: i32) -> (i32, i32) {
    %c0_i32 = arith.constant 0 : i32
    %c0_i32_0 = arith.constant 0 : i32
    %c0_i32_1 = arith.constant 0 : i32
    return %c0_i32, %c0_i32_0 : i32, i32
  }
  func.func @transform_3(%arg0: i32) -> (i32, i32) {
    %c0_i32 = arith.constant 0 : i32
    %c0_i32_0 = arith.constant 0 : i32
    return %arg0, %c0_i32 : i32, i32
  }
}

module attributes {stable_mosaic.version = 11 : i64} {
  func.func @_ffn_res_ln_kernel(%arg0: i32, %arg1: memref<16x32xf32, #tpu.memory_space<vmem>>, %arg2: memref<32x64xbf16, #tpu.memory_space<vmem>>, %arg3: memref<1x64xf32, #tpu.memory_space<vmem>>, %arg4: memref<64x32xbf16, #tpu.memory_space<vmem>>, %arg5: memref<1x32xf32, #tpu.memory_space<vmem>>, %arg6: memref<1x32xf32, #tpu.memory_space<vmem>>, %arg7: memref<1x32xf32, #tpu.memory_space<vmem>>, %arg8: memref<16x32xf32, #tpu.memory_space<vmem>>) attributes {dimension_semantics = [#tpu.dimension_semantics<parallel>], iteration_bounds = array<i64: 1>, scalar_prefetch = 0 : i64, scratch_operands = 0 : i64, tpu.core_type = #tpu.core_type<tc>, window_params = [{transform_indices = @transform_0, window_bounds = array<i64: 16, 32>}, {pipeline_mode = #tpu.pipeline_mode<synchronous>, transform_indices = @transform_1, window_bounds = array<i64: 32, 64>}, {pipeline_mode = #tpu.pipeline_mode<synchronous>, transform_indices = @transform_2, window_bounds = array<i64: 1, 64>}, {pipeline_mode = #tpu.pipeline_mode<synchronous>, transform_indices = @transform_3, window_bounds = array<i64: 64, 32>}, {pipeline_mode = #tpu.pipeline_mode<synchronous>, transform_indices = @transform_4, window_bounds = array<i64: 1, 32>}, {pipeline_mode = #tpu.pipeline_mode<synchronous>, transform_indices = @transform_5, window_bounds = array<i64: 1, 32>}, {pipeline_mode = #tpu.pipeline_mode<synchronous>, transform_indices = @transform_6, window_bounds = array<i64: 1, 32>}, {transform_indices = @transform_7, window_bounds = array<i64: 16, 32>}]} {
    %c0 = arith.constant 0 : index
    %c0_0 = arith.constant 0 : index
    %0 = vector.load %arg1[%c0, %c0_0] : memref<16x32xf32, #tpu.memory_space<vmem>>, vector<16x32xf32>
    %1 = arith.truncf %0 : vector<16x32xf32> to vector<16x32xbf16>
    %c0_1 = arith.constant 0 : index
    %c0_2 = arith.constant 0 : index
    %2 = vector.load %arg2[%c0_1, %c0_2] : memref<32x64xbf16, #tpu.memory_space<vmem>>, vector<32x64xbf16>
    %cst = arith.constant dense<0.000000e+00> : vector<16x64xf32>
    %3 = tpu.matmul %1, %2, %cst {dimension_numbers = #tpu.dot_dimension_numbers<[1], [0], [0], [1], [0, 0, 1, 1], [], []>} : vector<16x32xbf16>, vector<32x64xbf16>, vector<16x64xf32> -> vector<16x64xf32>
    %c0_3 = arith.constant 0 : index
    %c0_4 = arith.constant 0 : index
    %4 = vector.load %arg3[%c0_3, %c0_4] : memref<1x64xf32, #tpu.memory_space<vmem>>, vector<1x64xf32>
    %5 = vector.broadcast %4 : vector<1x64xf32> to vector<16x64xf32>
    %6 = arith.addf %3, %5 : vector<16x64xf32>
    %cst_5 = arith.constant 0.000000e+00 : f32
    %7 = vector.broadcast %cst_5 : f32 to vector<16x64xf32>
    %8 = arith.maximumf %6, %7 : vector<16x64xf32>
    %9 = arith.truncf %8 : vector<16x64xf32> to vector<16x64xbf16>
    %c0_6 = arith.constant 0 : index
    %c0_7 = arith.constant 0 : index
    %10 = vector.load %arg4[%c0_6, %c0_7] : memref<64x32xbf16, #tpu.memory_space<vmem>>, vector<64x32xbf16>
    %cst_8 = arith.constant dense<0.000000e+00> : vector<16x32xf32>
    %11 = tpu.matmul %9, %10, %cst_8 {dimension_numbers = #tpu.dot_dimension_numbers<[1], [0], [0], [1], [0, 0, 1, 1], [], []>} : vector<16x64xbf16>, vector<64x32xbf16>, vector<16x32xf32> -> vector<16x32xf32>
    %12 = arith.addf %0, %11 : vector<16x32xf32>
    %c0_9 = arith.constant 0 : index
    %c0_10 = arith.constant 0 : index
    %13 = vector.load %arg5[%c0_9, %c0_10] : memref<1x32xf32, #tpu.memory_space<vmem>>, vector<1x32xf32>
    %14 = vector.broadcast %13 : vector<1x32xf32> to vector<16x32xf32>
    %15 = arith.addf %12, %14 : vector<16x32xf32>
    %c0_11 = arith.constant 0 : index
    %c0_12 = arith.constant 0 : index
    %16 = vector.load %arg6[%c0_11, %c0_12] : memref<1x32xf32, #tpu.memory_space<vmem>>, vector<1x32xf32>
    %c0_13 = arith.constant 0 : index
    %c0_14 = arith.constant 0 : index
    %17 = vector.load %arg7[%c0_13, %c0_14] : memref<1x32xf32, #tpu.memory_space<vmem>>, vector<1x32xf32>
    %cst_15 = arith.constant dense<0.000000e+00> : vector<16xf32>
    %18 = vector.multi_reduction <add>, %15, %cst_15 [1] : vector<16x32xf32> to vector<16xf32>
    %19 = vector.shape_cast %18 : vector<16xf32> to vector<16x1xf32>
    %cst_16 = arith.constant 3.200000e+01 : f32
    %20 = vector.broadcast %cst_16 : f32 to vector<16x1xf32>
    %21 = arith.divf %19, %20 : vector<16x1xf32>
    %22 = vector.broadcast %21 : vector<16x1xf32> to vector<16x32xf32>
    %23 = arith.subf %15, %22 : vector<16x32xf32>
    %24 = arith.mulf %23, %23 : vector<16x32xf32>
    %cst_17 = arith.constant dense<0.000000e+00> : vector<16xf32>
    %25 = vector.multi_reduction <add>, %24, %cst_17 [1] : vector<16x32xf32> to vector<16xf32>
    %26 = vector.shape_cast %25 : vector<16xf32> to vector<16x1xf32>
    %cst_18 = arith.constant 3.200000e+01 : f32
    %27 = vector.broadcast %cst_18 : f32 to vector<16x1xf32>
    %28 = arith.divf %26, %27 : vector<16x1xf32>
    %29 = vector.broadcast %21 : vector<16x1xf32> to vector<16x32xf32>
    %30 = arith.subf %15, %29 : vector<16x32xf32>
    %cst_19 = arith.constant 9.99999974E-6 : f32
    %31 = vector.broadcast %cst_19 : f32 to vector<16x1xf32>
    %32 = arith.addf %28, %31 : vector<16x1xf32>
    %33 = math.rsqrt %32 : vector<16x1xf32>
    %34 = vector.broadcast %33 : vector<16x1xf32> to vector<16x32xf32>
    %35 = arith.mulf %30, %34 : vector<16x32xf32>
    %36 = vector.broadcast %16 : vector<1x32xf32> to vector<16x32xf32>
    %37 = arith.mulf %35, %36 : vector<16x32xf32>
    %38 = vector.broadcast %17 : vector<1x32xf32> to vector<16x32xf32>
    %39 = arith.addf %37, %38 : vector<16x32xf32>
    %c0_20 = arith.constant 0 : index
    %c0_21 = arith.constant 0 : index
    %40 = vector.load %arg8[%c0_20, %c0_21] : memref<16x32xf32, #tpu.memory_space<vmem>>, vector<16x32xf32>
    tpu.vector_store %arg8[%c0_20, %c0_21], %39 {strides = array<i32>} : memref<16x32xf32, #tpu.memory_space<vmem>>, vector<16x32xf32>,
    return
  }
  func.func @transform_0(%arg0: i32) -> (i32, i32) {
    %c0_i32 = arith.constant 0 : i32
    %c0_i32_0 = arith.constant 0 : i32
    return %arg0, %c0_i32 : i32, i32
  }
  func.func @transform_1(%arg0: i32) -> (i32, i32) {
    %c0_i32 = arith.constant 0 : i32
    %c0_i32_0 = arith.constant 0 : i32
    %c0_i32_1 = arith.constant 0 : i32
    return %c0_i32, %c0_i32_0 : i32, i32
  }
  func.func @transform_2(%arg0: i32) -> (i32, i32) {
    %c0_i32 = arith.constant 0 : i32
    %c0_i32_0 = arith.constant 0 : i32
    %c0_i32_1 = arith.constant 0 : i32
    return %c0_i32, %c0_i32_0 : i32, i32
  }
  func.func @transform_3(%arg0: i32) -> (i32, i32) {
    %c0_i32 = arith.constant 0 : i32
    %c0_i32_0 = arith.constant 0 : i32
    %c0_i32_1 = arith.constant 0 : i32
    return %c0_i32, %c0_i32_0 : i32, i32
  }
  func.func @transform_4(%arg0: i32) -> (i32, i32) {
    %c0_i32 = arith.constant 0 : i32
    %c0_i32_0 = arith.constant 0 : i32
    %c0_i32_1 = arith.constant 0 : i32
    return %c0_i32, %c0_i32_0 : i32, i32
  }
  func.func @transform_5(%arg0: i32) -> (i32, i32) {
    %c0_i32 = arith.constant 0 : i32
    %c0_i32_0 = arith.constant 0 : i32
    %c0_i32_1 = arith.constant 0 : i32
    return %c0_i32, %c0_i32_0 : i32, i32
  }
  func.func @transform_6(%arg0: i32) -> (i32, i32) {
    %c0_i32 = arith.constant 0 : i32
    %c0_i32_0 = arith.constant 0 : i32
    %c0_i32_1 = arith.constant 0 : i32
    return %c0_i32, %c0_i32_0 : i32, i32
  }
  func.func @transform_7(%arg0: i32) -> (i32, i32) {
    %c0_i32 = arith.constant 0 : i32
    %c0_i32_0 = arith.constant 0 : i32
    return %arg0, %c0_i32 : i32, i32
  }
}

module attributes {stable_mosaic.version = 11 : i64} {
  func.func @_embed_kernel(%arg0: i32, %arg1: memref<1x8x4xf32, #tpu.memory_space<vmem>>, %arg2: memref<8x32xf32, #tpu.memory_space<vmem>>, %arg3: memref<4x32xbf16, #tpu.memory_space<vmem>>, %arg4: memref<1x8x32xf32, #tpu.memory_space<vmem>>) attributes {dimension_semantics = [#tpu.dimension_semantics<parallel>], iteration_bounds = array<i64: 2>, scalar_prefetch = 0 : i64, scratch_operands = 0 : i64, tpu.core_type = #tpu.core_type<tc>, window_params = [{transform_indices = @transform_0, window_bounds = array<i64: 1, 8, 4>}, {pipeline_mode = #tpu.pipeline_mode<synchronous>, transform_indices = @transform_1, window_bounds = array<i64: 8, 32>}, {pipeline_mode = #tpu.pipeline_mode<synchronous>, transform_indices = @transform_2, window_bounds = array<i64: 4, 32>}, {transform_indices = @transform_3, window_bounds = array<i64: 1, 8, 32>}]} {
    %c0 = arith.constant 0 : index
    %c0_0 = arith.constant 0 : index
    %c0_1 = arith.constant 0 : index
    %0 = vector.load %arg1[%c0, %c0_0, %c0_1] : memref<1x8x4xf32, #tpu.memory_space<vmem>>, vector<1x8x4xf32>
    %1 = vector.shape_cast %0 : vector<1x8x4xf32> to vector<8x4xf32>
    %2 = arith.truncf %1 : vector<8x4xf32> to vector<8x4xbf16>
    %c0_2 = arith.constant 0 : index
    %c0_3 = arith.constant 0 : index
    %3 = vector.load %arg3[%c0_2, %c0_3] : memref<4x32xbf16, #tpu.memory_space<vmem>>, vector<4x32xbf16>
    %cst = arith.constant dense<0.000000e+00> : vector<8x32xf32>
    %4 = tpu.matmul %2, %3, %cst {dimension_numbers = #tpu.dot_dimension_numbers<[1], [0], [0], [1], [0, 0, 1, 1], [], []>} : vector<8x4xbf16>, vector<4x32xbf16>, vector<8x32xf32> -> vector<8x32xf32>
    %c0_4 = arith.constant 0 : index
    %c0_5 = arith.constant 0 : index
    %5 = vector.load %arg2[%c0_4, %c0_5] : memref<8x32xf32, #tpu.memory_space<vmem>>, vector<8x32xf32>
    %6 = arith.addf %4, %5 : vector<8x32xf32>
    %c0_6 = arith.constant 0 : index
    %c0_7 = arith.constant 0 : index
    %c0_8 = arith.constant 0 : index
    %7 = vector.load %arg4[%c0_6, %c0_7, %c0_8] : memref<1x8x32xf32, #tpu.memory_space<vmem>>, vector<1x8x32xf32>
    %8 = vector.shape_cast %7 : vector<1x8x32xf32> to vector<8x32xf32>
    %9 = vector.shape_cast %6 : vector<8x32xf32> to vector<1x8x32xf32>
    tpu.vector_store %arg4[%c0_6, %c0_7, %c0_8], %9 {strides = array<i32>} : memref<1x8x32xf32, #tpu.memory_space<vmem>>, vector<1x8x32xf32>,
    return
  }
  func.func @transform_0(%arg0: i32) -> (i32, i32, i32) {
    %c0_i32 = arith.constant 0 : i32
    %c0_i32_0 = arith.constant 0 : i32
    %c0_i32_1 = arith.constant 0 : i32
    return %arg0, %c0_i32, %c0_i32_0 : i32, i32, i32
  }
  func.func @transform_1(%arg0: i32) -> (i32, i32) {
    %c0_i32 = arith.constant 0 : i32
    %c0_i32_0 = arith.constant 0 : i32
    %c0_i32_1 = arith.constant 0 : i32
    return %c0_i32, %c0_i32_0 : i32, i32
  }
  func.func @transform_2(%arg0: i32) -> (i32, i32) {
    %c0_i32 = arith.constant 0 : i32
    %c0_i32_0 = arith.constant 0 : i32
    %c0_i32_1 = arith.constant 0 : i32
    return %c0_i32, %c0_i32_0 : i32, i32
  }
  func.func @transform_3(%arg0: i32) -> (i32, i32, i32) {
    %c0_i32 = arith.constant 0 : i32
    %c0_i32_0 = arith.constant 0 : i32
    %c0_i32_1 = arith.constant 0 : i32
    return %arg0, %c0_i32, %c0_i32_0 : i32, i32, i32
  }
}

module attributes {stable_mosaic.version = 11 : i64} {
  func.func @_self_attn_block_kernel(%arg0: i32, %arg1: memref<1x8x32xf32, #tpu.memory_space<vmem>>, %arg2: memref<32x96xbf16, #tpu.memory_space<vmem>>, %arg3: memref<1x96xf32, #tpu.memory_space<vmem>>, %arg4: memref<32x32xbf16, #tpu.memory_space<vmem>>, %arg5: memref<1x32xf32, #tpu.memory_space<vmem>>, %arg6: memref<1x32xf32, #tpu.memory_space<vmem>>, %arg7: memref<1x32xf32, #tpu.memory_space<vmem>>, %arg8: memref<1x8x32xf32, #tpu.memory_space<vmem>>) attributes {dimension_semantics = [#tpu.dimension_semantics<parallel>], iteration_bounds = array<i64: 2>, scalar_prefetch = 0 : i64, scratch_operands = 0 : i64, tpu.core_type = #tpu.core_type<tc>, window_params = [{transform_indices = @transform_0, window_bounds = array<i64: 1, 8, 32>}, {pipeline_mode = #tpu.pipeline_mode<synchronous>, transform_indices = @transform_1, window_bounds = array<i64: 32, 96>}, {pipeline_mode = #tpu.pipeline_mode<synchronous>, transform_indices = @transform_2, window_bounds = array<i64: 1, 96>}, {pipeline_mode = #tpu.pipeline_mode<synchronous>, transform_indices = @transform_3, window_bounds = array<i64: 32, 32>}, {pipeline_mode = #tpu.pipeline_mode<synchronous>, transform_indices = @transform_4, window_bounds = array<i64: 1, 32>}, {pipeline_mode = #tpu.pipeline_mode<synchronous>, transform_indices = @transform_5, window_bounds = array<i64: 1, 32>}, {pipeline_mode = #tpu.pipeline_mode<synchronous>, transform_indices = @transform_6, window_bounds = array<i64: 1, 32>}, {transform_indices = @transform_7, window_bounds = array<i64: 1, 8, 32>}]} {
    %c0 = arith.constant 0 : index
    %c0_0 = arith.constant 0 : index
    %c0_1 = arith.constant 0 : index
    %0 = vector.load %arg1[%c0, %c0_0, %c0_1] : memref<1x8x32xf32, #tpu.memory_space<vmem>>, vector<1x8x32xf32>
    %1 = vector.shape_cast %0 : vector<1x8x32xf32> to vector<8x32xf32>
    %2 = arith.truncf %1 : vector<8x32xf32> to vector<8x32xbf16>
    %c0_2 = arith.constant 0 : index
    %c0_3 = arith.constant 0 : index
    %3 = vector.load %arg2[%c0_2, %c0_3] : memref<32x96xbf16, #tpu.memory_space<vmem>>, vector<32x96xbf16>
    %cst = arith.constant dense<0.000000e+00> : vector<8x96xf32>
    %4 = tpu.matmul %2, %3, %cst {dimension_numbers = #tpu.dot_dimension_numbers<[1], [0], [0], [1], [0, 0, 1, 1], [], []>} : vector<8x32xbf16>, vector<32x96xbf16>, vector<8x96xf32> -> vector<8x96xf32>
    %c0_4 = arith.constant 0 : index
    %c0_5 = arith.constant 0 : index
    %5 = vector.load %arg3[%c0_4, %c0_5] : memref<1x96xf32, #tpu.memory_space<vmem>>, vector<1x96xf32>
    %6 = vector.broadcast %5 : vector<1x96xf32> to vector<8x96xf32>
    %7 = arith.addf %4, %6 : vector<8x96xf32>
    %8 = tpu.iota {dimensions = array<i32: 0>} : vector<8x8xi32>
    %9 = tpu.iota {dimensions = array<i32: 1>} : vector<8x8xi32>
    %10 = arith.cmpi sgt, %9, %8 : vector<8x8xi32>
    %cst_6 = arith.constant 0.000000e+00 : f32
    %11 = vector.broadcast %cst_6 : f32 to vector<8x32xf32>
    %12 = vector.extract_strided_slice %7 {offsets = [0, 0], sizes = [8, 8], strides = [1, 1]} : vector<8x96xf32> to vector<8x8xf32>
    %13 = arith.truncf %12 : vector<8x8xf32> to vector<8x8xbf16>
    %14 = vector.extract_strided_slice %7 {offsets = [0, 32], sizes = [8, 8], strides = [1, 1]} : vector<8x96xf32> to vector<8x8xf32>
    %15 = arith.truncf %14 : vector<8x8xf32> to vector<8x8xbf16>
    %16 = vector.extract_strided_slice %7 {offsets = [0, 64], sizes = [8, 8], strides = [1, 1]} : vector<8x96xf32> to vector<8x8xf32>
    %17 = arith.truncf %16 : vector<8x8xf32> to vector<8x8xbf16>
    %cst_7 = arith.constant dense<0.000000e+00> : vector<8x8xf32>
    %18 = tpu.matmul %13, %15, %cst_7 {dimension_numbers = #tpu.dot_dimension_numbers<[1], [1], [0], [0], [0, 0, 1, 0], [], []>} : vector<8x8xbf16>, vector<8x8xbf16>, vector<8x8xf32> -> vector<8x8xf32>
    %cst_8 = arith.constant 0xFF800000 : f32
    %19 = vector.broadcast %cst_8 : f32 to vector<8x8xf32>
    %20 = arith.select %10, %19, %18 : vector<8x8xi1>, vector<8x8xf32>
    %cst_9 = arith.constant dense<0xFF800000> : vector<8xf32>
    %21 = vector.multi_reduction <maximumf>, %20, %cst_9 [1] : vector<8x8xf32> to vector<8xf32>
    %22 = vector.shape_cast %21 : vector<8xf32> to vector<8x1xf32>
    %23 = vector.broadcast %22 : vector<8x1xf32> to vector<8x8xf32>
    %24 = arith.subf %20, %23 : vector<8x8xf32>
    %25 = math.exp %24 : vector<8x8xf32>
    %cst_10 = arith.constant dense<0.000000e+00> : vector<8xf32>
    %26 = vector.multi_reduction <add>, %25, %cst_10 [1] : vector<8x8xf32> to vector<8xf32>
    %27 = vector.shape_cast %26 : vector<8xf32> to vector<8x1xf32>
    %28 = tpu.reciprocal %27 {approx = true} : vector<8x1xf32> -> vector<8x1xf32>
    %29 = arith.truncf %25 : vector<8x8xf32> to vector<8x8xbf16>
    %cst_11 = arith.constant dense<0.000000e+00> : vector<8x8xf32>
    %30 = tpu.matmul %29, %17, %cst_11 {dimension_numbers = #tpu.dot_dimension_numbers<[1], [0], [0], [1], [0, 0, 1, 1], [], []>} : vector<8x8xbf16>, vector<8x8xbf16>, vector<8x8xf32> -> vector<8x8xf32>
    %31 = vector.broadcast %28 : vector<8x1xf32> to vector<8x8xf32>
    %32 = arith.mulf %30, %31 : vector<8x8xf32>
    %33 = arith.truncf %32 : vector<8x8xf32> to vector<8x8xbf16>
    %c0_12 = arith.constant 0 : index
    %c0_13 = arith.constant 0 : index
    %34 = vector.load %arg4[%c0_12, %c0_13] : memref<32x32xbf16, #tpu.memory_space<vmem>>, vector<8x32xbf16>
    %cst_14 = arith.constant dense<0.000000e+00> : vector<8x32xf32>
    %35 = tpu.matmul %33, %34, %cst_14 {dimension_numbers = #tpu.dot_dimension_numbers<[1], [0], [0], [1], [0, 0, 1, 1], [], []>} : vector<8x8xbf16>, vector<8x32xbf16>, vector<8x32xf32> -> vector<8x32xf32>
    %36 = arith.addf %11, %35 : vector<8x32xf32>
    %37 = vector.extract_strided_slice %7 {offsets = [0, 8], sizes = [8, 8], strides = [1, 1]} : vector<8x96xf32> to vector<8x8xf32>
    %38 = arith.truncf %37 : vector<8x8xf32> to vector<8x8xbf16>
    %39 = vector.extract_strided_slice %7 {offsets = [0, 40], sizes = [8, 8], strides = [1, 1]} : vector<8x96xf32> to vector<8x8xf32>
    %40 = arith.truncf %39 : vector<8x8xf32> to vector<8x8xbf16>
    %41 = vector.extract_strided_slice %7 {offsets = [0, 72], sizes = [8, 8], strides = [1, 1]} : vector<8x96xf32> to vector<8x8xf32>
    %42 = arith.truncf %41 : vector<8x8xf32> to vector<8x8xbf16>
    %cst_15 = arith.constant dense<0.000000e+00> : vector<8x8xf32>
    %43 = tpu.matmul %38, %40, %cst_15 {dimension_numbers = #tpu.dot_dimension_numbers<[1], [1], [0], [0], [0, 0, 1, 0], [], []>} : vector<8x8xbf16>, vector<8x8xbf16>, vector<8x8xf32> -> vector<8x8xf32>
    %cst_16 = arith.constant 0xFF800000 : f32
    %44 = vector.broadcast %cst_16 : f32 to vector<8x8xf32>
    %45 = arith.select %10, %44, %43 : vector<8x8xi1>, vector<8x8xf32>
    %cst_17 = arith.constant dense<0xFF800000> : vector<8xf32>
    %46 = vector.multi_reduction <maximumf>, %45, %cst_17 [1] : vector<8x8xf32> to vector<8xf32>
    %47 = vector.shape_cast %46 : vector<8xf32> to vector<8x1xf32>
    %48 = vector.broadcast %47 : vector<8x1xf32> to vector<8x8xf32>
    %49 = arith.subf %45, %48 : vector<8x8xf32>
    %50 = math.exp %49 : vector<8x8xf32>
    %cst_18 = arith.constant dense<0.000000e+00> : vector<8xf32>
    %51 = vector.multi_reduction <add>, %50, %cst_18 [1] : vector<8x8xf32> to vector<8xf32>
    %52 = vector.shape_cast %51 : vector<8xf32> to vector<8x1xf32>
    %53 = tpu.reciprocal %52 {approx = true} : vector<8x1xf32> -> vector<8x1xf32>
    %54 = arith.truncf %50 : vector<8x8xf32> to vector<8x8xbf16>
    %cst_19 = arith.constant dense<0.000000e+00> : vector<8x8xf32>
    %55 = tpu.matmul %54, %42, %cst_19 {dimension_numbers = #tpu.dot_dimension_numbers<[1], [0], [0], [1], [0, 0, 1, 1], [], []>} : vector<8x8xbf16>, vector<8x8xbf16>, vector<8x8xf32> -> vector<8x8xf32>
    %56 = vector.broadcast %53 : vector<8x1xf32> to vector<8x8xf32>
    %57 = arith.mulf %55, %56 : vector<8x8xf32>
    %58 = arith.truncf %57 : vector<8x8xf32> to vector<8x8xbf16>
    %c8 = arith.constant 8 : index
    %c0_20 = arith.constant 0 : index
    %59 = vector.load %arg4[%c8, %c0_20] : memref<32x32xbf16, #tpu.memory_space<vmem>>, vector<8x32xbf16>
    %cst_21 = arith.constant dense<0.000000e+00> : vector<8x32xf32>
    %60 = tpu.matmul %58, %59, %cst_21 {dimension_numbers = #tpu.dot_dimension_numbers<[1], [0], [0], [1], [0, 0, 1, 1], [], []>} : vector<8x8xbf16>, vector<8x32xbf16>, vector<8x32xf32> -> vector<8x32xf32>
    %61 = arith.addf %36, %60 : vector<8x32xf32>
    %62 = vector.extract_strided_slice %7 {offsets = [0, 16], sizes = [8, 8], strides = [1, 1]} : vector<8x96xf32> to vector<8x8xf32>
    %63 = arith.truncf %62 : vector<8x8xf32> to vector<8x8xbf16>
    %64 = vector.extract_strided_slice %7 {offsets = [0, 48], sizes = [8, 8], strides = [1, 1]} : vector<8x96xf32> to vector<8x8xf32>
    %65 = arith.truncf %64 : vector<8x8xf32> to vector<8x8xbf16>
    %66 = vector.extract_strided_slice %7 {offsets = [0, 80], sizes = [8, 8], strides = [1, 1]} : vector<8x96xf32> to vector<8x8xf32>
    %67 = arith.truncf %66 : vector<8x8xf32> to vector<8x8xbf16>
    %cst_22 = arith.constant dense<0.000000e+00> : vector<8x8xf32>
    %68 = tpu.matmul %63, %65, %cst_22 {dimension_numbers = #tpu.dot_dimension_numbers<[1], [1], [0], [0], [0, 0, 1, 0], [], []>} : vector<8x8xbf16>, vector<8x8xbf16>, vector<8x8xf32> -> vector<8x8xf32>
    %cst_23 = arith.constant 0xFF800000 : f32
    %69 = vector.broadcast %cst_23 : f32 to vector<8x8xf32>
    %70 = arith.select %10, %69, %68 : vector<8x8xi1>, vector<8x8xf32>
    %cst_24 = arith.constant dense<0xFF800000> : vector<8xf32>
    %71 = vector.multi_reduction <maximumf>, %70, %cst_24 [1] : vector<8x8xf32> to vector<8xf32>
    %72 = vector.shape_cast %71 : vector<8xf32> to vector<8x1xf32>
    %73 = vector.broadcast %72 : vector<8x1xf32> to vector<8x8xf32>
    %74 = arith.subf %70, %73 : vector<8x8xf32>
    %75 = math.exp %74 : vector<8x8xf32>
    %cst_25 = arith.constant dense<0.000000e+00> : vector<8xf32>
    %76 = vector.multi_reduction <add>, %75, %cst_25 [1] : vector<8x8xf32> to vector<8xf32>
    %77 = vector.shape_cast %76 : vector<8xf32> to vector<8x1xf32>
    %78 = tpu.reciprocal %77 {approx = true} : vector<8x1xf32> -> vector<8x1xf32>
    %79 = arith.truncf %75 : vector<8x8xf32> to vector<8x8xbf16>
    %cst_26 = arith.constant dense<0.000000e+00> : vector<8x8xf32>
    %80 = tpu.matmul %79, %67, %cst_26 {dimension_numbers = #tpu.dot_dimension_numbers<[1], [0], [0], [1], [0, 0, 1, 1], [], []>} : vector<8x8xbf16>, vector<8x8xbf16>, vector<8x8xf32> -> vector<8x8xf32>
    %81 = vector.broadcast %78 : vector<8x1xf32> to vector<8x8xf32>
    %82 = arith.mulf %80, %81 : vector<8x8xf32>
    %83 = arith.truncf %82 : vector<8x8xf32> to vector<8x8xbf16>
    %c16 = arith.constant 16 : index
    %c0_27 = arith.constant 0 : index
    %84 = vector.load %arg4[%c16, %c0_27] : memref<32x32xbf16, #tpu.memory_space<vmem>>, vector<8x32xbf16>
    %cst_28 = arith.constant dense<0.000000e+00> : vector<8x32xf32>
    %85 = tpu.matmul %83, %84, %cst_28 {dimension_numbers = #tpu.dot_dimension_numbers<[1], [0], [0], [1], [0, 0, 1, 1], [], []>} : vector<8x8xbf16>, vector<8x32xbf16>, vector<8x32xf32> -> vector<8x32xf32>
    %86 = arith.addf %61, %85 : vector<8x32xf32>
    %87 = vector.extract_strided_slice %7 {offsets = [0, 24], sizes = [8, 8], strides = [1, 1]} : vector<8x96xf32> to vector<8x8xf32>
    %88 = arith.truncf %87 : vector<8x8xf32> to vector<8x8xbf16>
    %89 = vector.extract_strided_slice %7 {offsets = [0, 56], sizes = [8, 8], strides = [1, 1]} : vector<8x96xf32> to vector<8x8xf32>
    %90 = arith.truncf %89 : vector<8x8xf32> to vector<8x8xbf16>
    %91 = vector.extract_strided_slice %7 {offsets = [0, 88], sizes = [8, 8], strides = [1, 1]} : vector<8x96xf32> to vector<8x8xf32>
    %92 = arith.truncf %91 : vector<8x8xf32> to vector<8x8xbf16>
    %cst_29 = arith.constant dense<0.000000e+00> : vector<8x8xf32>
    %93 = tpu.matmul %88, %90, %cst_29 {dimension_numbers = #tpu.dot_dimension_numbers<[1], [1], [0], [0], [0, 0, 1, 0], [], []>} : vector<8x8xbf16>, vector<8x8xbf16>, vector<8x8xf32> -> vector<8x8xf32>
    %cst_30 = arith.constant 0xFF800000 : f32
    %94 = vector.broadcast %cst_30 : f32 to vector<8x8xf32>
    %95 = arith.select %10, %94, %93 : vector<8x8xi1>, vector<8x8xf32>
    %cst_31 = arith.constant dense<0xFF800000> : vector<8xf32>
    %96 = vector.multi_reduction <maximumf>, %95, %cst_31 [1] : vector<8x8xf32> to vector<8xf32>
    %97 = vector.shape_cast %96 : vector<8xf32> to vector<8x1xf32>
    %98 = vector.broadcast %97 : vector<8x1xf32> to vector<8x8xf32>
    %99 = arith.subf %95, %98 : vector<8x8xf32>
    %100 = math.exp %99 : vector<8x8xf32>
    %cst_32 = arith.constant dense<0.000000e+00> : vector<8xf32>
    %101 = vector.multi_reduction <add>, %100, %cst_32 [1] : vector<8x8xf32> to vector<8xf32>
    %102 = vector.shape_cast %101 : vector<8xf32> to vector<8x1xf32>
    %103 = tpu.reciprocal %102 {approx = true} : vector<8x1xf32> -> vector<8x1xf32>
    %104 = arith.truncf %100 : vector<8x8xf32> to vector<8x8xbf16>
    %cst_33 = arith.constant dense<0.000000e+00> : vector<8x8xf32>
    %105 = tpu.matmul %104, %92, %cst_33 {dimension_numbers = #tpu.dot_dimension_numbers<[1], [0], [0], [1], [0, 0, 1, 1], [], []>} : vector<8x8xbf16>, vector<8x8xbf16>, vector<8x8xf32> -> vector<8x8xf32>
    %106 = vector.broadcast %103 : vector<8x1xf32> to vector<8x8xf32>
    %107 = arith.mulf %105, %106 : vector<8x8xf32>
    %108 = arith.truncf %107 : vector<8x8xf32> to vector<8x8xbf16>
    %c24 = arith.constant 24 : index
    %c0_34 = arith.constant 0 : index
    %109 = vector.load %arg4[%c24, %c0_34] : memref<32x32xbf16, #tpu.memory_space<vmem>>, vector<8x32xbf16>
    %cst_35 = arith.constant dense<0.000000e+00> : vector<8x32xf32>
    %110 = tpu.matmul %108, %109, %cst_35 {dimension_numbers = #tpu.dot_dimension_numbers<[1], [0], [0], [1], [0, 0, 1, 1], [], []>} : vector<8x8xbf16>, vector<8x32xbf16>, vector<8x32xf32> -> vector<8x32xf32>
    %111 = arith.addf %86, %110 : vector<8x32xf32>
    %112 = arith.addf %1, %111 : vector<8x32xf32>
    %c0_36 = arith.constant 0 : index
    %c0_37 = arith.constant 0 : index
    %113 = vector.load %arg5[%c0_36, %c0_37] : memref<1x32xf32, #tpu.memory_space<vmem>>, vector<1x32xf32>
    %114 = vector.broadcast %113 : vector<1x32xf32> to vector<8x32xf32>
    %115 = arith.addf %112, %114 : vector<8x32xf32>
    %c0_38 = arith.constant 0 : index
    %c0_39 = arith.constant 0 : index
    %116 = vector.load %arg6[%c0_38, %c0_39] : memref<1x32xf32, #tpu.memory_space<vmem>>, vector<1x32xf32>
    %c0_40 = arith.constant 0 : index
    %c0_41 = arith.constant 0 : index
    %117 = vector.load %arg7[%c0_40, %c0_41] : memref<1x32xf32, #tpu.memory_space<vmem>>, vector<1x32xf32>
    %cst_42 = arith.constant dense<0.000000e+00> : vector<8xf32>
    %118 = vector.multi_reduction <add>, %115, %cst_42 [1] : vector<8x32xf32> to vector<8xf32>
    %119 = vector.shape_cast %118 : vector<8xf32> to vector<8x1xf32>
    %cst_43 = arith.constant 3.200000e+01 : f32
    %120 = vector.broadcast %cst_43 : f32 to vector<8x1xf32>
    %121 = arith.divf %119, %120 : vector<8x1xf32>
    %122 = vector.broadcast %121 : vector<8x1xf32> to vector<8x32xf32>
    %123 = arith.subf %115, %122 : vector<8x32xf32>
    %124 = arith.mulf %123, %123 : vector<8x32xf32>
    %cst_44 = arith.constant dense<0.000000e+00> : vector<8xf32>
    %125 = vector.multi_reduction <add>, %124, %cst_44 [1] : vector<8x32xf32> to vector<8xf32>
    %126 = vector.shape_cast %125 : vector<8xf32> to vector<8x1xf32>
    %cst_45 = arith.constant 3.200000e+01 : f32
    %127 = vector.broadcast %cst_45 : f32 to vector<8x1xf32>
    %128 = arith.divf %126, %127 : vector<8x1xf32>
    %129 = vector.broadcast %121 : vector<8x1xf32> to vector<8x32xf32>
    %130 = arith.subf %115, %129 : vector<8x32xf32>
    %cst_46 = arith.constant 9.99999974E-6 : f32
    %131 = vector.broadcast %cst_46 : f32 to vector<8x1xf32>
    %132 = arith.addf %128, %131 : vector<8x1xf32>
    %133 = math.rsqrt %132 : vector<8x1xf32>
    %134 = vector.broadcast %133 : vector<8x1xf32> to vector<8x32xf32>
    %135 = arith.mulf %130, %134 : vector<8x32xf32>
    %136 = vector.broadcast %116 : vector<1x32xf32> to vector<8x32xf32>
    %137 = arith.mulf %135, %136 : vector<8x32xf32>
    %138 = vector.broadcast %117 : vector<1x32xf32> to vector<8x32xf32>
    %139 = arith.addf %137, %138 : vector<8x32xf32>
    %c0_47 = arith.constant 0 : index
    %c0_48 = arith.constant 0 : index
    %c0_49 = arith.constant 0 : index
    %140 = vector.load %arg8[%c0_47, %c0_48, %c0_49] : memref<1x8x32xf32, #tpu.memory_space<vmem>>, vector<1x8x32xf32>
    %141 = vector.shape_cast %140 : vector<1x8x32xf32> to vector<8x32xf32>
    %142 = vector.shape_cast %139 : vector<8x32xf32> to vector<1x8x32xf32>
    tpu.vector_store %arg8[%c0_47, %c0_48, %c0_49], %142 {strides = array<i32>} : memref<1x8x32xf32, #tpu.memory_space<vmem>>, vector<1x8x32xf32>,
    return
  }
  func.func @transform_0(%arg0: i32) -> (i32, i32, i32) {
    %c0_i32 = arith.constant 0 : i32
    %c0_i32_0 = arith.constant 0 : i32
    %c0_i32_1 = arith.constant 0 : i32
    return %arg0, %c0_i32, %c0_i32_0 : i32, i32, i32
  }
  func.func @transform_1(%arg0: i32) -> (i32, i32) {
    %c0_i32 = arith.constant 0 : i32
    %c0_i32_0 = arith.constant 0 : i32
    %c0_i32_1 = arith.constant 0 : i32
    return %c0_i32, %c0_i32_0 : i32, i32
  }
  func.func @transform_2(%arg0: i32) -> (i32, i32) {
    %c0_i32 = arith.constant 0 : i32
    %c0_i32_0 = arith.constant 0 : i32
    %c0_i32_1 = arith.constant 0 : i32
    return %c0_i32, %c0_i32_0 : i32, i32
  }
  func.func @transform_3(%arg0: i32) -> (i32, i32) {
    %c0_i32 = arith.constant 0 : i32
    %c0_i32_0 = arith.constant 0 : i32
    %c0_i32_1 = arith.constant 0 : i32
    return %c0_i32, %c0_i32_0 : i32, i32
  }
  func.func @transform_4(%arg0: i32) -> (i32, i32) {
    %c0_i32 = arith.constant 0 : i32
    %c0_i32_0 = arith.constant 0 : i32
    %c0_i32_1 = arith.constant 0 : i32
    return %c0_i32, %c0_i32_0 : i32, i32
  }
  func.func @transform_5(%arg0: i32) -> (i32, i32) {
    %c0_i32 = arith.constant 0 : i32
    %c0_i32_0 = arith.constant 0 : i32
    %c0_i32_1 = arith.constant 0 : i32
    return %c0_i32, %c0_i32_0 : i32, i32
  }
  func.func @transform_6(%arg0: i32) -> (i32, i32) {
    %c0_i32 = arith.constant 0 : i32
    %c0_i32_0 = arith.constant 0 : i32
    %c0_i32_1 = arith.constant 0 : i32
    return %c0_i32, %c0_i32_0 : i32, i32
  }
  func.func @transform_7(%arg0: i32) -> (i32, i32, i32) {
    %c0_i32 = arith.constant 0 : i32
    %c0_i32_0 = arith.constant 0 : i32
    %c0_i32_1 = arith.constant 0 : i32
    return %arg0, %c0_i32, %c0_i32_0 : i32, i32, i32
  }
}

module attributes {stable_mosaic.version = 11 : i64} {
  func.func @_final_kernel(%arg0: i32, %arg1: memref<16x32xf32, #tpu.memory_space<vmem>>, %arg2: memref<16x32xf32, #tpu.memory_space<vmem>>, %arg3: memref<1x32xf32, #tpu.memory_space<vmem>>, %arg4: memref<1x32xf32, #tpu.memory_space<vmem>>, %arg5: memref<1x32xf32, #tpu.memory_space<vmem>>, %arg6: memref<1x32xf32, #tpu.memory_space<vmem>>, %arg7: memref<32x128xbf16, #tpu.memory_space<vmem>>, %arg8: memref<1x128xf32, #tpu.memory_space<vmem>>, %arg9: memref<16x128xf32, #tpu.memory_space<vmem>>) attributes {dimension_semantics = [#tpu.dimension_semantics<parallel>], iteration_bounds = array<i64: 1>, scalar_prefetch = 0 : i64, scratch_operands = 0 : i64, tpu.core_type = #tpu.core_type<tc>, window_params = [{transform_indices = @transform_0, window_bounds = array<i64: 16, 32>}, {transform_indices = @transform_1, window_bounds = array<i64: 16, 32>}, {pipeline_mode = #tpu.pipeline_mode<synchronous>, transform_indices = @transform_2, window_bounds = array<i64: 1, 32>}, {pipeline_mode = #tpu.pipeline_mode<synchronous>, transform_indices = @transform_3, window_bounds = array<i64: 1, 32>}, {pipeline_mode = #tpu.pipeline_mode<synchronous>, transform_indices = @transform_4, window_bounds = array<i64: 1, 32>}, {pipeline_mode = #tpu.pipeline_mode<synchronous>, transform_indices = @transform_5, window_bounds = array<i64: 1, 32>}, {pipeline_mode = #tpu.pipeline_mode<synchronous>, transform_indices = @transform_6, window_bounds = array<i64: 32, 128>}, {pipeline_mode = #tpu.pipeline_mode<synchronous>, transform_indices = @transform_7, window_bounds = array<i64: 1, 128>}, {transform_indices = @transform_8, window_bounds = array<i64: 16, 128>}]} {
    %c0 = arith.constant 0 : index
    %c0_0 = arith.constant 0 : index
    %0 = vector.load %arg1[%c0, %c0_0] : memref<16x32xf32, #tpu.memory_space<vmem>>, vector<16x32xf32>
    %c0_1 = arith.constant 0 : index
    %c0_2 = arith.constant 0 : index
    %1 = vector.load %arg3[%c0_1, %c0_2] : memref<1x32xf32, #tpu.memory_space<vmem>>, vector<1x32xf32>
    %c0_3 = arith.constant 0 : index
    %c0_4 = arith.constant 0 : index
    %2 = vector.load %arg4[%c0_3, %c0_4] : memref<1x32xf32, #tpu.memory_space<vmem>>, vector<1x32xf32>
    %cst = arith.constant dense<0.000000e+00> : vector<16xf32>
    %3 = vector.multi_reduction <add>, %0, %cst [1] : vector<16x32xf32> to vector<16xf32>
    %4 = vector.shape_cast %3 : vector<16xf32> to vector<16x1xf32>
    %cst_5 = arith.constant 3.200000e+01 : f32
    %5 = vector.broadcast %cst_5 : f32 to vector<16x1xf32>
    %6 = arith.divf %4, %5 : vector<16x1xf32>
    %7 = vector.broadcast %6 : vector<16x1xf32> to vector<16x32xf32>
    %8 = arith.subf %0, %7 : vector<16x32xf32>
    %9 = arith.mulf %8, %8 : vector<16x32xf32>
    %cst_6 = arith.constant dense<0.000000e+00> : vector<16xf32>
    %10 = vector.multi_reduction <add>, %9, %cst_6 [1] : vector<16x32xf32> to vector<16xf32>
    %11 = vector.shape_cast %10 : vector<16xf32> to vector<16x1xf32>
    %cst_7 = arith.constant 3.200000e+01 : f32
    %12 = vector.broadcast %cst_7 : f32 to vector<16x1xf32>
    %13 = arith.divf %11, %12 : vector<16x1xf32>
    %14 = vector.broadcast %6 : vector<16x1xf32> to vector<16x32xf32>
    %15 = arith.subf %0, %14 : vector<16x32xf32>
    %cst_8 = arith.constant 9.99999974E-6 : f32
    %16 = vector.broadcast %cst_8 : f32 to vector<16x1xf32>
    %17 = arith.addf %13, %16 : vector<16x1xf32>
    %18 = math.rsqrt %17 : vector<16x1xf32>
    %19 = vector.broadcast %18 : vector<16x1xf32> to vector<16x32xf32>
    %20 = arith.mulf %15, %19 : vector<16x32xf32>
    %21 = vector.broadcast %1 : vector<1x32xf32> to vector<16x32xf32>
    %22 = arith.mulf %20, %21 : vector<16x32xf32>
    %23 = vector.broadcast %2 : vector<1x32xf32> to vector<16x32xf32>
    %24 = arith.addf %22, %23 : vector<16x32xf32>
    %c0_9 = arith.constant 0 : index
    %c0_10 = arith.constant 0 : index
    %25 = vector.load %arg2[%c0_9, %c0_10] : memref<16x32xf32, #tpu.memory_space<vmem>>, vector<16x32xf32>
    %26 = arith.addf %24, %25 : vector<16x32xf32>
    %c0_11 = arith.constant 0 : index
    %c0_12 = arith.constant 0 : index
    %27 = vector.load %arg5[%c0_11, %c0_12] : memref<1x32xf32, #tpu.memory_space<vmem>>, vector<1x32xf32>
    %c0_13 = arith.constant 0 : index
    %c0_14 = arith.constant 0 : index
    %28 = vector.load %arg6[%c0_13, %c0_14] : memref<1x32xf32, #tpu.memory_space<vmem>>, vector<1x32xf32>
    %cst_15 = arith.constant dense<0.000000e+00> : vector<16xf32>
    %29 = vector.multi_reduction <add>, %26, %cst_15 [1] : vector<16x32xf32> to vector<16xf32>
    %30 = vector.shape_cast %29 : vector<16xf32> to vector<16x1xf32>
    %cst_16 = arith.constant 3.200000e+01 : f32
    %31 = vector.broadcast %cst_16 : f32 to vector<16x1xf32>
    %32 = arith.divf %30, %31 : vector<16x1xf32>
    %33 = vector.broadcast %32 : vector<16x1xf32> to vector<16x32xf32>
    %34 = arith.subf %26, %33 : vector<16x32xf32>
    %35 = arith.mulf %34, %34 : vector<16x32xf32>
    %cst_17 = arith.constant dense<0.000000e+00> : vector<16xf32>
    %36 = vector.multi_reduction <add>, %35, %cst_17 [1] : vector<16x32xf32> to vector<16xf32>
    %37 = vector.shape_cast %36 : vector<16xf32> to vector<16x1xf32>
    %cst_18 = arith.constant 3.200000e+01 : f32
    %38 = vector.broadcast %cst_18 : f32 to vector<16x1xf32>
    %39 = arith.divf %37, %38 : vector<16x1xf32>
    %40 = vector.broadcast %32 : vector<16x1xf32> to vector<16x32xf32>
    %41 = arith.subf %26, %40 : vector<16x32xf32>
    %cst_19 = arith.constant 9.99999974E-6 : f32
    %42 = vector.broadcast %cst_19 : f32 to vector<16x1xf32>
    %43 = arith.addf %39, %42 : vector<16x1xf32>
    %44 = math.rsqrt %43 : vector<16x1xf32>
    %45 = vector.broadcast %44 : vector<16x1xf32> to vector<16x32xf32>
    %46 = arith.mulf %41, %45 : vector<16x32xf32>
    %47 = vector.broadcast %27 : vector<1x32xf32> to vector<16x32xf32>
    %48 = arith.mulf %46, %47 : vector<16x32xf32>
    %49 = vector.broadcast %28 : vector<1x32xf32> to vector<16x32xf32>
    %50 = arith.addf %48, %49 : vector<16x32xf32>
    %51 = arith.truncf %50 : vector<16x32xf32> to vector<16x32xbf16>
    %c0_20 = arith.constant 0 : index
    %c0_21 = arith.constant 0 : index
    %52 = vector.load %arg7[%c0_20, %c0_21] : memref<32x128xbf16, #tpu.memory_space<vmem>>, vector<32x128xbf16>
    %cst_22 = arith.constant dense<0.000000e+00> : vector<16x128xf32>
    %53 = tpu.matmul %51, %52, %cst_22 {dimension_numbers = #tpu.dot_dimension_numbers<[1], [0], [0], [1], [0, 0, 1, 1], [], []>} : vector<16x32xbf16>, vector<32x128xbf16>, vector<16x128xf32> -> vector<16x128xf32>
    %c0_23 = arith.constant 0 : index
    %c0_24 = arith.constant 0 : index
    %54 = vector.load %arg8[%c0_23, %c0_24] : memref<1x128xf32, #tpu.memory_space<vmem>>, vector<1x128xf32>
    %55 = vector.broadcast %54 : vector<1x128xf32> to vector<16x128xf32>
    %56 = arith.addf %53, %55 : vector<16x128xf32>
    %c0_25 = arith.constant 0 : index
    %c0_26 = arith.constant 0 : index
    %57 = vector.load %arg9[%c0_25, %c0_26] : memref<16x128xf32, #tpu.memory_space<vmem>>, vector<16x128xf32>
    tpu.vector_store %arg9[%c0_25, %c0_26], %56 {strides = array<i32>} : memref<16x128xf32, #tpu.memory_space<vmem>>, vector<16x128xf32>,
    return
  }
  func.func @transform_0(%arg0: i32) -> (i32, i32) {
    %c0_i32 = arith.constant 0 : i32
    %c0_i32_0 = arith.constant 0 : i32
    return %arg0, %c0_i32 : i32, i32
  }
  func.func @transform_1(%arg0: i32) -> (i32, i32) {
    %c0_i32 = arith.constant 0 : i32
    %c0_i32_0 = arith.constant 0 : i32
    return %arg0, %c0_i32 : i32, i32
  }
  func.func @transform_2(%arg0: i32) -> (i32, i32) {
    %c0_i32 = arith.constant 0 : i32
    %c0_i32_0 = arith.constant 0 : i32
    %c0_i32_1 = arith.constant 0 : i32
    return %c0_i32, %c0_i32_0 : i32, i32
  }
  func.func @transform_3(%arg0: i32) -> (i32, i32) {
    %c0_i32 = arith.constant 0 : i32
    %c0_i32_0 = arith.constant 0 : i32
    %c0_i32_1 = arith.constant 0 : i32
    return %c0_i32, %c0_i32_0 : i32, i32
  }
  func.func @transform_4(%arg0: i32) -> (i32, i32) {
    %c0_i32 = arith.constant 0 : i32
    %c0_i32_0 = arith.constant 0 : i32
    %c0_i32_1 = arith.constant 0 : i32
    return %c0_i32, %c0_i32_0 : i32, i32
  }
  func.func @transform_5(%arg0: i32) -> (i32, i32) {
    %c0_i32 = arith.constant 0 : i32
    %c0_i32_0 = arith.constant 0 : i32
    %c0_i32_1 = arith.constant 0 : i32
    return %c0_i32, %c0_i32_0 : i32, i32
  }
  func.func @transform_6(%arg0: i32) -> (i32, i32) {
    %c0_i32 = arith.constant 0 : i32
    %c0_i32_0 = arith.constant 0 : i32
    %c0_i32_1 = arith.constant 0 : i32
    return %c0_i32, %c0_i32_0 : i32, i32
  }
  func.func @transform_7(%arg0: i32) -> (i32, i32) {
    %c0_i32 = arith.constant 0 : i32
    %c0_i32_0 = arith.constant 0 : i32
    %c0_i32_1 = arith.constant 0 : i32
    return %c0_i32, %c0_i32_0 : i32, i32
  }
  func.func @transform_8(%arg0: i32) -> (i32, i32) {
    %c0_i32 = arith.constant 0 : i32
    %c0_i32_0 = arith.constant 0 : i32
    return %arg0, %c0_i32 : i32, i32
  }
}

module attributes {stable_mosaic.version = 11 : i64} {
  func.func @_cross_attn_block_kernel(%arg0: i32, %arg1: memref<1x8x32xf32, #tpu.memory_space<vmem>>, %arg2: memref<1x8x32xf32, #tpu.memory_space<vmem>>, %arg3: memref<32x32xbf16, #tpu.memory_space<vmem>>, %arg4: memref<1x32xf32, #tpu.memory_space<vmem>>, %arg5: memref<32x64xbf16, #tpu.memory_space<vmem>>, %arg6: memref<1x64xf32, #tpu.memory_space<vmem>>, %arg7: memref<32x32xbf16, #tpu.memory_space<vmem>>, %arg8: memref<1x32xf32, #tpu.memory_space<vmem>>, %arg9: memref<1x32xf32, #tpu.memory_space<vmem>>, %arg10: memref<1x32xf32, #tpu.memory_space<vmem>>, %arg11: memref<1x8x32xf32, #tpu.memory_space<vmem>>) attributes {dimension_semantics = [#tpu.dimension_semantics<parallel>], iteration_bounds = array<i64: 2>, scalar_prefetch = 0 : i64, scratch_operands = 0 : i64, tpu.core_type = #tpu.core_type<tc>, window_params = [{transform_indices = @transform_0, window_bounds = array<i64: 1, 8, 32>}, {transform_indices = @transform_1, window_bounds = array<i64: 1, 8, 32>}, {pipeline_mode = #tpu.pipeline_mode<synchronous>, transform_indices = @transform_2, window_bounds = array<i64: 32, 32>}, {pipeline_mode = #tpu.pipeline_mode<synchronous>, transform_indices = @transform_3, window_bounds = array<i64: 1, 32>}, {pipeline_mode = #tpu.pipeline_mode<synchronous>, transform_indices = @transform_4, window_bounds = array<i64: 32, 64>}, {pipeline_mode = #tpu.pipeline_mode<synchronous>, transform_indices = @transform_5, window_bounds = array<i64: 1, 64>}, {pipeline_mode = #tpu.pipeline_mode<synchronous>, transform_indices = @transform_6, window_bounds = array<i64: 32, 32>}, {pipeline_mode = #tpu.pipeline_mode<synchronous>, transform_indices = @transform_7, window_bounds = array<i64: 1, 32>}, {pipeline_mode = #tpu.pipeline_mode<synchronous>, transform_indices = @transform_8, window_bounds = array<i64: 1, 32>}, {pipeline_mode = #tpu.pipeline_mode<synchronous>, transform_indices = @transform_9, window_bounds = array<i64: 1, 32>}, {transform_indices = @transform_10, window_bounds = array<i64: 1, 8, 32>}]} {
    %c0 = arith.constant 0 : index
    %c0_0 = arith.constant 0 : index
    %c0_1 = arith.constant 0 : index
    %0 = vector.load %arg1[%c0, %c0_0, %c0_1] : memref<1x8x32xf32, #tpu.memory_space<vmem>>, vector<1x8x32xf32>
    %1 = vector.shape_cast %0 : vector<1x8x32xf32> to vector<8x32xf32>
    %c0_2 = arith.constant 0 : index
    %c0_3 = arith.constant 0 : index
    %c0_4 = arith.constant 0 : index
    %2 = vector.load %arg2[%c0_2, %c0_3, %c0_4] : memref<1x8x32xf32, #tpu.memory_space<vmem>>, vector<1x8x32xf32>
    %3 = vector.shape_cast %2 : vector<1x8x32xf32> to vector<8x32xf32>
    %4 = arith.truncf %1 : vector<8x32xf32> to vector<8x32xbf16>
    %c0_5 = arith.constant 0 : index
    %c0_6 = arith.constant 0 : index
    %5 = vector.load %arg3[%c0_5, %c0_6] : memref<32x32xbf16, #tpu.memory_space<vmem>>, vector<32x32xbf16>
    %cst = arith.constant dense<0.000000e+00> : vector<8x32xf32>
    %6 = tpu.matmul %4, %5, %cst {dimension_numbers = #tpu.dot_dimension_numbers<[1], [0], [0], [1], [0, 0, 1, 1], [], []>} : vector<8x32xbf16>, vector<32x32xbf16>, vector<8x32xf32> -> vector<8x32xf32>
    %c0_7 = arith.constant 0 : index
    %c0_8 = arith.constant 0 : index
    %7 = vector.load %arg4[%c0_7, %c0_8] : memref<1x32xf32, #tpu.memory_space<vmem>>, vector<1x32xf32>
    %8 = vector.broadcast %7 : vector<1x32xf32> to vector<8x32xf32>
    %9 = arith.addf %6, %8 : vector<8x32xf32>
    %10 = arith.truncf %3 : vector<8x32xf32> to vector<8x32xbf16>
    %c0_9 = arith.constant 0 : index
    %c0_10 = arith.constant 0 : index
    %11 = vector.load %arg5[%c0_9, %c0_10] : memref<32x64xbf16, #tpu.memory_space<vmem>>, vector<32x64xbf16>
    %cst_11 = arith.constant dense<0.000000e+00> : vector<8x64xf32>
    %12 = tpu.matmul %10, %11, %cst_11 {dimension_numbers = #tpu.dot_dimension_numbers<[1], [0], [0], [1], [0, 0, 1, 1], [], []>} : vector<8x32xbf16>, vector<32x64xbf16>, vector<8x64xf32> -> vector<8x64xf32>
    %c0_12 = arith.constant 0 : index
    %c0_13 = arith.constant 0 : index
    %13 = vector.load %arg6[%c0_12, %c0_13] : memref<1x64xf32, #tpu.memory_space<vmem>>, vector<1x64xf32>
    %14 = vector.broadcast %13 : vector<1x64xf32> to vector<8x64xf32>
    %15 = arith.addf %12, %14 : vector<8x64xf32>
    %cst_14 = arith.constant 0.000000e+00 : f32
    %16 = vector.broadcast %cst_14 : f32 to vector<8x32xf32>
    %17 = vector.extract_strided_slice %9 {offsets = [0, 0], sizes = [8, 8], strides = [1, 1]} : vector<8x32xf32> to vector<8x8xf32>
    %18 = arith.truncf %17 : vector<8x8xf32> to vector<8x8xbf16>
    %19 = vector.extract_strided_slice %15 {offsets = [0, 0], sizes = [8, 8], strides = [1, 1]} : vector<8x64xf32> to vector<8x8xf32>
    %20 = arith.truncf %19 : vector<8x8xf32> to vector<8x8xbf16>
    %21 = vector.extract_strided_slice %15 {offsets = [0, 32], sizes = [8, 8], strides = [1, 1]} : vector<8x64xf32> to vector<8x8xf32>
    %22 = arith.truncf %21 : vector<8x8xf32> to vector<8x8xbf16>
    %cst_15 = arith.constant dense<0.000000e+00> : vector<8x8xf32>
    %23 = tpu.matmul %18, %20, %cst_15 {dimension_numbers = #tpu.dot_dimension_numbers<[1], [1], [0], [0], [0, 0, 1, 0], [], []>} : vector<8x8xbf16>, vector<8x8xbf16>, vector<8x8xf32> -> vector<8x8xf32>
    %cst_16 = arith.constant dense<0xFF800000> : vector<8xf32>
    %24 = vector.multi_reduction <maximumf>, %23, %cst_16 [1] : vector<8x8xf32> to vector<8xf32>
    %25 = vector.shape_cast %24 : vector<8xf32> to vector<8x1xf32>
    %26 = vector.broadcast %25 : vector<8x1xf32> to vector<8x8xf32>
    %27 = arith.subf %23, %26 : vector<8x8xf32>
    %28 = math.exp %27 : vector<8x8xf32>
    %cst_17 = arith.constant dense<0.000000e+00> : vector<8xf32>
    %29 = vector.multi_reduction <add>, %28, %cst_17 [1] : vector<8x8xf32> to vector<8xf32>
    %30 = vector.shape_cast %29 : vector<8xf32> to vector<8x1xf32>
    %31 = tpu.reciprocal %30 {approx = true} : vector<8x1xf32> -> vector<8x1xf32>
    %32 = arith.truncf %28 : vector<8x8xf32> to vector<8x8xbf16>
    %cst_18 = arith.constant dense<0.000000e+00> : vector<8x8xf32>
    %33 = tpu.matmul %32, %22, %cst_18 {dimension_numbers = #tpu.dot_dimension_numbers<[1], [0], [0], [1], [0, 0, 1, 1], [], []>} : vector<8x8xbf16>, vector<8x8xbf16>, vector<8x8xf32> -> vector<8x8xf32>
    %34 = vector.broadcast %31 : vector<8x1xf32> to vector<8x8xf32>
    %35 = arith.mulf %33, %34 : vector<8x8xf32>
    %36 = arith.truncf %35 : vector<8x8xf32> to vector<8x8xbf16>
    %c0_19 = arith.constant 0 : index
    %c0_20 = arith.constant 0 : index
    %37 = vector.load %arg7[%c0_19, %c0_20] : memref<32x32xbf16, #tpu.memory_space<vmem>>, vector<8x32xbf16>
    %cst_21 = arith.constant dense<0.000000e+00> : vector<8x32xf32>
    %38 = tpu.matmul %36, %37, %cst_21 {dimension_numbers = #tpu.dot_dimension_numbers<[1], [0], [0], [1], [0, 0, 1, 1], [], []>} : vector<8x8xbf16>, vector<8x32xbf16>, vector<8x32xf32> -> vector<8x32xf32>
    %39 = arith.addf %16, %38 : vector<8x32xf32>
    %40 = vector.extract_strided_slice %9 {offsets = [0, 8], sizes = [8, 8], strides = [1, 1]} : vector<8x32xf32> to vector<8x8xf32>
    %41 = arith.truncf %40 : vector<8x8xf32> to vector<8x8xbf16>
    %42 = vector.extract_strided_slice %15 {offsets = [0, 8], sizes = [8, 8], strides = [1, 1]} : vector<8x64xf32> to vector<8x8xf32>
    %43 = arith.truncf %42 : vector<8x8xf32> to vector<8x8xbf16>
    %44 = vector.extract_strided_slice %15 {offsets = [0, 40], sizes = [8, 8], strides = [1, 1]} : vector<8x64xf32> to vector<8x8xf32>
    %45 = arith.truncf %44 : vector<8x8xf32> to vector<8x8xbf16>
    %cst_22 = arith.constant dense<0.000000e+00> : vector<8x8xf32>
    %46 = tpu.matmul %41, %43, %cst_22 {dimension_numbers = #tpu.dot_dimension_numbers<[1], [1], [0], [0], [0, 0, 1, 0], [], []>} : vector<8x8xbf16>, vector<8x8xbf16>, vector<8x8xf32> -> vector<8x8xf32>
    %cst_23 = arith.constant dense<0xFF800000> : vector<8xf32>
    %47 = vector.multi_reduction <maximumf>, %46, %cst_23 [1] : vector<8x8xf32> to vector<8xf32>
    %48 = vector.shape_cast %47 : vector<8xf32> to vector<8x1xf32>
    %49 = vector.broadcast %48 : vector<8x1xf32> to vector<8x8xf32>
    %50 = arith.subf %46, %49 : vector<8x8xf32>
    %51 = math.exp %50 : vector<8x8xf32>
    %cst_24 = arith.constant dense<0.000000e+00> : vector<8xf32>
    %52 = vector.multi_reduction <add>, %51, %cst_24 [1] : vector<8x8xf32> to vector<8xf32>
    %53 = vector.shape_cast %52 : vector<8xf32> to vector<8x1xf32>
    %54 = tpu.reciprocal %53 {approx = true} : vector<8x1xf32> -> vector<8x1xf32>
    %55 = arith.truncf %51 : vector<8x8xf32> to vector<8x8xbf16>
    %cst_25 = arith.constant dense<0.000000e+00> : vector<8x8xf32>
    %56 = tpu.matmul %55, %45, %cst_25 {dimension_numbers = #tpu.dot_dimension_numbers<[1], [0], [0], [1], [0, 0, 1, 1], [], []>} : vector<8x8xbf16>, vector<8x8xbf16>, vector<8x8xf32> -> vector<8x8xf32>
    %57 = vector.broadcast %54 : vector<8x1xf32> to vector<8x8xf32>
    %58 = arith.mulf %56, %57 : vector<8x8xf32>
    %59 = arith.truncf %58 : vector<8x8xf32> to vector<8x8xbf16>
    %c8 = arith.constant 8 : index
    %c0_26 = arith.constant 0 : index
    %60 = vector.load %arg7[%c8, %c0_26] : memref<32x32xbf16, #tpu.memory_space<vmem>>, vector<8x32xbf16>
    %cst_27 = arith.constant dense<0.000000e+00> : vector<8x32xf32>
    %61 = tpu.matmul %59, %60, %cst_27 {dimension_numbers = #tpu.dot_dimension_numbers<[1], [0], [0], [1], [0, 0, 1, 1], [], []>} : vector<8x8xbf16>, vector<8x32xbf16>, vector<8x32xf32> -> vector<8x32xf32>
    %62 = arith.addf %39, %61 : vector<8x32xf32>
    %63 = vector.extract_strided_slice %9 {offsets = [0, 16], sizes = [8, 8], strides = [1, 1]} : vector<8x32xf32> to vector<8x8xf32>
    %64 = arith.truncf %63 : vector<8x8xf32> to vector<8x8xbf16>
    %65 = vector.extract_strided_slice %15 {offsets = [0, 16], sizes = [8, 8], strides = [1, 1]} : vector<8x64xf32> to vector<8x8xf32>
    %66 = arith.truncf %65 : vector<8x8xf32> to vector<8x8xbf16>
    %67 = vector.extract_strided_slice %15 {offsets = [0, 48], sizes = [8, 8], strides = [1, 1]} : vector<8x64xf32> to vector<8x8xf32>
    %68 = arith.truncf %67 : vector<8x8xf32> to vector<8x8xbf16>
    %cst_28 = arith.constant dense<0.000000e+00> : vector<8x8xf32>
    %69 = tpu.matmul %64, %66, %cst_28 {dimension_numbers = #tpu.dot_dimension_numbers<[1], [1], [0], [0], [0, 0, 1, 0], [], []>} : vector<8x8xbf16>, vector<8x8xbf16>, vector<8x8xf32> -> vector<8x8xf32>
    %cst_29 = arith.constant dense<0xFF800000> : vector<8xf32>
    %70 = vector.multi_reduction <maximumf>, %69, %cst_29 [1] : vector<8x8xf32> to vector<8xf32>
    %71 = vector.shape_cast %70 : vector<8xf32> to vector<8x1xf32>
    %72 = vector.broadcast %71 : vector<8x1xf32> to vector<8x8xf32>
    %73 = arith.subf %69, %72 : vector<8x8xf32>
    %74 = math.exp %73 : vector<8x8xf32>
    %cst_30 = arith.constant dense<0.000000e+00> : vector<8xf32>
    %75 = vector.multi_reduction <add>, %74, %cst_30 [1] : vector<8x8xf32> to vector<8xf32>
    %76 = vector.shape_cast %75 : vector<8xf32> to vector<8x1xf32>
    %77 = tpu.reciprocal %76 {approx = true} : vector<8x1xf32> -> vector<8x1xf32>
    %78 = arith.truncf %74 : vector<8x8xf32> to vector<8x8xbf16>
    %cst_31 = arith.constant dense<0.000000e+00> : vector<8x8xf32>
    %79 = tpu.matmul %78, %68, %cst_31 {dimension_numbers = #tpu.dot_dimension_numbers<[1], [0], [0], [1], [0, 0, 1, 1], [], []>} : vector<8x8xbf16>, vector<8x8xbf16>, vector<8x8xf32> -> vector<8x8xf32>
    %80 = vector.broadcast %77 : vector<8x1xf32> to vector<8x8xf32>
    %81 = arith.mulf %79, %80 : vector<8x8xf32>
    %82 = arith.truncf %81 : vector<8x8xf32> to vector<8x8xbf16>
    %c16 = arith.constant 16 : index
    %c0_32 = arith.constant 0 : index
    %83 = vector.load %arg7[%c16, %c0_32] : memref<32x32xbf16, #tpu.memory_space<vmem>>, vector<8x32xbf16>
    %cst_33 = arith.constant dense<0.000000e+00> : vector<8x32xf32>
    %84 = tpu.matmul %82, %83, %cst_33 {dimension_numbers = #tpu.dot_dimension_numbers<[1], [0], [0], [1], [0, 0, 1, 1], [], []>} : vector<8x8xbf16>, vector<8x32xbf16>, vector<8x32xf32> -> vector<8x32xf32>
    %85 = arith.addf %62, %84 : vector<8x32xf32>
    %86 = vector.extract_strided_slice %9 {offsets = [0, 24], sizes = [8, 8], strides = [1, 1]} : vector<8x32xf32> to vector<8x8xf32>
    %87 = arith.truncf %86 : vector<8x8xf32> to vector<8x8xbf16>
    %88 = vector.extract_strided_slice %15 {offsets = [0, 24], sizes = [8, 8], strides = [1, 1]} : vector<8x64xf32> to vector<8x8xf32>
    %89 = arith.truncf %88 : vector<8x8xf32> to vector<8x8xbf16>
    %90 = vector.extract_strided_slice %15 {offsets = [0, 56], sizes = [8, 8], strides = [1, 1]} : vector<8x64xf32> to vector<8x8xf32>
    %91 = arith.truncf %90 : vector<8x8xf32> to vector<8x8xbf16>
    %cst_34 = arith.constant dense<0.000000e+00> : vector<8x8xf32>
    %92 = tpu.matmul %87, %89, %cst_34 {dimension_numbers = #tpu.dot_dimension_numbers<[1], [1], [0], [0], [0, 0, 1, 0], [], []>} : vector<8x8xbf16>, vector<8x8xbf16>, vector<8x8xf32> -> vector<8x8xf32>
    %cst_35 = arith.constant dense<0xFF800000> : vector<8xf32>
    %93 = vector.multi_reduction <maximumf>, %92, %cst_35 [1] : vector<8x8xf32> to vector<8xf32>
    %94 = vector.shape_cast %93 : vector<8xf32> to vector<8x1xf32>
    %95 = vector.broadcast %94 : vector<8x1xf32> to vector<8x8xf32>
    %96 = arith.subf %92, %95 : vector<8x8xf32>
    %97 = math.exp %96 : vector<8x8xf32>
    %cst_36 = arith.constant dense<0.000000e+00> : vector<8xf32>
    %98 = vector.multi_reduction <add>, %97, %cst_36 [1] : vector<8x8xf32> to vector<8xf32>
    %99 = vector.shape_cast %98 : vector<8xf32> to vector<8x1xf32>
    %100 = tpu.reciprocal %99 {approx = true} : vector<8x1xf32> -> vector<8x1xf32>
    %101 = arith.truncf %97 : vector<8x8xf32> to vector<8x8xbf16>
    %cst_37 = arith.constant dense<0.000000e+00> : vector<8x8xf32>
    %102 = tpu.matmul %101, %91, %cst_37 {dimension_numbers = #tpu.dot_dimension_numbers<[1], [0], [0], [1], [0, 0, 1, 1], [], []>} : vector<8x8xbf16>, vector<8x8xbf16>, vector<8x8xf32> -> vector<8x8xf32>
    %103 = vector.broadcast %100 : vector<8x1xf32> to vector<8x8xf32>
    %104 = arith.mulf %102, %103 : vector<8x8xf32>
    %105 = arith.truncf %104 : vector<8x8xf32> to vector<8x8xbf16>
    %c24 = arith.constant 24 : index
    %c0_38 = arith.constant 0 : index
    %106 = vector.load %arg7[%c24, %c0_38] : memref<32x32xbf16, #tpu.memory_space<vmem>>, vector<8x32xbf16>
    %cst_39 = arith.constant dense<0.000000e+00> : vector<8x32xf32>
    %107 = tpu.matmul %105, %106, %cst_39 {dimension_numbers = #tpu.dot_dimension_numbers<[1], [0], [0], [1], [0, 0, 1, 1], [], []>} : vector<8x8xbf16>, vector<8x32xbf16>, vector<8x32xf32> -> vector<8x32xf32>
    %108 = arith.addf %85, %107 : vector<8x32xf32>
    %109 = arith.addf %1, %108 : vector<8x32xf32>
    %c0_40 = arith.constant 0 : index
    %c0_41 = arith.constant 0 : index
    %110 = vector.load %arg8[%c0_40, %c0_41] : memref<1x32xf32, #tpu.memory_space<vmem>>, vector<1x32xf32>
    %111 = vector.broadcast %110 : vector<1x32xf32> to vector<8x32xf32>
    %112 = arith.addf %109, %111 : vector<8x32xf32>
    %c0_42 = arith.constant 0 : index
    %c0_43 = arith.constant 0 : index
    %113 = vector.load %arg9[%c0_42, %c0_43] : memref<1x32xf32, #tpu.memory_space<vmem>>, vector<1x32xf32>
    %c0_44 = arith.constant 0 : index
    %c0_45 = arith.constant 0 : index
    %114 = vector.load %arg10[%c0_44, %c0_45] : memref<1x32xf32, #tpu.memory_space<vmem>>, vector<1x32xf32>
    %cst_46 = arith.constant dense<0.000000e+00> : vector<8xf32>
    %115 = vector.multi_reduction <add>, %112, %cst_46 [1] : vector<8x32xf32> to vector<8xf32>
    %116 = vector.shape_cast %115 : vector<8xf32> to vector<8x1xf32>
    %cst_47 = arith.constant 3.200000e+01 : f32
    %117 = vector.broadcast %cst_47 : f32 to vector<8x1xf32>
    %118 = arith.divf %116, %117 : vector<8x1xf32>
    %119 = vector.broadcast %118 : vector<8x1xf32> to vector<8x32xf32>
    %120 = arith.subf %112, %119 : vector<8x32xf32>
    %121 = arith.mulf %120, %120 : vector<8x32xf32>
    %cst_48 = arith.constant dense<0.000000e+00> : vector<8xf32>
    %122 = vector.multi_reduction <add>, %121, %cst_48 [1] : vector<8x32xf32> to vector<8xf32>
    %123 = vector.shape_cast %122 : vector<8xf32> to vector<8x1xf32>
    %cst_49 = arith.constant 3.200000e+01 : f32
    %124 = vector.broadcast %cst_49 : f32 to vector<8x1xf32>
    %125 = arith.divf %123, %124 : vector<8x1xf32>
    %126 = vector.broadcast %118 : vector<8x1xf32> to vector<8x32xf32>
    %127 = arith.subf %112, %126 : vector<8x32xf32>
    %cst_50 = arith.constant 9.99999974E-6 : f32
    %128 = vector.broadcast %cst_50 : f32 to vector<8x1xf32>
    %129 = arith.addf %125, %128 : vector<8x1xf32>
    %130 = math.rsqrt %129 : vector<8x1xf32>
    %131 = vector.broadcast %130 : vector<8x1xf32> to vector<8x32xf32>
    %132 = arith.mulf %127, %131 : vector<8x32xf32>
    %133 = vector.broadcast %113 : vector<1x32xf32> to vector<8x32xf32>
    %134 = arith.mulf %132, %133 : vector<8x32xf32>
    %135 = vector.broadcast %114 : vector<1x32xf32> to vector<8x32xf32>
    %136 = arith.addf %134, %135 : vector<8x32xf32>
    %c0_51 = arith.constant 0 : index
    %c0_52 = arith.constant 0 : index
    %c0_53 = arith.constant 0 : index
    %137 = vector.load %arg11[%c0_51, %c0_52, %c0_53] : memref<1x8x32xf32, #tpu.memory_space<vmem>>, vector<1x8x32xf32>
    %138 = vector.shape_cast %137 : vector<1x8x32xf32> to vector<8x32xf32>
    %139 = vector.shape_cast %136 : vector<8x32xf32> to vector<1x8x32xf32>
    tpu.vector_store %arg11[%c0_51, %c0_52, %c0_53], %139 {strides = array<i32>} : memref<1x8x32xf32, #tpu.memory_space<vmem>>, vector<1x8x32xf32>,
    return
  }
  func.func @transform_0(%arg0: i32) -> (i32, i32, i32) {
    %c0_i32 = arith.constant 0 : i32
    %c0_i32_0 = arith.constant 0 : i32
    %c0_i32_1 = arith.constant 0 : i32
    return %arg0, %c0_i32, %c0_i32_0 : i32, i32, i32
  }
  func.func @transform_1(%arg0: i32) -> (i32, i32, i32) {
    %c0_i32 = arith.constant 0 : i32
    %c0_i32_0 = arith.constant 0 : i32
    %c0_i32_1 = arith.constant 0 : i32
    return %arg0, %c0_i32, %c0_i32_0 : i32, i32, i32
  }
  func.func @transform_2(%arg0: i32) -> (i32, i32) {
    %c0_i32 = arith.constant 0 : i32
    %c0_i32_0 = arith.constant 0 : i32
    %c0_i32_1 = arith.constant 0 : i32
    return %c0_i32, %c0_i32_0 : i32, i32
  }
  func.func @transform_3(%arg0: i32) -> (i32, i32) {
    %c0_i32 = arith.constant 0 : i32
    %c0_i32_0 = arith.constant 0 : i32
    %c0_i32_1 = arith.constant 0 : i32
    return %c0_i32, %c0_i32_0 : i32, i32
  }
  func.func @transform_4(%arg0: i32) -> (i32, i32) {
    %c0_i32 = arith.constant 0 : i32
    %c0_i32_0 = arith.constant 0 : i32
    %c0_i32_1 = arith.constant 0 : i32
    return %c0_i32, %c0_i32_0 : i32, i32
  }
  func.func @transform_5(%arg0: i32) -> (i32, i32) {
    %c0_i32 = arith.constant 0 : i32
    %c0_i32_0 = arith.constant 0 : i32
    %c0_i32_1 = arith.constant 0 : i32
    return %c0_i32, %c0_i32_0 : i32, i32
  }
  func.func @transform_6(%arg0: i32) -> (i32, i32) {
    %c0_i32 = arith.constant 0 : i32
    %c0_i32_0 = arith.constant 0 : i32
    %c0_i32_1 = arith.constant 0 : i32
    return %c0_i32, %c0_i32_0 : i32, i32
  }
  func.func @transform_7(%arg0: i32) -> (i32, i32) {
    %c0_i32 = arith.constant 0 : i32
    %c0_i32_0 = arith.constant 0 : i32
    %c0_i32_1 = arith.constant 0 : i32
    return %c0_i32, %c0_i32_0 : i32, i32
  }
  func.func @transform_8(%arg0: i32) -> (i32, i32) {
    %c0_i32 = arith.constant 0 : i32
    %c0_i32_0 = arith.constant 0 : i32
    %c0_i32_1 = arith.constant 0 : i32
    return %c0_i32, %c0_i32_0 : i32, i32
  }
  func.func @transform_9(%arg0: i32) -> (i32, i32) {
    %c0_i32 = arith.constant 0 : i32
    %c0_i32_0 = arith.constant 0 : i32
    %c0_i32_1 = arith.constant 0 : i32
    return %c0_i32, %c0_i32_0 : i32, i32
  }
  func.func @transform_10(%arg0: i32) -> (i32, i32, i32) {
    %c0_i32 = arith.constant 0 : i32
    %c0_i32_0 = arith.constant 0 : i32
    %c0_i32_1 = arith.constant 0 : i32
    return %arg0, %c0_i32, %c0_i32_0 : i32, i32, i32
  }
}

</mosaic_0001>

<llo_original>
// kernel: vanilla_transformer_forward.20
$region0: #{vanilla_transformer_forward.20}
  #allocation0 [shape = 'u32[]', space=smem, size = 0x4, offset = 0x4, fixed_abs, tag = 'smem constant byte address 0x4 - core index']
  #allocation1 [shape = 'u32[144,128]{1,0:T(1,128)}', space=vmem, size = 0x12000, scoped, tag = 'internal scratch']
  %s0 = inlined_call_operand.vmem [shape: f32[16,32], index: 0, kind: input, shape index: {}]
  %s1 = inlined_call_operand.vmem [shape: f32[1,32], index: 1, kind: input, shape index: {}]
  %s2 = inlined_call_operand.vmem [shape: f32[1,32], index: 2, kind: input, shape index: {}]
  %s3 = inlined_call_operand.vmem [shape: f32[16,32], index: 3, kind: output, shape index: {}]
  %s4 = sld [smem:[#allocation0]]
  $region22: #{vanilla_transformer_forward.20} parent=0
    _
  %s6 = ssub.s32 1, %s4
  %s7 = scalar_select 0, %s6, %s4
  // Predicated region
  $region2: #{vanilla_transformer_forward.20} parent=0 // pred_check
    _
  $region3: #{vanilla_transformer_forward.20} parent=0 // pred_check_branch
    %9 = sbr.rel (0) target = $region5
  $region4: #{vanilla_transformer_forward.20} parent=0 // pred_region
    _
  $region5: #{vanilla_transformer_forward.20} parent=0 // pred_fallthru
    _
  // Predicated region
  $region6: #{vanilla_transformer_forward.20} parent=0 // pred_check
    _
  $region7: #{vanilla_transformer_forward.20} parent=0 // pred_check_branch
    %11 = sbr.rel (0) target = $region9
  $region8: #{vanilla_transformer_forward.20} parent=0 // pred_region
    _
  $region9: #{vanilla_transformer_forward.20} parent=0 // pred_fallthru
    _
  // Predicated region
  $region10: #{vanilla_transformer_forward.20} parent=0 // pred_check
    _
  $region11: #{vanilla_transformer_forward.20} parent=0 // pred_check_branch
    %13 = sbr.rel (0) target = $region13
  $region12: #{vanilla_transformer_forward.20} parent=0 // pred_region
    _
  $region13: #{vanilla_transformer_forward.20} parent=0 // pred_fallthru
    _
  %v14 = vld [vmem:[%s0] sm:$0xff]
  %v15 = vld [vmem:[%s0 + $0x8] sm:$0xff]
  %v16 = vld [vmem:[%s1] sm:$0x1]
  %v17 = vld [vmem:[%s2] sm:$0x1]
  %vm18 = vcmask 261120
  %v19 = vsel %vm18, %v14, 0.0
  %20 = vadd.xlane.f32.xlu0 %v19
  %v21 = vpop.xlane.xlu0 %20
  %v22 = vsel %vm18, %v15, 0.0
  %23 = vadd.xlane.f32.xlu0 %v22
  %v24 = vpop.xlane.xlu0 %23
  %v25 = vrcp.pop 32.0
  %v26 = vmul.f32 %v21, %v25
  %v27 = vmul.f32 %v24, %v25
  %v28 = vsub.f32 %v14, %v26
  %v29 = vsub.f32 %v15, %v27
  %v30 = vmul.f32 %v28, %v28
  %v31 = vmul.f32 %v29, %v29
  %v32 = vsel %vm18, %v30, 0.0
  %33 = vadd.xlane.f32.xlu0 %v32
  %v34 = vpop.xlane.xlu0 %33
  %v35 = vsel %vm18, %v31, 0.0
  %36 = vadd.xlane.f32.xlu0 %v35
  %v37 = vpop.xlane.xlu0 %36
  %v38 = vmul.f32 %v34, %v25
  %v39 = vmul.f32 %v37, %v25
  %v40 = vadd.f32 %v38, 1e-05
  %v41 = vadd.f32 %v39, 1e-05
  %v42 = vrsqrt.pop %v40
  %v43 = vrsqrt.pop %v41
  %v44 = vmul.f32 %v28, %v42
  %v45 = vmul.f32 %v29, %v43
  %v47 = vlaneseq
  %v48 = vshrl.u32 %v47, 7
  %v49 = vsub.s32 0, %v48
  %v50 = vrot.slane %v16, %v49
  %v52 = vmul.f32 %v44, %v50
  %v53 = vmul.f32 %v45, %v50
  %v55 = vlaneseq
  %v56 = vshrl.u32 %v55, 7
  %v57 = vsub.s32 0, %v56
  %v58 = vrot.slane %v17, %v57
  %v60 = vadd.f32 %v52, %v58
  %v61 = vadd.f32 %v53, %v58
  %62 = vst.msk [vmem:[%s3] sm:$0xff] %vm18, %v60
  %63 = vst.msk [vmem:[%s3 + $0x8] sm:$0xff] %vm18, %v61
  // Predicated region
  $region14: #{vanilla_transformer_forward.20} parent=0 // pred_check
    _
  $region15: #{vanilla_transformer_forward.20} parent=0 // pred_check_branch
    %65 = sbr.rel (0) target = $region17
  $region16: #{vanilla_transformer_forward.20} parent=0 // pred_region
    _
  $region17: #{vanilla_transformer_forward.20} parent=0 // pred_fallthru
    _
  // Predicated region
  $region18: #{vanilla_transformer_forward.20} parent=0 // pred_check
    _
  $region19: #{vanilla_transformer_forward.20} parent=0 // pred_check_branch
    %67 = sbr.rel (0) target = $region21
  $region20: #{vanilla_transformer_forward.20} parent=0 // pred_region
    _
  $region21: #{vanilla_transformer_forward.20} parent=0 // pred_fallthru
    _

// kernel: vanilla_transformer_forward.17
$region0: #{vanilla_transformer_forward.17}
  #allocation0 [shape = 'u32[]', space=smem, size = 0x4, offset = 0x4, fixed_abs, tag = 'smem constant byte address 0x4 - core index']
  #allocation1 [shape = 'u32[144,128]{1,0:T(1,128)}', space=vmem, size = 0x12000, scoped, tag = 'internal scratch']
  %s0 = inlined_call_operand.vmem [shape: f32[16,32], index: 0, kind: input, shape index: {}]
  %s1 = inlined_call_operand.vmem [shape: bf16[32,64], index: 1, kind: input, shape index: {}]
  %s2 = inlined_call_operand.vmem [shape: f32[1,64], index: 2, kind: input, shape index: {}]
  %s3 = inlined_call_operand.vmem [shape: bf16[64,32], index: 3, kind: input, shape index: {}]
  %s4 = inlined_call_operand.vmem [shape: f32[1,32], index: 4, kind: input, shape index: {}]
  %s5 = inlined_call_operand.vmem [shape: f32[1,32], index: 5, kind: input, shape index: {}]
  %s6 = inlined_call_operand.vmem [shape: f32[1,32], index: 6, kind: input, shape index: {}]
  %s7 = inlined_call_operand.vmem [shape: f32[16,32], index: 7, kind: output, shape index: {}]
  %s8 = sld [smem:[#allocation0]]
  $region38: #{vanilla_transformer_forward.17} parent=0
    _
  %s10 = ssub.s32 1, %s8
  %s11 = scalar_select 0, %s10, %s8
  // Predicated region
  $region2: #{vanilla_transformer_forward.17} parent=0 // pred_check
    _
  $region3: #{vanilla_transformer_forward.17} parent=0 // pred_check_branch
    %13 = sbr.rel (0) target = $region5
  $region4: #{vanilla_transformer_forward.17} parent=0 // pred_region
    _
  $region5: #{vanilla_transformer_forward.17} parent=0 // pred_fallthru
    _
  // Predicated region
  $region6: #{vanilla_transformer_forward.17} parent=0 // pred_check
    _
  $region7: #{vanilla_transformer_forward.17} parent=0 // pred_check_branch
    %15 = sbr.rel (0) target = $region9
  $region8: #{vanilla_transformer_forward.17} parent=0 // pred_region
    _
  $region9: #{vanilla_transformer_forward.17} parent=0 // pred_fallthru
    _
  // Predicated region
  $region10: #{vanilla_transformer_forward.17} parent=0 // pred_check
    _
  $region11: #{vanilla_transformer_forward.17} parent=0 // pred_check_branch
    %17 = sbr.rel (0) target = $region13
  $region12: #{vanilla_transformer_forward.17} parent=0 // pred_region
    _
  $region13: #{vanilla_transformer_forward.17} parent=0 // pred_fallthru
    _
  // Predicated region
  $region14: #{vanilla_transformer_forward.17} parent=0 // pred_check
    _
  $region15: #{vanilla_transformer_forward.17} parent=0 // pred_check_branch
    %19 = sbr.rel (0) target = $region17
  $region16: #{vanilla_transformer_forward.17} parent=0 // pred_region
    _
  $region17: #{vanilla_transformer_forward.17} parent=0 // pred_fallthru
    _
  // Predicated region
  $region18: #{vanilla_transformer_forward.17} parent=0 // pred_check
    _
  $region19: #{vanilla_transformer_forward.17} parent=0 // pred_check_branch
    %21 = sbr.rel (0) target = $region21
  $region20: #{vanilla_transformer_forward.17} parent=0 // pred_region
    _
  $region21: #{vanilla_transformer_forward.17} parent=0 // pred_fallthru
    _
  // Predicated region
  $region22: #{vanilla_transformer_forward.17} parent=0 // pred_check
    _
  $region23: #{vanilla_transformer_forward.17} parent=0 // pred_check_branch
    %23 = sbr.rel (0) target = $region25
  $region24: #{vanilla_transformer_forward.17} parent=0 // pred_region
    _
  $region25: #{vanilla_transformer_forward.17} parent=0 // pred_fallthru
    _
  // Predicated region
  $region26: #{vanilla_transformer_forward.17} parent=0 // pred_check
    _
  $region27: #{vanilla_transformer_forward.17} parent=0 // pred_check_branch
    %25 = sbr.rel (0) target = $region29
  $region28: #{vanilla_transformer_forward.17} parent=0 // pred_region
    _
  $region29: #{vanilla_transformer_forward.17} parent=0 // pred_fallthru
    _
  %v27 = vld [vmem:[%s0] sm:$0xff]
  %v28 = vld [vmem:[%s0 + $0x8] sm:$0xff]
  %v29 = vpack.c.bf16 %v28, %v27
  %v30 = vld [vmem:[%s1] sm:$0xf]
  %v31 = vld [vmem:[%s1 + $0x4] sm:$0xf]
  %v32 = vld [vmem:[%s1 + $0x8] sm:$0xf]
  %v33 = vld [vmem:[%s1 + $0xc] sm:$0xf]
  %v34 = vld [vmem:[%s2] sm:$0x1]
  %v36 = vlaneseq
  %v37 = vshrl.u32 %v36, 7
  %v38 = vsub.s32 0, %v37
  %v39 = vrot.slane %v34, %v38
  %v45 = vunpack.c.l.b16 %v30
  %v46 = vunpack.c.l.b16 %v31
  %v47 = vunpack.c.l.b16 %v32
  %v48 = vunpack.c.l.b16 %v33
  %v49 = vpack.c.b16 %v46, %v45
  %v50 = vpack.c.b16 %v48, %v47
  %vm53 = vcmask 261120
  %v55 = vsel %vm53, %v29, 0
  %57 = vmatprep.subr.bf16.mxu0 0
  %58 = vmatpush1.bf16.msra.mxu0 %v49
  %59 = vmatprep.subr.bf16.mxu0 0
  %60 = vmatpush1.bf16.msra.mxu0 %v50
  %61 = vmatprep.subr.bf16.mxu0 0
  %62 = vmatpush1.bf16.msra.mxu0 0
  %63 = vmatprep.subr.bf16.mxu0 0
  %64 = vmatpush1.bf16.msra.mxu0 0
  %65 = vmatprep.subr.bf16.mxu0 0
  %66 = vmatpush1.bf16.msra.mxu0 0
  %67 = vmatprep.subr.bf16.mxu0 0
  %68 = vmatpush1.bf16.msra.mxu0 0
  %69 = vmatprep.subr.bf16.mxu0 0
  %70 = vmatpush1.bf16.msra.mxu0 0
  %71 = vmatprep.subr.bf16.mxu0 0
  %72 = vmatpush1.bf16.msra.mxu0 0
  %73 = vmatprep.subr.bf16.mxu0 0
  %74 = vmatpush1.bf16.msra.mxu0 0
  %75 = vmatprep.subr.bf16.mxu0 0
  %76 = vmatpush1.bf16.msra.mxu0 0
  %77 = vmatprep.subr.bf16.mxu0 0
  %78 = vmatpush1.bf16.msra.mxu0 0
  %79 = vmatprep.subr.bf16.mxu0 0
  %80 = vmatpush1.bf16.msra.mxu0 0
  %81 = vmatprep.subr.bf16.mxu0 0
  %82 = vmatpush1.bf16.msra.mxu0 0
  %83 = vmatprep.subr.bf16.mxu0 0
  %84 = vmatpush1.bf16.msra.mxu0 0
  %85 = vmatprep.subr.bf16.mxu0 0
  %86 = vmatpush1.bf16.msra.mxu0 0
  %87 = vmatprep.subr.bf16.mxu0 0
  %88 = vmatpush1.bf16.msra.mxu0 0
  %89 = vmatprep.mubr.bf16.mxu0 0
  %90 = vmatmul.mubr.bf16.gmra.mrb[0].mxu0 %v55
  %v91 = vpop.f32.mrb[0].mxu0
  %v92 = vadd.f32 %v39, %v91
  %v93 = vpop.f32.mrb[0].mxu0
  %v94 = vpop.f32.mrb[0].mxu0
  %v95 = vadd.f32 %v39, %v94
  %v96 = vpop.f32.mrb[0].mxu0
  %97 = vdwg.mxu0
  %v98 = vmax.f32 %v92, 0.0
  %v99 = vmax.f32 %v95, 0.0
  %v100 = vpack.c.bf16 %v99, %v98
  %v101 = vld [vmem:[%s3] sm:$0xf]
  %v102 = vld [vmem:[%s3 + $0x4] sm:$0xf]
  %v103 = vld [vmem:[%s3 + $0x8] sm:$0xf]
  %v104 = vld [vmem:[%s3 + $0xc] sm:$0xf]
  %v105 = vld [vmem:[%s3 + $0x10] sm:$0xf]
  %v106 = vld [vmem:[%s3 + $0x14] sm:$0xf]
  %v107 = vld [vmem:[%s3 + $0x18] sm:$0xf]
  %v108 = vld [vmem:[%s3 + $0x1c] sm:$0xf]
  %v117 = vunpack.c.l.b16 %v101
  %v118 = vunpack.c.l.b16 %v102
  %v119 = vunpack.c.l.b16 %v103
  %v120 = vunpack.c.l.b16 %v104
  %v121 = vunpack.c.l.b16 %v105
  %v122 = vunpack.c.l.b16 %v106
  %v123 = vunpack.c.l.b16 %v107
  %v124 = vunpack.c.l.b16 %v108
  %v125 = vpack.c.b16 %v118, %v117
  %v126 = vpack.c.b16 %v120, %v119
  %v127 = vpack.c.b16 %v122, %v121
  %v128 = vpack.c.b16 %v124, %v123
  %vm133 = vcmask 523264
  %v135 = vsel %vm133, %v100, 0
  %137 = vmatprep.subr.bf16.mxu0 0
  %138 = vmatpush1.bf16.msra.mxu0 %v125
  %139 = vmatprep.subr.bf16.mxu0 0
  %140 = vmatpush1.bf16.msra.mxu0 %v126
  %141 = vmatprep.subr.bf16.mxu0 0
  %142 = vmatpush1.bf16.msra.mxu0 %v127
  %143 = vmatprep.subr.bf16.mxu0 0
  %144 = vmatpush1.bf16.msra.mxu0 %v128
  %145 = vmatprep.subr.bf16.mxu0 0
  %146 = vmatpush1.bf16.msra.mxu0 0
  %147 = vmatprep.subr.bf16.mxu0 0
  %148 = vmatpush1.bf16.msra.mxu0 0
  %149 = vmatprep.subr.bf16.mxu0 0
  %150 = vmatpush1.bf16.msra.mxu0 0
  %151 = vmatprep.subr.bf16.mxu0 0
  %152 = vmatpush1.bf16.msra.mxu0 0
  %153 = vmatprep.subr.bf16.mxu0 0
  %154 = vmatpush1.bf16.msra.mxu0 0
  %155 = vmatprep.subr.bf16.mxu0 0
  %156 = vmatpush1.bf16.msra.mxu0 0
  %157 = vmatprep.subr.bf16.mxu0 0
  %158 = vmatpush1.bf16.msra.mxu0 0
  %159 = vmatprep.subr.bf16.mxu0 0
  %160 = vmatpush1.bf16.msra.mxu0 0
  %161 = vmatprep.subr.bf16.mxu0 0
  %162 = vmatpush1.bf16.msra.mxu0 0
  %163 = vmatprep.subr.bf16.mxu0 0
  %164 = vmatpush1.bf16.msra.mxu0 0
  %165 = vmatprep.subr.bf16.mxu0 0
  %166 = vmatpush1.bf16.msra.mxu0 0
  %167 = vmatprep.subr.bf16.mxu0 0
  %168 = vmatpush1.bf16.msra.mxu0 0
  %169 = vmatprep.mubr.bf16.mxu0 0
  %170 = vmatmul.mubr.bf16.gmra.mrb[0].mxu0 %v135
  %v171 = vpop.f32.mrb[0].mxu0
  %v172 = vadd.f32 0.0, %v171
  %v173 = vpop.f32.mrb[0].mxu0
  %v174 = vpop.f32.mrb[0].mxu0
  %v175 = vadd.f32 0.0, %v174
  %v176 = vpop.f32.mrb[0].mxu0
  %177 = vdwg.mxu0
  %v178 = vadd.f32 %v27, %v172
  %v179 = vadd.f32 %v28, %v175
  %v180 = vld [vmem:[%s4] sm:$0x1]
  %v182 = vlaneseq
  %v183 = vshrl.u32 %v182, 7
  %v184 = vsub.s32 0, %v183
  %v185 = vrot.slane %v180, %v184
  %v187 = vadd.f32 %v178, %v185
  %v188 = vadd.f32 %v179, %v185
  %v189 = vld [vmem:[%s5] sm:$0x1]
  %v190 = vld [vmem:[%s6] sm:$0x1]
  %v191 = vsel %vm53, %v187, 0.0
  %192 = vadd.xlane.f32.xlu0 %v191
  %v193 = vpop.xlane.xlu0 %192
  %v194 = vsel %vm53, %v188, 0.0
  %195 = vadd.xlane.f32.xlu0 %v194
  %v196 = vpop.xlane.xlu0 %195
  %v197 = vrcp.pop 32.0
  %v198 = vmul.f32 %v193, %v197
  %v199 = vmul.f32 %v196, %v197
  %v200 = vsub.f32 %v187, %v198
  %v201 = vsub.f32 %v188, %v199
  %v202 = vmul.f32 %v200, %v200
  %v203 = vmul.f32 %v201, %v201
  %v204 = vsel %vm53, %v202, 0.0
  %205 = vadd.xlane.f32.xlu0 %v204
  %v206 = vpop.xlane.xlu0 %205
  %v207 = vsel %vm53, %v203, 0.0
  %208 = vadd.xlane.f32.xlu0 %v207
  %v209 = vpop.xlane.xlu0 %208
  %v210 = vmul.f32 %v206, %v197
  %v211 = vmul.f32 %v209, %v197
  %v212 = vadd.f32 %v210, 1e-05
  %v213 = vadd.f32 %v211, 1e-05
  %v214 = vrsqrt.pop %v212
  %v215 = vrsqrt.pop %v213
  %v216 = vmul.f32 %v200, %v214
  %v217 = vmul.f32 %v201, %v215
  %v219 = vlaneseq
  %v220 = vshrl.u32 %v219, 7
  %v221 = vsub.s32 0, %v220
  %v222 = vrot.slane %v189, %v221
  %v224 = vmul.f32 %v216, %v222
  %v225 = vmul.f32 %v217, %v222
  %v227 = vlaneseq
  %v228 = vshrl.u32 %v227, 7
  %v229 = vsub.s32 0, %v228
  %v230 = vrot.slane %v190, %v229
  %v232 = vadd.f32 %v224, %v230
  %v233 = vadd.f32 %v225, %v230
  %234 = vst.msk [vmem:[%s7] sm:$0xff] %vm53, %v232
  %235 = vst.msk [vmem:[%s7 + $0x8] sm:$0xff] %vm53, %v233
  // Predicated region
  $region30: #{vanilla_transformer_forward.17} parent=0 // pred_check
    _
  $region31: #{vanilla_transformer_forward.17} parent=0 // pred_check_branch
    %237 = sbr.rel (0) target = $region33
  $region32: #{vanilla_transformer_forward.17} parent=0 // pred_region
    _
  $region33: #{vanilla_transformer_forward.17} parent=0 // pred_fallthru
    _
  // Predicated region
  $region34: #{vanilla_transformer_forward.17} parent=0 // pred_check
    _
  $region35: #{vanilla_transformer_forward.17} parent=0 // pred_check_branch
    %239 = sbr.rel (0) target = $region37
  $region36: #{vanilla_transformer_forward.17} parent=0 // pred_region
    _
  $region37: #{vanilla_transformer_forward.17} parent=0 // pred_fallthru
    _

// kernel: vanilla_transformer_forward.14
$region0: #{vanilla_transformer_forward.14}
  #allocation0 [shape = 'u32[]', space=smem, size = 0x4, offset = 0x4, fixed_abs, tag = 'smem constant byte address 0x4 - core index']
  #allocation1 [shape = 'u32[144,128]{1,0:T(1,128)}', space=vmem, size = 0x12000, scoped, tag = 'internal scratch']
  %s0 = inlined_call_operand.vmem [shape: f32[2,8,4], index: 0, kind: input, shape index: {}]
  %s1 = inlined_call_operand.vmem [shape: f32[8,32], index: 1, kind: input, shape index: {}]
  %s2 = inlined_call_operand.vmem [shape: bf16[4,32], index: 2, kind: input, shape index: {}]
  %s3 = inlined_call_operand.vmem [shape: f32[2,8,32], index: 3, kind: output, shape index: {}]
  %s4 = sld [smem:[#allocation0]]
  $region45: #{vanilla_transformer_forward.14} parent=0
    _
  %s6 = ssub.s32 1, %s4
  %s7 = scalar_select 0, %s6, %s4
  loop: start=0, step=1, limit=4
  $region2: #{vanilla_transformer_forward.14} parent=0 // loop_pre_header
    _
  $region3: #{vanilla_transformer_forward.14} parent=0 // loop_header
    %s9 = sphi 0, %s13
    %p10 = scmp.ge.s32.totalorder %s9, 4
    %s19 = sphi 0, %s21
    %s22 = sphi 0, %s19
    %s23 = sphi 0, %s22
    %s39 = sphi 0, %s23
    %s43 = sphi 0, %s43
    %s45 = sphi 0, %s43
    %s46 = sphi 0, %s45
    %s60 = sphi 0, %s46
    %s64 = sphi 0, %s64
    %s66 = sphi 0, %s64
    %s67 = sphi 0, %s66
    %s81 = sphi 0, %s67
    %s87 = sphi 0, %s89
    %s90 = sphi 0, %s87
    %s91 = sphi 0, %s90
    %s107 = sphi 0, %s91
  $region4: #{vanilla_transformer_forward.14} parent=0 // loop_header_branch
    %12 = sbr.rel (%p10) target = $region8
  $region5: #{vanilla_transformer_forward.14} parent=0 // loop_body
    %s14 = ssub.s32 %s9, 1
    %s15 = ssub.s32 %s9, 2
    %s16 = sadd.s32 %s9, 1
    %s17 = ssub.s32 %s9, %s16
    %p18 = scmp.eq.s32.totalorder %s17, 0
    %s20 = sadd.s32 %s19, 1
    %s21 = scalar_select %p18, %s19, %s20
    %p24 = pneg %p18
    %p25 = scmp.eq.s32.totalorder %s9, 1
    %p26 = por %p24, %p25
    %p27 = scmp.ne.s32.totalorder %s19, %s22
    %p28 = scmp.eq.s32.totalorder %s9, 0
    %p29 = por %p27, %p28
    %p30 = scmp.ne.s32.totalorder %s19, %s22
    %p31 = scmp.eq.s32.totalorder %s14, 1
    %p32 = por %p30, %p31
    %p33 = scmp.ne.s32.totalorder %s22, %s23
    %p34 = scmp.eq.s32.totalorder %s14, 0
    %p35 = por %p33, %p34
    %p36 = scmp.ne.s32.totalorder %s22, %s23
    %p37 = scmp.eq.s32.totalorder %s15, 1
    %p38 = por %p36, %p37
    %p40 = scmp.ne.s32.totalorder %s23, %s39
    %p41 = scmp.eq.s32.totalorder %s15, 0
    %p42 = por %p40, %p41
    %s44 = sadd.s32 %s43, 1
    %p47 = scmp.eq.s32.totalorder %s9, 1
    %p48 = scmp.ne.s32.totalorder %s43, %s45
    %p49 = scmp.eq.s32.totalorder %s9, 0
    %p50 = por %p48, %p49
    %p51 = scmp.ne.s32.totalorder %s43, %s45
    %p52 = scmp.eq.s32.totalorder %s14, 1
    %p53 = por %p51, %p52
    %p54 = scmp.ne.s32.totalorder %s45, %s46
    %p55 = scmp.eq.s32.totalorder %s14, 0
    %p56 = por %p54, %p55
    %p57 = scmp.ne.s32.totalorder %s45, %s46
    %p58 = scmp.eq.s32.totalorder %s15, 1
    %p59 = por %p57, %p58
    %p61 = scmp.ne.s32.totalorder %s46, %s60
    %p62 = scmp.eq.s32.totalorder %s15, 0
    %p63 = por %p61, %p62
    %s65 = sadd.s32 %s64, 1
    %p68 = scmp.eq.s32.totalorder %s9, 1
    %p69 = scmp.ne.s32.totalorder %s64, %s66
    %p70 = scmp.eq.s32.totalorder %s9, 0
    %p71 = por %p69, %p70
    %p72 = scmp.ne.s32.totalorder %s64, %s66
    %p73 = scmp.eq.s32.totalorder %s14, 1
    %p74 = por %p72, %p73
    %p75 = scmp.ne.s32.totalorder %s66, %s67
    %p76 = scmp.eq.s32.totalorder %s14, 0
    %p77 = por %p75, %p76
    %p78 = scmp.ne.s32.totalorder %s66, %s67
    %p79 = scmp.eq.s32.totalorder %s15, 1
    %p80 = por %p78, %p79
    %p82 = scmp.ne.s32.totalorder %s67, %s81
    %p83 = scmp.eq.s32.totalorder %s15, 0
    %p84 = por %p82, %p83
    %s85 = ssub.s32 %s9, %s16
    %p86 = scmp.eq.s32.totalorder %s85, 0
    %s88 = sadd.s32 %s87, 1
    %s89 = scalar_select %p86, %s87, %s88
    %p92 = pneg %p86
    %p93 = scmp.eq.s32.totalorder %s9, 1
    %p94 = por %p92, %p93
    %p95 = scmp.ne.s32.totalorder %s87, %s90
    %p96 = scmp.eq.s32.totalorder %s9, 0
    %p97 = por %p95, %p96
    %p98 = scmp.ne.s32.totalorder %s87, %s90
    %p99 = scmp.eq.s32.totalorder %s14, 1
    %p100 = por %p98, %p99
    %p101 = scmp.ne.s32.totalorder %s90, %s91
    %p102 = scmp.eq.s32.totalorder %s14, 0
    %p103 = por %p101, %p102
    %p104 = scmp.ne.s32.totalorder %s90, %s91
    %p105 = scmp.eq.s32.totalorder %s15, 1
    %p106 = por %p104, %p105
    %p108 = scmp.ne.s32.totalorder %s91, %s107
    %p109 = scmp.eq.s32.totalorder %s15, 0
    %p110 = por %p108, %p109
    %p111 = scmp.le.s32.totalorder 1, %s9
    %p112 = scmp.lt.s32.totalorder %s9, 3
    %p113 = pnand %p111, %p112
    %p114 = pneg %p113
    // Predicated region
    $region9: #{vanilla_transformer_forward.14} parent=5 // pred_check
      _
    $region10: #{vanilla_transformer_forward.14} parent=5 // pred_check_branch
      %116 = sbr.rel (%p113) target = $region12
    $region11: #{vanilla_transformer_forward.14} parent=5 // pred_region
      %s117 = ssub.s32 %s9, 1
      // Predicated region
      $region13: #{vanilla_transformer_forward.14} parent=11 // pred_check
        %p118 = pneg %p56
      $region14: #{vanilla_transformer_forward.14} parent=11 // pred_check_branch
        %120 = sbr.rel (%p118) target = $region16
      $region15: #{vanilla_transformer_forward.14} parent=11 // pred_region
        _
      $region16: #{vanilla_transformer_forward.14} parent=11 // pred_fallthru
        _
      // Predicated region
      $region17: #{vanilla_transformer_forward.14} parent=11 // pred_check
        %p121 = pneg %p77
      $region18: #{vanilla_transformer_forward.14} parent=11 // pred_check_branch
        %123 = sbr.rel (%p121) target = $region20
      $region19: #{vanilla_transformer_forward.14} parent=11 // pred_region
        _
      $region20: #{vanilla_transformer_forward.14} parent=11 // pred_fallthru
        _
    $region12: #{vanilla_transformer_forward.14} parent=5 // pred_fallthru
      _
    %p124 = scmp.lt.s32.totalorder %s9, 2
    // Predicated region
    $region21: #{vanilla_transformer_forward.14} parent=5 // pred_check
      %p125 = pneg %p124
    $region22: #{vanilla_transformer_forward.14} parent=5 // pred_check_branch
      %127 = sbr.rel (%p125) target = $region24
    $region23: #{vanilla_transformer_forward.14} parent=5 // pred_region
      // Predicated region
      $region25: #{vanilla_transformer_forward.14} parent=23 // pred_check
        %p128 = pneg %p29
      $region26: #{vanilla_transformer_forward.14} parent=23 // pred_check_branch
        %130 = sbr.rel (%p128) target = $region28
      $region27: #{vanilla_transformer_forward.14} parent=23 // pred_region
        %p131 = scmp.lt.s32.totalorder %s9, 1
        %s132 = scalar_select %p131, %s9, 1
        %s133 = smul.addr %s132, 8
        %s134 = scalar_lea.vmem %s0, %s133
      $region28: #{vanilla_transformer_forward.14} parent=23 // pred_fallthru
        _
    $region24: #{vanilla_transformer_forward.14} parent=5 // pred_fallthru
      _
    %p135 = scmp.le.s32.totalorder 1, %s9
    %p136 = scmp.lt.s32.totalorder %s9, 3
    %p137 = pnand %p135, %p136
    %p138 = pneg %p137
    // Predicated region
    $region29: #{vanilla_transformer_forward.14} parent=5 // pred_check
      _
    $region30: #{vanilla_transformer_forward.14} parent=5 // pred_check_branch
      %140 = sbr.rel (%p137) target = $region32
    $region31: #{vanilla_transformer_forward.14} parent=5 // pred_region
      %s141 = ssub.s32 %s9, 1
      %p142 = scmp.lt.s32.totalorder %s14, 1
      %s143 = scalar_select %p142, %s14, 1
      %s144 = smul.addr %s143, 8
      %s145 = scalar_lea.vmem %s0, %s144
      %p146 = pneg %p35
      %p147 = pneg %p32
      %p148 = pneg %p56
      %p149 = pneg %p53
      %p150 = pneg %p77
      %p151 = pneg %p74
      %p152 = pneg %p103
      %p153 = pneg %p100
      %p154 = scmp.lt.s32.totalorder %s14, 1
      %s155 = scalar_select %p154, %s14, 1
      %s156 = smul.addr %s155, 8
      %s157 = scalar_lea.vmem %s3, %s156
      %p158 = scmp.lt.s32.totalorder %s14, 1
      %s159 = scalar_select %p158, %s14, 1
      %s160 = smul.addr %s159, 8
      %s161 = scalar_lea.vmem %s0, %s160
      %p162 = scmp.lt.s32.totalorder %s14, 1
      %s163 = scalar_select %p162, %s14, 1
      %s164 = smul.addr %s163, 8
      %s165 = scalar_lea.vmem %s3, %s164
      %v167 = vld [vmem:[%s161] sm:$0xff]
      %v168 = vpack.c.bf16 %v167, %v167
      %v169 = vld [vmem:[%s2] sm:$0x3]
      %v170 = vld [vmem:[%s1] sm:$0xff]
      %vm171 = vcmask 31744
      %v173 = vsel %vm171, %v168, 0
      %vm175 = vcmask 1041408
      %v177 = vsel %vm175, %v169, 0
      %179 = vmatprep.subr.bf16.mxu0 0
      %180 = vmatpush1.bf16.msra.mxu0 %v177
      %181 = vmatprep.subr.bf16.mxu0 0
      %182 = vmatpush1.bf16.msra.mxu0 0
      %183 = vmatprep.subr.bf16.mxu0 0
      %184 = vmatpush1.bf16.msra.mxu0 0
      %185 = vmatprep.subr.bf16.mxu0 0
      %186 = vmatpush1.bf16.msra.mxu0 0
      %187 = vmatprep.subr.bf16.mxu0 0
      %188 = vmatpush1.bf16.msra.mxu0 0
      %189 = vmatprep.subr.bf16.mxu0 0
      %190 = vmatpush1.bf16.msra.mxu0 0
      %191 = vmatprep.subr.bf16.mxu0 0
      %192 = vmatpush1.bf16.msra.mxu0 0
      %193 = vmatprep.subr.bf16.mxu0 0
      %194 = vmatpush1.bf16.msra.mxu0 0
      %195 = vmatprep.subr.bf16.mxu0 0
      %196 = vmatpush1.bf16.msra.mxu0 0
      %197 = vmatprep.subr.bf16.mxu0 0
      %198 = vmatpush1.bf16.msra.mxu0 0
      %199 = vmatprep.subr.bf16.mxu0 0
      %200 = vmatpush1.bf16.msra.mxu0 0
      %201 = vmatprep.subr.bf16.mxu0 0
      %202 = vmatpush1.bf16.msra.mxu0 0
      %203 = vmatprep.subr.bf16.mxu0 0
      %204 = vmatpush1.bf16.msra.mxu0 0
      %205 = vmatprep.subr.bf16.mxu0 0
      %206 = vmatpush1.bf16.msra.mxu0 0
      %207 = vmatprep.subr.bf16.mxu0 0
      %208 = vmatpush1.bf16.msra.mxu0 0
      %209 = vmatprep.subr.bf16.mxu0 0
      %210 = vmatpush1.bf16.msra.mxu0 0
      %211 = vmatprep.mubr.bf16.mxu0 0
      %212 = vmatmul.mubr.bf16.gmra.mrb[0].mxu0 %v173
      %v213 = vpop.f32.mrb[0].mxu0
      %v214 = vadd.f32 %v170, %v213
      %v215 = vpop.f32.mrb[0].mxu0
      %v216 = vpop.f32.mrb[0].mxu0
      %v217 = vpop.f32.mrb[0].mxu0
      %218 = vdwg.mxu0
      %vm219 = vcmask 261120
      %220 = vst.msk [vmem:[%s165] sm:$0xff] %vm219, %v214
      %p221 = scmp.lt.s32.totalorder %s14, 1
      %s222 = scalar_select %p221, %s14, 1
      %s223 = smul.addr %s222, 8
      %s224 = scalar_lea.vmem %s3, %s223
      // Predicated region
      $region33: #{vanilla_transformer_forward.14} parent=31 // pred_check
        %p225 = pneg %p100
      $region34: #{vanilla_transformer_forward.14} parent=31 // pred_check_branch
        %227 = sbr.rel (%p225) target = $region36
      $region35: #{vanilla_transformer_forward.14} parent=31 // pred_region
        _
      $region36: #{vanilla_transformer_forward.14} parent=31 // pred_fallthru
        _
    $region32: #{vanilla_transformer_forward.14} parent=5 // pred_fallthru
      _
    %p228 = scmp.le.s32.totalorder 2, %s9
    // Predicated region
    $region37: #{vanilla_transformer_forward.14} parent=5 // pred_check
      %p229 = pneg %p228
    $region38: #{vanilla_transformer_forward.14} parent=5 // pred_check_branch
      %231 = sbr.rel (%p229) target = $region40
    $region39: #{vanilla_transformer_forward.14} parent=5 // pred_region
      %s232 = ssub.s32 %s9, 2
      // Predicated region
      $region41: #{vanilla_transformer_forward.14} parent=39 // pred_check
        %p233 = pneg %p106
      $region42: #{vanilla_transformer_forward.14} parent=39 // pred_check_branch
        %235 = sbr.rel (%p233) target = $region44
      $region43: #{vanilla_transformer_forward.14} parent=39 // pred_region
        %p236 = scmp.lt.s32.totalorder %s15, 1
        %s237 = scalar_select %p236, %s15, 1
        %s238 = smul.addr %s237, 8
        %s239 = scalar_lea.vmem %s3, %s238
      $region44: #{vanilla_transformer_forward.14} parent=39 // pred_fallthru
        _
    $region40: #{vanilla_transformer_forward.14} parent=5 // pred_fallthru
      _
  $region6: #{vanilla_transformer_forward.14} parent=0 // loop_footer
    %s13 = sadd.s32 1, %s9
  $region7: #{vanilla_transformer_forward.14} parent=0 // loop_footer_branch
    %8 = sbr.rel target = $region3
  $region8: #{vanilla_transformer_forward.14} parent=0 // loop_exit
    _

// kernel: vanilla_transformer_forward.16
$region0: #{vanilla_transformer_forward.16}
  #allocation0 [shape = 'u32[]', space=smem, size = 0x4, offset = 0x4, fixed_abs, tag = 'smem constant byte address 0x4 - core index']
  #allocation1 [shape = 'u32[144,128]{1,0:T(1,128)}', space=vmem, size = 0x12000, scoped, tag = 'internal scratch']
  %s0 = inlined_call_operand.vmem [shape: f32[2,8,32], index: 0, kind: input, shape index: {}]
  %s1 = inlined_call_operand.vmem [shape: bf16[32,96], index: 1, kind: input, shape index: {}]
  %s2 = inlined_call_operand.vmem [shape: f32[1,96], index: 2, kind: input, shape index: {}]
  %s3 = inlined_call_operand.vmem [shape: bf16[32,32], index: 3, kind: input, shape index: {}]
  %s4 = inlined_call_operand.vmem [shape: f32[1,32], index: 4, kind: input, shape index: {}]
  %s5 = inlined_call_operand.vmem [shape: f32[1,32], index: 5, kind: input, shape index: {}]
  %s6 = inlined_call_operand.vmem [shape: f32[1,32], index: 6, kind: input, shape index: {}]
  %s7 = inlined_call_operand.vmem [shape: f32[2,8,32], index: 7, kind: output, shape index: {}]
  %s8 = sld [smem:[#allocation0]]
  $region61: #{vanilla_transformer_forward.16} parent=0
    _
  %s10 = ssub.s32 1, %s8
  %s11 = scalar_select 0, %s10, %s8
  loop: start=0, step=1, limit=4
  $region2: #{vanilla_transformer_forward.16} parent=0 // loop_pre_header
    _
  $region3: #{vanilla_transformer_forward.16} parent=0 // loop_header
    %s13 = sphi 0, %s17
    %p14 = scmp.ge.s32.totalorder %s13, 4
    %s23 = sphi 0, %s25
    %s26 = sphi 0, %s23
    %s27 = sphi 0, %s26
    %s43 = sphi 0, %s27
    %s47 = sphi 0, %s47
    %s49 = sphi 0, %s47
    %s50 = sphi 0, %s49
    %s64 = sphi 0, %s50
    %s68 = sphi 0, %s68
    %s70 = sphi 0, %s68
    %s71 = sphi 0, %s70
    %s85 = sphi 0, %s71
    %s89 = sphi 0, %s89
    %s91 = sphi 0, %s89
    %s92 = sphi 0, %s91
    %s106 = sphi 0, %s92
    %s110 = sphi 0, %s110
    %s112 = sphi 0, %s110
    %s113 = sphi 0, %s112
    %s127 = sphi 0, %s113
    %s131 = sphi 0, %s131
    %s133 = sphi 0, %s131
    %s134 = sphi 0, %s133
    %s148 = sphi 0, %s134
    %s152 = sphi 0, %s152
    %s154 = sphi 0, %s152
    %s155 = sphi 0, %s154
    %s169 = sphi 0, %s155
    %s175 = sphi 0, %s177
    %s178 = sphi 0, %s175
    %s179 = sphi 0, %s178
    %s195 = sphi 0, %s179
  $region4: #{vanilla_transformer_forward.16} parent=0 // loop_header_branch
    %16 = sbr.rel (%p14) target = $region8
  $region5: #{vanilla_transformer_forward.16} parent=0 // loop_body
    %s18 = ssub.s32 %s13, 1
    %s19 = ssub.s32 %s13, 2
    %s20 = sadd.s32 %s13, 1
    %s21 = ssub.s32 %s13, %s20
    %p22 = scmp.eq.s32.totalorder %s21, 0
    %s24 = sadd.s32 %s23, 1
    %s25 = scalar_select %p22, %s23, %s24
    %p28 = pneg %p22
    %p29 = scmp.eq.s32.totalorder %s13, 1
    %p30 = por %p28, %p29
    %p31 = scmp.ne.s32.totalorder %s23, %s26
    %p32 = scmp.eq.s32.totalorder %s13, 0
    %p33 = por %p31, %p32
    %p34 = scmp.ne.s32.totalorder %s23, %s26
    %p35 = scmp.eq.s32.totalorder %s18, 1
    %p36 = por %p34, %p35
    %p37 = scmp.ne.s32.totalorder %s26, %s27
    %p38 = scmp.eq.s32.totalorder %s18, 0
    %p39 = por %p37, %p38
    %p40 = scmp.ne.s32.totalorder %s26, %s27
    %p41 = scmp.eq.s32.totalorder %s19, 1
    %p42 = por %p40, %p41
    %p44 = scmp.ne.s32.totalorder %s27, %s43
    %p45 = scmp.eq.s32.totalorder %s19, 0
    %p46 = por %p44, %p45
    %s48 = sadd.s32 %s47, 1
    %p51 = scmp.eq.s32.totalorder %s13, 1
    %p52 = scmp.ne.s32.totalorder %s47, %s49
    %p53 = scmp.eq.s32.totalorder %s13, 0
    %p54 = por %p52, %p53
    %p55 = scmp.ne.s32.totalorder %s47, %s49
    %p56 = scmp.eq.s32.totalorder %s18, 1
    %p57 = por %p55, %p56
    %p58 = scmp.ne.s32.totalorder %s49, %s50
    %p59 = scmp.eq.s32.totalorder %s18, 0
    %p60 = por %p58, %p59
    %p61 = scmp.ne.s32.totalorder %s49, %s50
    %p62 = scmp.eq.s32.totalorder %s19, 1
    %p63 = por %p61, %p62
    %p65 = scmp.ne.s32.totalorder %s50, %s64
    %p66 = scmp.eq.s32.totalorder %s19, 0
    %p67 = por %p65, %p66
    %s69 = sadd.s32 %s68, 1
    %p72 = scmp.eq.s32.totalorder %s13, 1
    %p73 = scmp.ne.s32.totalorder %s68, %s70
    %p74 = scmp.eq.s32.totalorder %s13, 0
    %p75 = por %p73, %p74
    %p76 = scmp.ne.s32.totalorder %s68, %s70
    %p77 = scmp.eq.s32.totalorder %s18, 1
    %p78 = por %p76, %p77
    %p79 = scmp.ne.s32.totalorder %s70, %s71
    %p80 = scmp.eq.s32.totalorder %s18, 0
    %p81 = por %p79, %p80
    %p82 = scmp.ne.s32.totalorder %s70, %s71
    %p83 = scmp.eq.s32.totalorder %s19, 1
    %p84 = por %p82, %p83
    %p86 = scmp.ne.s32.totalorder %s71, %s85
    %p87 = scmp.eq.s32.totalorder %s19, 0
    %p88 = por %p86, %p87
    %s90 = sadd.s32 %s89, 1
    %p93 = scmp.eq.s32.totalorder %s13, 1
    %p94 = scmp.ne.s32.totalorder %s89, %s91
    %p95 = scmp.eq.s32.totalorder %s13, 0
    %p96 = por %p94, %p95
    %p97 = scmp.ne.s32.totalorder %s89, %s91
    %p98 = scmp.eq.s32.totalorder %s18, 1
    %p99 = por %p97, %p98
    %p100 = scmp.ne.s32.totalorder %s91, %s92
    %p101 = scmp.eq.s32.totalorder %s18, 0
    %p102 = por %p100, %p101
    %p103 = scmp.ne.s32.totalorder %s91, %s92
    %p104 = scmp.eq.s32.totalorder %s19, 1
    %p105 = por %p103, %p104
    %p107 = scmp.ne.s32.totalorder %s92, %s106
    %p108 = scmp.eq.s32.totalorder %s19, 0
    %p109 = por %p107, %p108
    %s111 = sadd.s32 %s110, 1
    %p114 = scmp.eq.s32.totalorder %s13, 1
    %p115 = scmp.ne.s32.totalorder %s110, %s112
    %p116 = scmp.eq.s32.totalorder %s13, 0
    %p117 = por %p115, %p116
    %p118 = scmp.ne.s32.totalorder %s110, %s112
    %p119 = scmp.eq.s32.totalorder %s18, 1
    %p120 = por %p118, %p119
    %p121 = scmp.ne.s32.totalorder %s112, %s113
    %p122 = scmp.eq.s32.totalorder %s18, 0
    %p123 = por %p121, %p122
    %p124 = scmp.ne.s32.totalorder %s112, %s113
    %p125 = scmp.eq.s32.totalorder %s19, 1
    %p126 = por %p124, %p125
    %p128 = scmp.ne.s32.totalorder %s113, %s127
    %p129 = scmp.eq.s32.totalorder %s19, 0
    %p130 = por %p128, %p129
    %s132 = sadd.s32 %s131, 1
    %p135 = scmp.eq.s32.totalorder %s13, 1
    %p136 = scmp.ne.s32.totalorder %s131, %s133
    %p137 = scmp.eq.s32.totalorder %s13, 0
    %p138 = por %p136, %p137
    %p139 = scmp.ne.s32.totalorder %s131, %s133
    %p140 = scmp.eq.s32.totalorder %s18, 1
    %p141 = por %p139, %p140
    %p142 = scmp.ne.s32.totalorder %s133, %s134
    %p143 = scmp.eq.s32.totalorder %s18, 0
    %p144 = por %p142, %p143
    %p145 = scmp.ne.s32.totalorder %s133, %s134
    %p146 = scmp.eq.s32.totalorder %s19, 1
    %p147 = por %p145, %p146
    %p149 = scmp.ne.s32.totalorder %s134, %s148
    %p150 = scmp.eq.s32.totalorder %s19, 0
    %p151 = por %p149, %p150
    %s153 = sadd.s32 %s152, 1
    %p156 = scmp.eq.s32.totalorder %s13, 1
    %p157 = scmp.ne.s32.totalorder %s152, %s154
    %p158 = scmp.eq.s32.totalorder %s13, 0
    %p159 = por %p157, %p158
    %p160 = scmp.ne.s32.totalorder %s152, %s154
    %p161 = scmp.eq.s32.totalorder %s18, 1
    %p162 = por %p160, %p161
    %p163 = scmp.ne.s32.totalorder %s154, %s155
    %p164 = scmp.eq.s32.totalorder %s18, 0
    %p165 = por %p163, %p164
    %p166 = scmp.ne.s32.totalorder %s154, %s155
    %p167 = scmp.eq.s32.totalorder %s19, 1
    %p168 = por %p166, %p167
    %p170 = scmp.ne.s32.totalorder %s155, %s169
    %p171 = scmp.eq.s32.totalorder %s19, 0
    %p172 = por %p170, %p171
    %s173 = ssub.s32 %s13, %s20
    %p174 = scmp.eq.s32.totalorder %s173, 0
    %s176 = sadd.s32 %s175, 1
    %s177 = scalar_select %p174, %s175, %s176
    %p180 = pneg %p174
    %p181 = scmp.eq.s32.totalorder %s13, 1
    %p182 = por %p180, %p181
    %p183 = scmp.ne.s32.totalorder %s175, %s178
    %p184 = scmp.eq.s32.totalorder %s13, 0
    %p185 = por %p183, %p184
    %p186 = scmp.ne.s32.totalorder %s175, %s178
    %p187 = scmp.eq.s32.totalorder %s18, 1
    %p188 = por %p186, %p187
    %p189 = scmp.ne.s32.totalorder %s178, %s179
    %p190 = scmp.eq.s32.totalorder %s18, 0
    %p191 = por %p189, %p190
    %p192 = scmp.ne.s32.totalorder %s178, %s179
    %p193 = scmp.eq.s32.totalorder %s19, 1
    %p194 = por %p192, %p193
    %p196 = scmp.ne.s32.totalorder %s179, %s195
    %p197 = scmp.eq.s32.totalorder %s19, 0
    %p198 = por %p196, %p197
    %p199 = scmp.le.s32.totalorder 1, %s13
    %p200 = scmp.lt.s32.totalorder %s13, 3
    %p201 = pnand %p199, %p200
    %p202 = pneg %p201
    // Predicated region
    $region9: #{vanilla_transformer_forward.16} parent=5 // pred_check
      _
    $region10: #{vanilla_transformer_forward.16} parent=5 // pred_check_branch
      %204 = sbr.rel (%p201) target = $region12
    $region11: #{vanilla_transformer_forward.16} parent=5 // pred_region
      %s205 = ssub.s32 %s13, 1
      // Predicated region
      $region13: #{vanilla_transformer_forward.16} parent=11 // pred_check
        %p206 = pneg %p60
      $region14: #{vanilla_transformer_forward.16} parent=11 // pred_check_branch
        %208 = sbr.rel (%p206) target = $region16
      $region15: #{vanilla_transformer_forward.16} parent=11 // pred_region
        _
      $region16: #{vanilla_transformer_forward.16} parent=11 // pred_fallthru
        _
      // Predicated region
      $region17: #{vanilla_transformer_forward.16} parent=11 // pred_check
        %p209 = pneg %p81
      $region18: #{vanilla_transformer_forward.16} parent=11 // pred_check_branch
        %211 = sbr.rel (%p209) target = $region20
      $region19: #{vanilla_transformer_forward.16} parent=11 // pred_region
        _
      $region20: #{vanilla_transformer_forward.16} parent=11 // pred_fallthru
        _
      // Predicated region
      $region21: #{vanilla_transformer_forward.16} parent=11 // pred_check
        %p212 = pneg %p102
      $region22: #{vanilla_transformer_forward.16} parent=11 // pred_check_branch
        %214 = sbr.rel (%p212) target = $region24
      $region23: #{vanilla_transformer_forward.16} parent=11 // pred_region
        _
      $region24: #{vanilla_transformer_forward.16} parent=11 // pred_fallthru
        _
      // Predicated region
      $region25: #{vanilla_transformer_forward.16} parent=11 // pred_check
        %p215 = pneg %p123
      $region26: #{vanilla_transformer_forward.16} parent=11 // pred_check_branch
        %217 = sbr.rel (%p215) target = $region28
      $region27: #{vanilla_transformer_forward.16} parent=11 // pred_region
        _
      $region28: #{vanilla_transformer_forward.16} parent=11 // pred_fallthru
        _
      // Predicated region
      $region29: #{vanilla_transformer_forward.16} parent=11 // pred_check
        %p218 = pneg %p144
      $region30: #{vanilla_transformer_forward.16} parent=11 // pred_check_branch
        %220 = sbr.rel (%p218) target = $region32
      $region31: #{vanilla_transformer_forward.16} parent=11 // pred_region
        _
      $region32: #{vanilla_transformer_forward.16} parent=11 // pred_fallthru
        _
      // Predicated region
      $region33: #{vanilla_transformer_forward.16} parent=11 // pred_check
        %p221 = pneg %p165
      $region34: #{vanilla_transformer_forward.16} parent=11 // pred_check_branch
        %223 = sbr.rel (%p221) target = $region36
      $region35: #{vanilla_transformer_forward.16} parent=11 // pred_region
        _
      $region36: #{vanilla_transformer_forward.16} parent=11 // pred_fallthru
        _
    $region12: #{vanilla_transformer_forward.16} parent=5 // pred_fallthru
      _
    %p224 = scmp.lt.s32.totalorder %s13, 2
    // Predicated region
    $region37: #{vanilla_transformer_forward.16} parent=5 // pred_check
      %p225 = pneg %p224
    $region38: #{vanilla_transformer_forward.16} parent=5 // pred_check_branch
      %227 = sbr.rel (%p225) target = $region40
    $region39: #{vanilla_transformer_forward.16} parent=5 // pred_region
      // Predicated region
      $region41: #{vanilla_transformer_forward.16} parent=39 // pred_check
        %p228 = pneg %p33
      $region42: #{vanilla_transformer_forward.16} parent=39 // pred_check_branch
        %230 = sbr.rel (%p228) target = $region44
      $region43: #{vanilla_transformer_forward.16} parent=39 // pred_region
        %p231 = scmp.lt.s32.totalorder %s13, 1
        %s232 = scalar_select %p231, %s13, 1
        %s233 = smul.addr %s232, 8
        %s234 = scalar_lea.vmem %s0, %s233
      $region44: #{vanilla_transformer_forward.16} parent=39 // pred_fallthru
        _
    $region40: #{vanilla_transformer_forward.16} parent=5 // pred_fallthru
      _
    %p235 = scmp.le.s32.totalorder 1, %s13
    %p236 = scmp.lt.s32.totalorder %s13, 3
    %p237 = pnand %p235, %p236
    %p238 = pneg %p237
    // Predicated region
    $region45: #{vanilla_transformer_forward.16} parent=5 // pred_check
      _
    $region46: #{vanilla_transformer_forward.16} parent=5 // pred_check_branch
      %240 = sbr.rel (%p237) target = $region48
    $region47: #{vanilla_transformer_forward.16} parent=5 // pred_region
      %s241 = ssub.s32 %s13, 1
      %p242 = scmp.lt.s32.totalorder %s18, 1
      %s243 = scalar_select %p242, %s18, 1
      %s244 = smul.addr %s243, 8
      %s245 = scalar_lea.vmem %s0, %s244
      %p246 = pneg %p39
      %p247 = pneg %p36
      %p248 = pneg %p60
      %p249 = pneg %p57
      %p250 = pneg %p81
      %p251 = pneg %p78
      %p252 = pneg %p102
      %p253 = pneg %p99
      %p254 = pneg %p123
      %p255 = pneg %p120
      %p256 = pneg %p144
      %p257 = pneg %p141
      %p258 = pneg %p165
      %p259 = pneg %p162
      %p260 = pneg %p191
      %p261 = pneg %p188
      %p262 = scmp.lt.s32.totalorder %s18, 1
      %s263 = scalar_select %p262, %s18, 1
      %s264 = smul.addr %s263, 8
      %s265 = scalar_lea.vmem %s7, %s264
      %p266 = scmp.lt.s32.totalorder %s18, 1
      %s267 = scalar_select %p266, %s18, 1
      %s268 = smul.addr %s267, 8
      %s269 = scalar_lea.vmem %s0, %s268
      %p270 = scmp.lt.s32.totalorder %s18, 1
      %s271 = scalar_select %p270, %s18, 1
      %s272 = smul.addr %s271, 8
      %s273 = scalar_lea.vmem %s7, %s272
      %v275 = vld [vmem:[%s269] sm:$0xff]
      %v276 = vpack.c.bf16 %v275, %v275
      %v277 = vld [vmem:[%s1] sm:$0xf]
      %v278 = vld [vmem:[%s1 + $0x4] sm:$0xf]
      %v279 = vld [vmem:[%s1 + $0x8] sm:$0xf]
      %v280 = vld [vmem:[%s1 + $0xc] sm:$0xf]
      %v281 = vld [vmem:[%s2] sm:$0x1]
      %v283 = vlaneseq
      %v284 = vshrl.u32 %v283, 7
      %v285 = vsub.s32 0, %v284
      %v286 = vrot.slane %v281, %v285
      %v292 = vunpack.c.l.b16 %v277
      %v293 = vunpack.c.l.b16 %v278
      %v294 = vunpack.c.l.b16 %v279
      %v295 = vunpack.c.l.b16 %v280
      %v296 = vpack.c.b16 %v293, %v292
      %v297 = vpack.c.b16 %v295, %v294
      %vm300 = vcmask 261120
      %v302 = vsel %vm300, %v276, 0
      %304 = vmatprep.subr.bf16.mxu0 0
      %305 = vmatpush1.bf16.msra.mxu0 %v296
      %306 = vmatprep.subr.bf16.mxu0 0
      %307 = vmatpush1.bf16.msra.mxu0 %v297
      %308 = vmatprep.subr.bf16.mxu0 0
      %309 = vmatpush1.bf16.msra.mxu0 0
      %310 = vmatprep.subr.bf16.mxu0 0
      %311 = vmatpush1.bf16.msra.mxu0 0
      %312 = vmatprep.subr.bf16.mxu0 0
      %313 = vmatpush1.bf16.msra.mxu0 0
      %314 = vmatprep.subr.bf16.mxu0 0
      %315 = vmatpush1.bf16.msra.mxu0 0
      %316 = vmatprep.subr.bf16.mxu0 0
      %317 = vmatpush1.bf16.msra.mxu0 0
      %318 = vmatprep.subr.bf16.mxu0 0
      %319 = vmatpush1.bf16.msra.mxu0 0
      %320 = vmatprep.subr.bf16.mxu0 0
      %321 = vmatpush1.bf16.msra.mxu0 0
      %322 = vmatprep.subr.bf16.mxu0 0
      %323 = vmatpush1.bf16.msra.mxu0 0
      %324 = vmatprep.subr.bf16.mxu0 0
      %325 = vmatpush1.bf16.msra.mxu0 0
      %326 = vmatprep.subr.bf16.mxu0 0
      %327 = vmatpush1.bf16.msra.mxu0 0
      %328 = vmatprep.subr.bf16.mxu0 0
      %329 = vmatpush1.bf16.msra.mxu0 0
      %330 = vmatprep.subr.bf16.mxu0 0
      %331 = vmatpush1.bf16.msra.mxu0 0
      %332 = vmatprep.subr.bf16.mxu0 0
      %333 = vmatpush1.bf16.msra.mxu0 0
      %334 = vmatprep.subr.bf16.mxu0 0
      %335 = vmatpush1.bf16.msra.mxu0 0
      %336 = vmatprep.mubr.bf16.mxu0 0
      %337 = vmatmul.mubr.bf16.gmra.mrb[0].mxu0 %v302
      %v338 = vpop.f32.mrb[0].mxu0
      %v339 = vadd.f32 %v286, %v338
      %v340 = vpop.f32.mrb[0].mxu0
      %v341 = vpop.f32.mrb[0].mxu0
      %v342 = vpop.f32.mrb[0].mxu0
      %343 = vdwg.mxu0
      %v344 = vlaneseq
      %v345 = vshrl.u32 %v344, 7
      %v346 = vlaneseq
      %v347 = vand.u32 %v346, 127
      %vm348 = vcmp.gt.s32.totalorder %v347, %v345
      %v349 = vpack.c.bf16 %v339, %v339
      %351 = vrot.lane.b32.xlu0 %v349, 96
      %v352 = vpop.permute.xlu0 %351
      %vm353 = vcmask 64512
      %v355 = vsel %vm353, %v349, 0
      %v358 = vsel %vm353, %v352, 0
      %360 = vmatprep.subr.bf16.mxu0 0
      %361 = vmatpush1.bf16.xpose.msra.mxu0 %v358
      %362 = vmatprep.subr.bf16.mxu0 0
      %363 = vmatpush1.bf16.xpose.msra.mxu0 0
      %364 = vmatprep.subr.bf16.mxu0 0
      %365 = vmatpush1.bf16.xpose.msra.mxu0 0
      %366 = vmatprep.subr.bf16.mxu0 0
      %367 = vmatpush1.bf16.xpose.msra.mxu0 0
      %368 = vmatprep.subr.bf16.mxu0 0
      %369 = vmatpush1.bf16.xpose.msra.mxu0 0
      %370 = vmatprep.subr.bf16.mxu0 0
      %371 = vmatpush1.bf16.xpose.msra.mxu0 0
      %372 = vmatprep.subr.bf16.mxu0 0
      %373 = vmatpush1.bf16.xpose.msra.mxu0 0
      %374 = vmatprep.subr.bf16.mxu0 0
      %375 = vmatpush1.bf16.xpose.msra.mxu0 0
      %376 = vmatprep.subr.bf16.mxu0 0
      %377 = vmatpush1.bf16.xpose.msra.mxu0 0
      %378 = vmatprep.subr.bf16.mxu0 0
      %379 = vmatpush1.bf16.xpose.msra.mxu0 0
      %380 = vmatprep.subr.bf16.mxu0 0
      %381 = vmatpush1.bf16.xpose.msra.mxu0 0
      %382 = vmatprep.subr.bf16.mxu0 0
      %383 = vmatpush1.bf16.xpose.msra.mxu0 0
      %384 = vmatprep.subr.bf16.mxu0 0
      %385 = vmatpush1.bf16.xpose.msra.mxu0 0
      %386 = vmatprep.subr.bf16.mxu0 0
      %387 = vmatpush1.bf16.xpose.msra.mxu0 0
      %388 = vmatprep.subr.bf16.mxu0 0
      %389 = vmatpush1.bf16.xpose.msra.mxu0 0
      %390 = vmatprep.subr.bf16.mxu0 0
      %391 = vmatpush1.bf16.xpose.msra.mxu0 0
      %392 = vmatprep.mubr.bf16.mxu0 0
      %393 = vmatmul.mubr.bf16.gmra.mrb[0].mxu0 %v355
      %v394 = vpop.f32.mrb[0].mxu0
      %v395 = vadd.f32 0.0, %v394
      %v396 = vpop.f32.mrb[0].mxu0
      %v397 = vpop.f32.mrb[0].mxu0
      %v398 = vpop.f32.mrb[0].mxu0
      %399 = vdwg.mxu0
      %v400 = vsel %vm348, -inf, %v395
      %v401 = vsel %vm353, %v400, -inf
      %402 = vmax.xlane.f32.xlu0 %v401
      %v403 = vpop.xlane.xlu0 %402
      %v404 = vsub.f32 %v400, %v403
      %v405 = vmul.f32 %v404, 1.442695
      %v406 = vpow.pop %v405
      %v407 = vsel %vm353, %v406, 0.0
      %408 = vadd.xlane.f32.xlu0 %v407
      %v409 = vpop.xlane.xlu0 %408
      %v410 = vrcp.pop %v409
      %v411 = vpack.c.bf16 %v406, %v406
      %412 = vrot.lane.b32.xlu0 %v349, 64
      %v413 = vpop.permute.xlu0 %412
      %v415 = vsel %vm353, %v411, 0
      %vm417 = vcmask 1043456
      %v419 = vsel %vm417, %v413, 0
      %421 = vmatprep.subr.bf16.mxu0 0
      %422 = vmatpush1.bf16.msra.mxu0 %v419
      %423 = vmatprep.subr.bf16.mxu0 0
      %424 = vmatpush1.bf16.msra.mxu0 0
      %425 = vmatprep.subr.bf16.mxu0 0
      %426 = vmatpush1.bf16.msra.mxu0 0
      %427 = vmatprep.subr.bf16.mxu0 0
      %428 = vmatpush1.bf16.msra.mxu0 0
      %429 = vmatprep.subr.bf16.mxu0 0
      %430 = vmatpush1.bf16.msra.mxu0 0
      %431 = vmatprep.subr.bf16.mxu0 0
      %432 = vmatpush1.bf16.msra.mxu0 0
      %433 = vmatprep.subr.bf16.mxu0 0
      %434 = vmatpush1.bf16.msra.mxu0 0
      %435 = vmatprep.subr.bf16.mxu0 0
      %436 = vmatpush1.bf16.msra.mxu0 0
      %437 = vmatprep.subr.bf16.mxu0 0
      %438 = vmatpush1.bf16.msra.mxu0 0
      %439 = vmatprep.subr.bf16.mxu0 0
      %440 = vmatpush1.bf16.msra.mxu0 0
      %441 = vmatprep.subr.bf16.mxu0 0
      %442 = vmatpush1.bf16.msra.mxu0 0
      %443 = vmatprep.subr.bf16.mxu0 0
      %444 = vmatpush1.bf16.msra.mxu0 0
      %445 = vmatprep.subr.bf16.mxu0 0
      %446 = vmatpush1.bf16.msra.mxu0 0
      %447 = vmatprep.subr.bf16.mxu0 0
      %448 = vmatpush1.bf16.msra.mxu0 0
      %449 = vmatprep.subr.bf16.mxu0 0
      %450 = vmatpush1.bf16.msra.mxu0 0
      %451 = vmatprep.subr.bf16.mxu0 0
      %452 = vmatpush1.bf16.msra.mxu0 0
      %453 = vmatprep.mubr.bf16.mxu0 0
      %454 = vmatmul.mubr.bf16.gmra.mrb[0].mxu0 %v415
      %v455 = vpop.f32.mrb[0].mxu0
      %v456 = vadd.f32 0.0, %v455
      %v457 = vpop.f32.mrb[0].mxu0
      %v458 = vpop.f32.mrb[0].mxu0
      %v459 = vpop.f32.mrb[0].mxu0
      %460 = vdwg.mxu0
      %v461 = vmul.f32 %v456, %v410
      %v462 = vpack.c.bf16 %v461, %v461
      %v463 = vld [vmem:[%s3] sm:$0xf]
      %464 = vrot.lane.b32.xlu0 %v349, 120
      %v465 = vpop.permute.xlu0 %464
      %466 = vrot.lane.b32.xlu0 %v349, 88
      %v467 = vpop.permute.xlu0 %466
      %v469 = vsel %vm353, %v465, 0
      %v472 = vsel %vm353, %v467, 0
      %474 = vmatprep.subr.bf16.mxu0 0
      %475 = vmatpush1.bf16.xpose.msra.mxu0 %v472
      %476 = vmatprep.subr.bf16.mxu0 0
      %477 = vmatpush1.bf16.xpose.msra.mxu0 0
      %478 = vmatprep.subr.bf16.mxu0 0
      %479 = vmatpush1.bf16.xpose.msra.mxu0 0
      %480 = vmatprep.subr.bf16.mxu0 0
      %481 = vmatpush1.bf16.xpose.msra.mxu0 0
      %482 = vmatprep.subr.bf16.mxu0 0
      %483 = vmatpush1.bf16.xpose.msra.mxu0 0
      %484 = vmatprep.subr.bf16.mxu0 0
      %485 = vmatpush1.bf16.xpose.msra.mxu0 0
      %486 = vmatprep.subr.bf16.mxu0 0
      %487 = vmatpush1.bf16.xpose.msra.mxu0 0
      %488 = vmatprep.subr.bf16.mxu0 0
      %489 = vmatpush1.bf16.xpose.msra.mxu0 0
      %490 = vmatprep.subr.bf16.mxu0 0
      %491 = vmatpush1.bf16.xpose.msra.mxu0 0
      %492 = vmatprep.subr.bf16.mxu0 0
      %493 = vmatpush1.bf16.xpose.msra.mxu0 0
      %494 = vmatprep.subr.bf16.mxu0 0
      %495 = vmatpush1.bf16.xpose.msra.mxu0 0
      %496 = vmatprep.subr.bf16.mxu0 0
      %497 = vmatpush1.bf16.xpose.msra.mxu0 0
      %498 = vmatprep.subr.bf16.mxu0 0
      %499 = vmatpush1.bf16.xpose.msra.mxu0 0
      %500 = vmatprep.subr.bf16.mxu0 0
      %501 = vmatpush1.bf16.xpose.msra.mxu0 0
      %502 = vmatprep.subr.bf16.mxu0 0
      %503 = vmatpush1.bf16.xpose.msra.mxu0 0
      %504 = vmatprep.subr.bf16.mxu0 0
      %505 = vmatpush1.bf16.xpose.msra.mxu0 0
      %506 = vmatprep.mubr.bf16.mxu0 0
      %507 = vmatmul.mubr.bf16.gmra.mrb[0].mxu0 %v469
      %v508 = vpop.f32.mrb[0].mxu0
      %v509 = vadd.f32 0.0, %v508
      %v510 = vpop.f32.mrb[0].mxu0
      %v511 = vpop.f32.mrb[0].mxu0
      %v512 = vpop.f32.mrb[0].mxu0
      %513 = vdwg.mxu0
      %v514 = vsel %vm348, -inf, %v509
      %v515 = vsel %vm353, %v514, -inf
      %516 = vmax.xlane.f32.xlu0 %v515
      %v517 = vpop.xlane.xlu0 %516
      %v518 = vsub.f32 %v514, %v517
      %v519 = vmul.f32 %v518, 1.442695
      %v520 = vpow.pop %v519
      %v521 = vsel %vm353, %v520, 0.0
      %522 = vadd.xlane.f32.xlu0 %v521
      %v523 = vpop.xlane.xlu0 %522
      %v524 = vrcp.pop %v523
      %v525 = vpack.c.bf16 %v520, %v520
      %526 = vrot.lane.b32.xlu0 %v349, 56
      %v527 = vpop.permute.xlu0 %526
      %v529 = vsel %vm353, %v525, 0
      %v532 = vsel %vm417, %v527, 0
      %534 = vmatprep.subr.bf16.mxu0 0
      %535 = vmatpush1.bf16.msra.mxu0 %v532
      %536 = vmatprep.subr.bf16.mxu0 0
      %537 = vmatpush1.bf16.msra.mxu0 0
      %538 = vmatprep.subr.bf16.mxu0 0
      %539 = vmatpush1.bf16.msra.mxu0 0
      %540 = vmatprep.subr.bf16.mxu0 0
      %541 = vmatpush1.bf16.msra.mxu0 0
      %542 = vmatprep.subr.bf16.mxu0 0
      %543 = vmatpush1.bf16.msra.mxu0 0
      %544 = vmatprep.subr.bf16.mxu0 0
      %545 = vmatpush1.bf16.msra.mxu0 0
      %546 = vmatprep.subr.bf16.mxu0 0
      %547 = vmatpush1.bf16.msra.mxu0 0
      %548 = vmatprep.subr.bf16.mxu0 0
      %549 = vmatpush1.bf16.msra.mxu0 0
      %550 = vmatprep.subr.bf16.mxu0 0
      %551 = vmatpush1.bf16.msra.mxu0 0
      %552 = vmatprep.subr.bf16.mxu0 0
      %553 = vmatpush1.bf16.msra.mxu0 0
      %554 = vmatprep.subr.bf16.mxu0 0
      %555 = vmatpush1.bf16.msra.mxu0 0
      %556 = vmatprep.subr.bf16.mxu0 0
      %557 = vmatpush1.bf16.msra.mxu0 0
      %558 = vmatprep.subr.bf16.mxu0 0
      %559 = vmatpush1.bf16.msra.mxu0 0
      %560 = vmatprep.subr.bf16.mxu0 0
      %561 = vmatpush1.bf16.msra.mxu0 0
      %562 = vmatprep.subr.bf16.mxu0 0
      %563 = vmatpush1.bf16.msra.mxu0 0
      %564 = vmatprep.subr.bf16.mxu0 0
      %565 = vmatpush1.bf16.msra.mxu0 0
      %566 = vmatprep.mubr.bf16.mxu0 0
      %567 = vmatmul.mubr.bf16.gmra.mrb[0].mxu0 %v529
      %v568 = vpop.f32.mrb[0].mxu0
      %v569 = vadd.f32 0.0, %v568
      %v570 = vpop.f32.mrb[0].mxu0
      %v571 = vpop.f32.mrb[0].mxu0
      %v572 = vpop.f32.mrb[0].mxu0
      %573 = vdwg.mxu0
      %v574 = vmul.f32 %v569, %v524
      %v575 = vpack.c.bf16 %v574, %v574
      %v576 = vld [vmem:[%s3 + $0x4] sm:$0xf]
      %v578 = vsel %vm353, %v575, 0
      %v581 = vsel %vm417, %v576, 0
      %583 = vmatprep.subr.bf16.mxu0 0
      %584 = vmatpush1.bf16.msra.mxu0 %v581
      %585 = vmatprep.subr.bf16.mxu0 0
      %586 = vmatpush1.bf16.msra.mxu0 0
      %587 = vmatprep.subr.bf16.mxu0 0
      %588 = vmatpush1.bf16.msra.mxu0 0
      %589 = vmatprep.subr.bf16.mxu0 0
      %590 = vmatpush1.bf16.msra.mxu0 0
      %591 = vmatprep.subr.bf16.mxu0 0
      %592 = vmatpush1.bf16.msra.mxu0 0
      %593 = vmatprep.subr.bf16.mxu0 0
      %594 = vmatpush1.bf16.msra.mxu0 0
      %595 = vmatprep.subr.bf16.mxu0 0
      %596 = vmatpush1.bf16.msra.mxu0 0
      %597 = vmatprep.subr.bf16.mxu0 0
      %598 = vmatpush1.bf16.msra.mxu0 0
      %599 = vmatprep.subr.bf16.mxu0 0
      %600 = vmatpush1.bf16.msra.mxu0 0
      %601 = vmatprep.subr.bf16.mxu0 0
      %602 = vmatpush1.bf16.msra.mxu0 0
      %603 = vmatprep.subr.bf16.mxu0 0
      %604 = vmatpush1.bf16.msra.mxu0 0
      %605 = vmatprep.subr.bf16.mxu0 0
      %606 = vmatpush1.bf16.msra.mxu0 0
      %607 = vmatprep.subr.bf16.mxu0 0
      %608 = vmatpush1.bf16.msra.mxu0 0
      %609 = vmatprep.subr.bf16.mxu0 0
      %610 = vmatpush1.bf16.msra.mxu0 0
      %611 = vmatprep.subr.bf16.mxu0 0
      %612 = vmatpush1.bf16.msra.mxu0 0
      %613 = vmatprep.subr.bf16.mxu0 0
      %614 = vmatpush1.bf16.msra.mxu0 0
      %615 = vmatprep.mubr.bf16.mxu0 0
      %616 = vmatmul.mubr.bf16.gmra.mrb[0].mxu0 %v578
      %v617 = vpop.f32.mrb[0].mxu0
      %v618 = vadd.f32 0.0, %v617
      %v619 = vpop.f32.mrb[0].mxu0
      %v620 = vpop.f32.mrb[0].mxu0
      %v621 = vpop.f32.mrb[0].mxu0
      %622 = vdwg.mxu0
      %v624 = vsel %vm353, %v462, 0
      %v627 = vsel %vm417, %v463, 0
      %629 = vmatprep.subr.bf16.mxu0 0
      %630 = vmatpush1.bf16.msra.mxu0 %v627
      %631 = vmatprep.subr.bf16.mxu0 0
      %632 = vmatpush1.bf16.msra.mxu0 0
      %633 = vmatprep.subr.bf16.mxu0 0
      %634 = vmatpush1.bf16.msra.mxu0 0
      %635 = vmatprep.subr.bf16.mxu0 0
      %636 = vmatpush1.bf16.msra.mxu0 0
      %637 = vmatprep.subr.bf16.mxu0 0
      %638 = vmatpush1.bf16.msra.mxu0 0
      %639 = vmatprep.subr.bf16.mxu0 0
      %640 = vmatpush1.bf16.msra.mxu0 0
      %641 = vmatprep.subr.bf16.mxu0 0
      %642 = vmatpush1.bf16.msra.mxu0 0
      %643 = vmatprep.subr.bf16.mxu0 0
      %644 = vmatpush1.bf16.msra.mxu0 0
      %645 = vmatprep.subr.bf16.mxu0 0
      %646 = vmatpush1.bf16.msra.mxu0 0
      %647 = vmatprep.subr.bf16.mxu0 0
      %648 = vmatpush1.bf16.msra.mxu0 0
      %649 = vmatprep.subr.bf16.mxu0 0
      %650 = vmatpush1.bf16.msra.mxu0 0
      %651 = vmatprep.subr.bf16.mxu0 0
      %652 = vmatpush1.bf16.msra.mxu0 0
      %653 = vmatprep.subr.bf16.mxu0 0
      %654 = vmatpush1.bf16.msra.mxu0 0
      %655 = vmatprep.subr.bf16.mxu0 0
      %656 = vmatpush1.bf16.msra.mxu0 0
      %657 = vmatprep.subr.bf16.mxu0 0
      %658 = vmatpush1.bf16.msra.mxu0 0
      %659 = vmatprep.subr.bf16.mxu0 0
      %660 = vmatpush1.bf16.msra.mxu0 0
      %661 = vmatprep.mubr.bf16.mxu0 0
      %662 = vmatmul.mubr.bf16.gmra.mrb[0].mxu0 %v624
      %v663 = vpop.f32.mrb[0].mxu0
      %v664 = vadd.f32 %v618, %v663
      %v665 = vpop.f32.mrb[0].mxu0
      %v666 = vpop.f32.mrb[0].mxu0
      %v667 = vpop.f32.mrb[0].mxu0
      %668 = vdwg.mxu0
      %669 = vrot.lane.b32.xlu0 %v349, 112
      %v670 = vpop.permute.xlu0 %669
      %671 = vrot.lane.b32.xlu0 %v349, 80
      %v672 = vpop.permute.xlu0 %671
      %v674 = vsel %vm353, %v670, 0
      %v677 = vsel %vm353, %v672, 0
      %679 = vmatprep.subr.bf16.mxu0 0
      %680 = vmatpush1.bf16.xpose.msra.mxu0 %v677
      %681 = vmatprep.subr.bf16.mxu0 0
      %682 = vmatpush1.bf16.xpose.msra.mxu0 0
      %683 = vmatprep.subr.bf16.mxu0 0
      %684 = vmatpush1.bf16.xpose.msra.mxu0 0
      %685 = vmatprep.subr.bf16.mxu0 0
      %686 = vmatpush1.bf16.xpose.msra.mxu0 0
      %687 = vmatprep.subr.bf16.mxu0 0
      %688 = vmatpush1.bf16.xpose.msra.mxu0 0
      %689 = vmatprep.subr.bf16.mxu0 0
      %690 = vmatpush1.bf16.xpose.msra.mxu0 0
      %691 = vmatprep.subr.bf16.mxu0 0
      %692 = vmatpush1.bf16.xpose.msra.mxu0 0
      %693 = vmatprep.subr.bf16.mxu0 0
      %694 = vmatpush1.bf16.xpose.msra.mxu0 0
      %695 = vmatprep.subr.bf16.mxu0 0
      %696 = vmatpush1.bf16.xpose.msra.mxu0 0
      %697 = vmatprep.subr.bf16.mxu0 0
      %698 = vmatpush1.bf16.xpose.msra.mxu0 0
      %699 = vmatprep.subr.bf16.mxu0 0
      %700 = vmatpush1.bf16.xpose.msra.mxu0 0
      %701 = vmatprep.subr.bf16.mxu0 0
      %702 = vmatpush1.bf16.xpose.msra.mxu0 0
      %703 = vmatprep.subr.bf16.mxu0 0
      %704 = vmatpush1.bf16.xpose.msra.mxu0 0
      %705 = vmatprep.subr.bf16.mxu0 0
      %706 = vmatpush1.bf16.xpose.msra.mxu0 0
      %707 = vmatprep.subr.bf16.mxu0 0
      %708 = vmatpush1.bf16.xpose.msra.mxu0 0
      %709 = vmatprep.subr.bf16.mxu0 0
      %710 = vmatpush1.bf16.xpose.msra.mxu0 0
      %711 = vmatprep.mubr.bf16.mxu0 0
      %712 = vmatmul.mubr.bf16.gmra.mrb[0].mxu0 %v674
      %v713 = vpop.f32.mrb[0].mxu0
      %v714 = vadd.f32 0.0, %v713
      %v715 = vpop.f32.mrb[0].mxu0
      %v716 = vpop.f32.mrb[0].mxu0
      %v717 = vpop.f32.mrb[0].mxu0
      %718 = vdwg.mxu0
      %v719 = vsel %vm348, -inf, %v714
      %v720 = vsel %vm353, %v719, -inf
      %721 = vmax.xlane.f32.xlu0 %v720
      %v722 = vpop.xlane.xlu0 %721
      %v723 = vsub.f32 %v719, %v722
      %v724 = vmul.f32 %v723, 1.442695
      %v725 = vpow.pop %v724
      %v726 = vsel %vm353, %v725, 0.0
      %727 = vadd.xlane.f32.xlu0 %v726
      %v728 = vpop.xlane.xlu0 %727
      %v729 = vrcp.pop %v728
      %v730 = vpack.c.bf16 %v725, %v725
      %731 = vrot.lane.b32.xlu0 %v349, 48
      %v732 = vpop.permute.xlu0 %731
      %v734 = vsel %vm353, %v730, 0
      %v737 = vsel %vm417, %v732, 0
      %739 = vmatprep.subr.bf16.mxu0 0
      %740 = vmatpush1.bf16.msra.mxu0 %v737
      %741 = vmatprep.subr.bf16.mxu0 0
      %742 = vmatpush1.bf16.msra.mxu0 0
      %743 = vmatprep.subr.bf16.mxu0 0
      %744 = vmatpush1.bf16.msra.mxu0 0
      %745 = vmatprep.subr.bf16.mxu0 0
      %746 = vmatpush1.bf16.msra.mxu0 0
      %747 = vmatprep.subr.bf16.mxu0 0
      %748 = vmatpush1.bf16.msra.mxu0 0
      %749 = vmatprep.subr.bf16.mxu0 0
      %750 = vmatpush1.bf16.msra.mxu0 0
      %751 = vmatprep.subr.bf16.mxu0 0
      %752 = vmatpush1.bf16.msra.mxu0 0
      %753 = vmatprep.subr.bf16.mxu0 0
      %754 = vmatpush1.bf16.msra.mxu0 0
      %755 = vmatprep.subr.bf16.mxu0 0
      %756 = vmatpush1.bf16.msra.mxu0 0
      %757 = vmatprep.subr.bf16.mxu0 0
      %758 = vmatpush1.bf16.msra.mxu0 0
      %759 = vmatprep.subr.bf16.mxu0 0
      %760 = vmatpush1.bf16.msra.mxu0 0
      %761 = vmatprep.subr.bf16.mxu0 0
      %762 = vmatpush1.bf16.msra.mxu0 0
      %763 = vmatprep.subr.bf16.mxu0 0
      %764 = vmatpush1.bf16.msra.mxu0 0
      %765 = vmatprep.subr.bf16.mxu0 0
      %766 = vmatpush1.bf16.msra.mxu0 0
      %767 = vmatprep.subr.bf16.mxu0 0
      %768 = vmatpush1.bf16.msra.mxu0 0
      %769 = vmatprep.subr.bf16.mxu0 0
      %770 = vmatpush1.bf16.msra.mxu0 0
      %771 = vmatprep.mubr.bf16.mxu0 0
      %772 = vmatmul.mubr.bf16.gmra.mrb[0].mxu0 %v734
      %v773 = vpop.f32.mrb[0].mxu0
      %v774 = vadd.f32 0.0, %v773
      %v775 = vpop.f32.mrb[0].mxu0
      %v776 = vpop.f32.mrb[0].mxu0
      %v777 = vpop.f32.mrb[0].mxu0
      %778 = vdwg.mxu0
      %v779 = vmul.f32 %v774, %v729
      %v780 = vpack.c.bf16 %v779, %v779
      %v781 = vld [vmem:[%s3 + $0x8] sm:$0xf]
      %v783 = vsel %vm353, %v780, 0
      %v786 = vsel %vm417, %v781, 0
      %788 = vmatprep.subr.bf16.mxu0 0
      %789 = vmatpush1.bf16.msra.mxu0 %v786
      %790 = vmatprep.subr.bf16.mxu0 0
      %791 = vmatpush1.bf16.msra.mxu0 0
      %792 = vmatprep.subr.bf16.mxu0 0
      %793 = vmatpush1.bf16.msra.mxu0 0
      %794 = vmatprep.subr.bf16.mxu0 0
      %795 = vmatpush1.bf16.msra.mxu0 0
      %796 = vmatprep.subr.bf16.mxu0 0
      %797 = vmatpush1.bf16.msra.mxu0 0
      %798 = vmatprep.subr.bf16.mxu0 0
      %799 = vmatpush1.bf16.msra.mxu0 0
      %800 = vmatprep.subr.bf16.mxu0 0
      %801 = vmatpush1.bf16.msra.mxu0 0
      %802 = vmatprep.subr.bf16.mxu0 0
      %803 = vmatpush1.bf16.msra.mxu0 0
      %804 = vmatprep.subr.bf16.mxu0 0
      %805 = vmatpush1.bf16.msra.mxu0 0
      %806 = vmatprep.subr.bf16.mxu0 0
      %807 = vmatpush1.bf16.msra.mxu0 0
      %808 = vmatprep.subr.bf16.mxu0 0
      %809 = vmatpush1.bf16.msra.mxu0 0
      %810 = vmatprep.subr.bf16.mxu0 0
      %811 = vmatpush1.bf16.msra.mxu0 0
      %812 = vmatprep.subr.bf16.mxu0 0
      %813 = vmatpush1.bf16.msra.mxu0 0
      %814 = vmatprep.subr.bf16.mxu0 0
      %815 = vmatpush1.bf16.msra.mxu0 0
      %816 = vmatprep.subr.bf16.mxu0 0
      %817 = vmatpush1.bf16.msra.mxu0 0
      %818 = vmatprep.subr.bf16.mxu0 0
      %819 = vmatpush1.bf16.msra.mxu0 0
      %820 = vmatprep.mubr.bf16.mxu0 0
      %821 = vmatmul.mubr.bf16.gmra.mrb[0].mxu0 %v783
      %v822 = vpop.f32.mrb[0].mxu0
      %v823 = vadd.f32 0.0, %v822
      %v824 = vpop.f32.mrb[0].mxu0
      %v825 = vpop.f32.mrb[0].mxu0
      %v826 = vpop.f32.mrb[0].mxu0
      %827 = vdwg.mxu0
      %v828 = vadd.f32 %v664, %v823
      %829 = vrot.lane.b32.xlu0 %v349, 104
      %v830 = vpop.permute.xlu0 %829
      %831 = vrot.lane.b32.xlu0 %v349, 72
      %v832 = vpop.permute.xlu0 %831
      %v834 = vsel %vm353, %v830, 0
      %v837 = vsel %vm353, %v832, 0
      %839 = vmatprep.subr.bf16.mxu0 0
      %840 = vmatpush1.bf16.xpose.msra.mxu0 %v837
      %841 = vmatprep.subr.bf16.mxu0 0
      %842 = vmatpush1.bf16.xpose.msra.mxu0 0
      %843 = vmatprep.subr.bf16.mxu0 0
      %844 = vmatpush1.bf16.xpose.msra.mxu0 0
      %845 = vmatprep.subr.bf16.mxu0 0
      %846 = vmatpush1.bf16.xpose.msra.mxu0 0
      %847 = vmatprep.subr.bf16.mxu0 0
      %848 = vmatpush1.bf16.xpose.msra.mxu0 0
      %849 = vmatprep.subr.bf16.mxu0 0
      %850 = vmatpush1.bf16.xpose.msra.mxu0 0
      %851 = vmatprep.subr.bf16.mxu0 0
      %852 = vmatpush1.bf16.xpose.msra.mxu0 0
      %853 = vmatprep.subr.bf16.mxu0 0
      %854 = vmatpush1.bf16.xpose.msra.mxu0 0
      %855 = vmatprep.subr.bf16.mxu0 0
      %856 = vmatpush1.bf16.xpose.msra.mxu0 0
      %857 = vmatprep.subr.bf16.mxu0 0
      %858 = vmatpush1.bf16.xpose.msra.mxu0 0
      %859 = vmatprep.subr.bf16.mxu0 0
      %860 = vmatpush1.bf16.xpose.msra.mxu0 0
      %861 = vmatprep.subr.bf16.mxu0 0
      %862 = vmatpush1.bf16.xpose.msra.mxu0 0
      %863 = vmatprep.subr.bf16.mxu0 0
      %864 = vmatpush1.bf16.xpose.msra.mxu0 0
      %865 = vmatprep.subr.bf16.mxu0 0
      %866 = vmatpush1.bf16.xpose.msra.mxu0 0
      %867 = vmatprep.subr.bf16.mxu0 0
      %868 = vmatpush1.bf16.xpose.msra.mxu0 0
      %869 = vmatprep.subr.bf16.mxu0 0
      %870 = vmatpush1.bf16.xpose.msra.mxu0 0
      %871 = vmatprep.mubr.bf16.mxu0 0
      %872 = vmatmul.mubr.bf16.gmra.mrb[0].mxu0 %v834
      %v873 = vpop.f32.mrb[0].mxu0
      %v874 = vadd.f32 0.0, %v873
      %v875 = vpop.f32.mrb[0].mxu0
      %v876 = vpop.f32.mrb[0].mxu0
      %v877 = vpop.f32.mrb[0].mxu0
      %878 = vdwg.mxu0
      %v879 = vsel %vm348, -inf, %v874
      %v880 = vsel %vm353, %v879, -inf
      %881 = vmax.xlane.f32.xlu0 %v880
      %v882 = vpop.xlane.xlu0 %881
      %v883 = vsub.f32 %v879, %v882
      %v884 = vmul.f32 %v883, 1.442695
      %v885 = vpow.pop %v884
      %v886 = vsel %vm353, %v885, 0.0
      %887 = vadd.xlane.f32.xlu0 %v886
      %v888 = vpop.xlane.xlu0 %887
      %v889 = vrcp.pop %v888
      %v890 = vpack.c.bf16 %v885, %v885
      %891 = vrot.lane.b32.xlu0 %v349, 40
      %v892 = vpop.permute.xlu0 %891
      %v894 = vsel %vm353, %v890, 0
      %v897 = vsel %vm417, %v892, 0
      %899 = vmatprep.subr.bf16.mxu0 0
      %900 = vmatpush1.bf16.msra.mxu0 %v897
      %901 = vmatprep.subr.bf16.mxu0 0
      %902 = vmatpush1.bf16.msra.mxu0 0
      %903 = vmatprep.subr.bf16.mxu0 0
      %904 = vmatpush1.bf16.msra.mxu0 0
      %905 = vmatprep.subr.bf16.mxu0 0
      %906 = vmatpush1.bf16.msra.mxu0 0
      %907 = vmatprep.subr.bf16.mxu0 0
      %908 = vmatpush1.bf16.msra.mxu0 0
      %909 = vmatprep.subr.bf16.mxu0 0
      %910 = vmatpush1.bf16.msra.mxu0 0
      %911 = vmatprep.subr.bf16.mxu0 0
      %912 = vmatpush1.bf16.msra.mxu0 0
      %913 = vmatprep.subr.bf16.mxu0 0
      %914 = vmatpush1.bf16.msra.mxu0 0
      %915 = vmatprep.subr.bf16.mxu0 0
      %916 = vmatpush1.bf16.msra.mxu0 0
      %917 = vmatprep.subr.bf16.mxu0 0
      %918 = vmatpush1.bf16.msra.mxu0 0
      %919 = vmatprep.subr.bf16.mxu0 0
      %920 = vmatpush1.bf16.msra.mxu0 0
      %921 = vmatprep.subr.bf16.mxu0 0
      %922 = vmatpush1.bf16.msra.mxu0 0
      %923 = vmatprep.subr.bf16.mxu0 0
      %924 = vmatpush1.bf16.msra.mxu0 0
      %925 = vmatprep.subr.bf16.mxu0 0
      %926 = vmatpush1.bf16.msra.mxu0 0
      %927 = vmatprep.subr.bf16.mxu0 0
      %928 = vmatpush1.bf16.msra.mxu0 0
      %929 = vmatprep.subr.bf16.mxu0 0
      %930 = vmatpush1.bf16.msra.mxu0 0
      %931 = vmatprep.mubr.bf16.mxu0 0
      %932 = vmatmul.mubr.bf16.gmra.mrb[0].mxu0 %v894
      %v933 = vpop.f32.mrb[0].mxu0
      %v934 = vadd.f32 0.0, %v933
      %v935 = vpop.f32.mrb[0].mxu0
      %v936 = vpop.f32.mrb[0].mxu0
      %v937 = vpop.f32.mrb[0].mxu0
      %938 = vdwg.mxu0
      %v939 = vmul.f32 %v934, %v889
      %v940 = vpack.c.bf16 %v939, %v939
      %v941 = vld [vmem:[%s3 + $0xc] sm:$0xf]
      %v943 = vsel %vm353, %v940, 0
      %v946 = vsel %vm417, %v941, 0
      %948 = vmatprep.subr.bf16.mxu0 0
      %949 = vmatpush1.bf16.msra.mxu0 %v946
      %950 = vmatprep.subr.bf16.mxu0 0
      %951 = vmatpush1.bf16.msra.mxu0 0
      %952 = vmatprep.subr.bf16.mxu0 0
      %953 = vmatpush1.bf16.msra.mxu0 0
      %954 = vmatprep.subr.bf16.mxu0 0
      %955 = vmatpush1.bf16.msra.mxu0 0
      %956 = vmatprep.subr.bf16.mxu0 0
      %957 = vmatpush1.bf16.msra.mxu0 0
      %958 = vmatprep.subr.bf16.mxu0 0
      %959 = vmatpush1.bf16.msra.mxu0 0
      %960 = vmatprep.subr.bf16.mxu0 0
      %961 = vmatpush1.bf16.msra.mxu0 0
      %962 = vmatprep.subr.bf16.mxu0 0
      %963 = vmatpush1.bf16.msra.mxu0 0
      %964 = vmatprep.subr.bf16.mxu0 0
      %965 = vmatpush1.bf16.msra.mxu0 0
      %966 = vmatprep.subr.bf16.mxu0 0
      %967 = vmatpush1.bf16.msra.mxu0 0
      %968 = vmatprep.subr.bf16.mxu0 0
      %969 = vmatpush1.bf16.msra.mxu0 0
      %970 = vmatprep.subr.bf16.mxu0 0
      %971 = vmatpush1.bf16.msra.mxu0 0
      %972 = vmatprep.subr.bf16.mxu0 0
      %973 = vmatpush1.bf16.msra.mxu0 0
      %974 = vmatprep.subr.bf16.mxu0 0
      %975 = vmatpush1.bf16.msra.mxu0 0
      %976 = vmatprep.subr.bf16.mxu0 0
      %977 = vmatpush1.bf16.msra.mxu0 0
      %978 = vmatprep.subr.bf16.mxu0 0
      %979 = vmatpush1.bf16.msra.mxu0 0
      %980 = vmatprep.mubr.bf16.mxu0 0
      %981 = vmatmul.mubr.bf16.gmra.mrb[0].mxu0 %v943
      %v982 = vpop.f32.mrb[0].mxu0
      %v983 = vadd.f32 0.0, %v982
      %v984 = vpop.f32.mrb[0].mxu0
      %v985 = vpop.f32.mrb[0].mxu0
      %v986 = vpop.f32.mrb[0].mxu0
      %987 = vdwg.mxu0
      %v988 = vadd.f32 %v828, %v983
      %v989 = vadd.f32 %v275, %v988
      %v990 = vld [vmem:[%s4] sm:$0x1]
      %v992 = vlaneseq
      %v993 = vshrl.u32 %v992, 7
      %v994 = vsub.s32 0, %v993
      %v995 = vrot.slane %v990, %v994
      %v997 = vadd.f32 %v989, %v995
      %v998 = vld [vmem:[%s5] sm:$0x1]
      %v999 = vld [vmem:[%s6] sm:$0x1]
      %v1000 = vsel %vm300, %v997, 0.0
      %1001 = vadd.xlane.f32.xlu0 %v1000
      %v1002 = vpop.xlane.xlu0 %1001
      %v1003 = vrcp.pop 32.0
      %v1004 = vmul.f32 %v1002, %v1003
      %v1005 = vsub.f32 %v997, %v1004
      %v1006 = vmul.f32 %v1005, %v1005
      %v1007 = vsel %vm300, %v1006, 0.0
      %1008 = vadd.xlane.f32.xlu0 %v1007
      %v1009 = vpop.xlane.xlu0 %1008
      %v1010 = vmul.f32 %v1009, %v1003
      %v1011 = vadd.f32 %v1010, 1e-05
      %v1012 = vrsqrt.pop %v1011
      %v1013 = vmul.f32 %v1005, %v1012
      %v1015 = vlaneseq
      %v1016 = vshrl.u32 %v1015, 7
      %v1017 = vsub.s32 0, %v1016
      %v1018 = vrot.slane %v998, %v1017
      %v1020 = vmul.f32 %v1013, %v1018
      %v1022 = vlaneseq
      %v1023 = vshrl.u32 %v1022, 7
      %v1024 = vsub.s32 0, %v1023
      %v1025 = vrot.slane %v999, %v1024
      %v1027 = vadd.f32 %v1020, %v1025
      %1028 = vst.msk [vmem:[%s273] sm:$0xff] %vm300, %v1027
      %p1029 = scmp.lt.s32.totalorder %s18, 1
      %s1030 = scalar_select %p1029, %s18, 1
      %s1031 = smul.addr %s1030, 8
      %s1032 = scalar_lea.vmem %s7, %s1031
      // Predicated region
      $region49: #{vanilla_transformer_forward.16} parent=47 // pred_check
        %p1033 = pneg %p188
      $region50: #{vanilla_transformer_forward.16} parent=47 // pred_check_branch
        %1035 = sbr.rel (%p1033) target = $region52
      $region51: #{vanilla_transformer_forward.16} parent=47 // pred_region
        _
      $region52: #{vanilla_transformer_forward.16} parent=47 // pred_fallthru
        _
    $region48: #{vanilla_transformer_forward.16} parent=5 // pred_fallthru
      _
    %p1036 = scmp.le.s32.totalorder 2, %s13
    // Predicated region
    $region53: #{vanilla_transformer_forward.16} parent=5 // pred_check
      %p1037 = pneg %p1036
    $region54: #{vanilla_transformer_forward.16} parent=5 // pred_check_branch
      %1039 = sbr.rel (%p1037) target = $region56
    $region55: #{vanilla_transformer_forward.16} parent=5 // pred_region
      %s1040 = ssub.s32 %s13, 2
      // Predicated region
      $region57: #{vanilla_transformer_forward.16} parent=55 // pred_check
        %p1041 = pneg %p194
      $region58: #{vanilla_transformer_forward.16} parent=55 // pred_check_branch
        %1043 = sbr.rel (%p1041) target = $region60
      $region59: #{vanilla_transformer_forward.16} parent=55 // pred_region
        %p1044 = scmp.lt.s32.totalorder %s19, 1
        %s1045 = scalar_select %p1044, %s19, 1
        %s1046 = smul.addr %s1045, 8
        %s1047 = scalar_lea.vmem %s7, %s1046
      $region60: #{vanilla_transformer_forward.16} parent=55 // pred_fallthru
        _
    $region56: #{vanilla_transformer_forward.16} parent=5 // pred_fallthru
      _
  $region6: #{vanilla_transformer_forward.16} parent=0 // loop_footer
    %s17 = sadd.s32 1, %s13
  $region7: #{vanilla_transformer_forward.16} parent=0 // loop_footer_branch
    %12 = sbr.rel target = $region3
  $region8: #{vanilla_transformer_forward.16} parent=0 // loop_exit
    _

// kernel: vanilla_transformer_forward.27
$region0: #{vanilla_transformer_forward.27}
  #allocation0 [shape = 'u32[]', space=smem, size = 0x4, offset = 0x4, fixed_abs, tag = 'smem constant byte address 0x4 - core index']
  #allocation1 [shape = 'u32[144,128]{1,0:T(1,128)}', space=vmem, size = 0x12000, scoped, tag = 'internal scratch']
  %s0 = inlined_call_operand.vmem [shape: f32[16,32], index: 0, kind: input, shape index: {}]
  %s1 = inlined_call_operand.vmem [shape: f32[16,32], index: 1, kind: input, shape index: {}]
  %s2 = inlined_call_operand.vmem [shape: f32[1,32], index: 2, kind: input, shape index: {}]
  %s3 = inlined_call_operand.vmem [shape: f32[1,32], index: 3, kind: input, shape index: {}]
  %s4 = inlined_call_operand.vmem [shape: f32[1,32], index: 4, kind: input, shape index: {}]
  %s5 = inlined_call_operand.vmem [shape: f32[1,32], index: 5, kind: input, shape index: {}]
  %s6 = inlined_call_operand.vmem [shape: bf16[32,128], index: 6, kind: input, shape index: {}]
  %s7 = inlined_call_operand.vmem [shape: f32[1,128], index: 7, kind: input, shape index: {}]
  %s8 = inlined_call_operand.vmem [shape: f32[16,128], index: 8, kind: output, shape index: {}]
  %s9 = sld [smem:[#allocation0]]
  $region42: #{vanilla_transformer_forward.27} parent=0
    _
  %s11 = ssub.s32 1, %s9
  %s12 = scalar_select 0, %s11, %s9
  // Predicated region
  $region2: #{vanilla_transformer_forward.27} parent=0 // pred_check
    _
  $region3: #{vanilla_transformer_forward.27} parent=0 // pred_check_branch
    %14 = sbr.rel (0) target = $region5
  $region4: #{vanilla_transformer_forward.27} parent=0 // pred_region
    _
  $region5: #{vanilla_transformer_forward.27} parent=0 // pred_fallthru
    _
  // Predicated region
  $region6: #{vanilla_transformer_forward.27} parent=0 // pred_check
    _
  $region7: #{vanilla_transformer_forward.27} parent=0 // pred_check_branch
    %16 = sbr.rel (0) target = $region9
  $region8: #{vanilla_transformer_forward.27} parent=0 // pred_region
    _
  $region9: #{vanilla_transformer_forward.27} parent=0 // pred_fallthru
    _
  // Predicated region
  $region10: #{vanilla_transformer_forward.27} parent=0 // pred_check
    _
  $region11: #{vanilla_transformer_forward.27} parent=0 // pred_check_branch
    %18 = sbr.rel (0) target = $region13
  $region12: #{vanilla_transformer_forward.27} parent=0 // pred_region
    _
  $region13: #{vanilla_transformer_forward.27} parent=0 // pred_fallthru
    _
  // Predicated region
  $region14: #{vanilla_transformer_forward.27} parent=0 // pred_check
    _
  $region15: #{vanilla_transformer_forward.27} parent=0 // pred_check_branch
    %20 = sbr.rel (0) target = $region17
  $region16: #{vanilla_transformer_forward.27} parent=0 // pred_region
    _
  $region17: #{vanilla_transformer_forward.27} parent=0 // pred_fallthru
    _
  // Predicated region
  $region18: #{vanilla_transformer_forward.27} parent=0 // pred_check
    _
  $region19: #{vanilla_transformer_forward.27} parent=0 // pred_check_branch
    %22 = sbr.rel (0) target = $region21
  $region20: #{vanilla_transformer_forward.27} parent=0 // pred_region
    _
  $region21: #{vanilla_transformer_forward.27} parent=0 // pred_fallthru
    _
  // Predicated region
  $region22: #{vanilla_transformer_forward.27} parent=0 // pred_check
    _
  $region23: #{vanilla_transformer_forward.27} parent=0 // pred_check_branch
    %24 = sbr.rel (0) target = $region25
  $region24: #{vanilla_transformer_forward.27} parent=0 // pred_region
    _
  $region25: #{vanilla_transformer_forward.27} parent=0 // pred_fallthru
    _
  // Predicated region
  $region26: #{vanilla_transformer_forward.27} parent=0 // pred_check
    _
  $region27: #{vanilla_transformer_forward.27} parent=0 // pred_check_branch
    %26 = sbr.rel (0) target = $region29
  $region28: #{vanilla_transformer_forward.27} parent=0 // pred_region
    _
  $region29: #{vanilla_transformer_forward.27} parent=0 // pred_fallthru
    _
  // Predicated region
  $region30: #{vanilla_transformer_forward.27} parent=0 // pred_check
    _
  $region31: #{vanilla_transformer_forward.27} parent=0 // pred_check_branch
    %28 = sbr.rel (0) target = $region33
  $region32: #{vanilla_transformer_forward.27} parent=0 // pred_region
    _
  $region33: #{vanilla_transformer_forward.27} parent=0 // pred_fallthru
    _
  %v30 = vld [vmem:[%s0] sm:$0xff]
  %v31 = vld [vmem:[%s0 + $0x8] sm:$0xff]
  %v32 = vld [vmem:[%s2] sm:$0x1]
  %v33 = vld [vmem:[%s3] sm:$0x1]
  %vm34 = vcmask 261120
  %v35 = vsel %vm34, %v30, 0.0
  %36 = vadd.xlane.f32.xlu0 %v35
  %v37 = vpop.xlane.xlu0 %36
  %v38 = vsel %vm34, %v31, 0.0
  %39 = vadd.xlane.f32.xlu0 %v38
  %v40 = vpop.xlane.xlu0 %39
  %v41 = vrcp.pop 32.0
  %v42 = vmul.f32 %v37, %v41
  %v43 = vmul.f32 %v40, %v41
  %v44 = vsub.f32 %v30, %v42
  %v45 = vsub.f32 %v31, %v43
  %v46 = vmul.f32 %v44, %v44
  %v47 = vmul.f32 %v45, %v45
  %v48 = vsel %vm34, %v46, 0.0
  %49 = vadd.xlane.f32.xlu0 %v48
  %v50 = vpop.xlane.xlu0 %49
  %v51 = vsel %vm34, %v47, 0.0
  %52 = vadd.xlane.f32.xlu0 %v51
  %v53 = vpop.xlane.xlu0 %52
  %v54 = vmul.f32 %v50, %v41
  %v55 = vmul.f32 %v53, %v41
  %v56 = vadd.f32 %v54, 1e-05
  %v57 = vadd.f32 %v55, 1e-05
  %v58 = vrsqrt.pop %v56
  %v59 = vrsqrt.pop %v57
  %v60 = vmul.f32 %v44, %v58
  %v61 = vmul.f32 %v45, %v59
  %v63 = vlaneseq
  %v64 = vshrl.u32 %v63, 7
  %v65 = vsub.s32 0, %v64
  %v66 = vrot.slane %v32, %v65
  %v68 = vmul.f32 %v60, %v66
  %v69 = vmul.f32 %v61, %v66
  %v71 = vlaneseq
  %v72 = vshrl.u32 %v71, 7
  %v73 = vsub.s32 0, %v72
  %v74 = vrot.slane %v33, %v73
  %v76 = vadd.f32 %v68, %v74
  %v77 = vadd.f32 %v69, %v74
  %v78 = vld [vmem:[%s1] sm:$0xff]
  %v79 = vld [vmem:[%s1 + $0x8] sm:$0xff]
  %v80 = vadd.f32 %v76, %v78
  %v81 = vadd.f32 %v77, %v79
  %v82 = vld [vmem:[%s4] sm:$0x1]
  %v83 = vld [vmem:[%s5] sm:$0x1]
  %v84 = vsel %vm34, %v80, 0.0
  %85 = vadd.xlane.f32.xlu0 %v84
  %v86 = vpop.xlane.xlu0 %85
  %v87 = vsel %vm34, %v81, 0.0
  %88 = vadd.xlane.f32.xlu0 %v87
  %v89 = vpop.xlane.xlu0 %88
  %v90 = vmul.f32 %v86, %v41
  %v91 = vmul.f32 %v89, %v41
  %v92 = vsub.f32 %v80, %v90
  %v93 = vsub.f32 %v81, %v91
  %v94 = vmul.f32 %v92, %v92
  %v95 = vmul.f32 %v93, %v93
  %v96 = vsel %vm34, %v94, 0.0
  %97 = vadd.xlane.f32.xlu0 %v96
  %v98 = vpop.xlane.xlu0 %97
  %v99 = vsel %vm34, %v95, 0.0
  %100 = vadd.xlane.f32.xlu0 %v99
  %v101 = vpop.xlane.xlu0 %100
  %v102 = vmul.f32 %v98, %v41
  %v103 = vmul.f32 %v101, %v41
  %v104 = vadd.f32 %v102, 1e-05
  %v105 = vadd.f32 %v103, 1e-05
  %v106 = vrsqrt.pop %v104
  %v107 = vrsqrt.pop %v105
  %v108 = vmul.f32 %v92, %v106
  %v109 = vmul.f32 %v93, %v107
  %v111 = vlaneseq
  %v112 = vshrl.u32 %v111, 7
  %v113 = vsub.s32 0, %v112
  %v114 = vrot.slane %v82, %v113
  %v116 = vmul.f32 %v108, %v114
  %v117 = vmul.f32 %v109, %v114
  %v119 = vlaneseq
  %v120 = vshrl.u32 %v119, 7
  %v121 = vsub.s32 0, %v120
  %v122 = vrot.slane %v83, %v121
  %v124 = vadd.f32 %v116, %v122
  %v125 = vadd.f32 %v117, %v122
  %v126 = vpack.c.bf16 %v125, %v124
  %v127 = vld [vmem:[%s6] sm:$0xf]
  %v128 = vld [vmem:[%s6 + $0x4] sm:$0xf]
  %v129 = vld [vmem:[%s6 + $0x8] sm:$0xf]
  %v130 = vld [vmem:[%s6 + $0xc] sm:$0xf]
  %v131 = vld [vmem:[%s7] sm:$0x1]
  %v133 = vlaneseq
  %v134 = vshrl.u32 %v133, 7
  %v135 = vsub.s32 0, %v134
  %v136 = vrot.slane %v131, %v135
  %v142 = vunpack.c.l.b16 %v127
  %v143 = vunpack.c.l.b16 %v128
  %v144 = vunpack.c.l.b16 %v129
  %v145 = vunpack.c.l.b16 %v130
  %v146 = vpack.c.b16 %v143, %v142
  %v147 = vpack.c.b16 %v145, %v144
  %v151 = vsel %vm34, %v126, 0
  %153 = vmatprep.subr.bf16.mxu0 0
  %154 = vmatpush1.bf16.msra.mxu0 %v146
  %155 = vmatprep.subr.bf16.mxu0 0
  %156 = vmatpush1.bf16.msra.mxu0 %v147
  %157 = vmatprep.subr.bf16.mxu0 0
  %158 = vmatpush1.bf16.msra.mxu0 0
  %159 = vmatprep.subr.bf16.mxu0 0
  %160 = vmatpush1.bf16.msra.mxu0 0
  %161 = vmatprep.subr.bf16.mxu0 0
  %162 = vmatpush1.bf16.msra.mxu0 0
  %163 = vmatprep.subr.bf16.mxu0 0
  %164 = vmatpush1.bf16.msra.mxu0 0
  %165 = vmatprep.subr.bf16.mxu0 0
  %166 = vmatpush1.bf16.msra.mxu0 0
  %167 = vmatprep.subr.bf16.mxu0 0
  %168 = vmatpush1.bf16.msra.mxu0 0
  %169 = vmatprep.subr.bf16.mxu0 0
  %170 = vmatpush1.bf16.msra.mxu0 0
  %171 = vmatprep.subr.bf16.mxu0 0
  %172 = vmatpush1.bf16.msra.mxu0 0
  %173 = vmatprep.subr.bf16.mxu0 0
  %174 = vmatpush1.bf16.msra.mxu0 0
  %175 = vmatprep.subr.bf16.mxu0 0
  %176 = vmatpush1.bf16.msra.mxu0 0
  %177 = vmatprep.subr.bf16.mxu0 0
  %178 = vmatpush1.bf16.msra.mxu0 0
  %179 = vmatprep.subr.bf16.mxu0 0
  %180 = vmatpush1.bf16.msra.mxu0 0
  %181 = vmatprep.subr.bf16.mxu0 0
  %182 = vmatpush1.bf16.msra.mxu0 0
  %183 = vmatprep.subr.bf16.mxu0 0
  %184 = vmatpush1.bf16.msra.mxu0 0
  %185 = vmatprep.mubr.bf16.mxu0 0
  %186 = vmatmul.mubr.bf16.gmra.mrb[0].mxu0 %v151
  %v187 = vpop.f32.mrb[0].mxu0
  %v188 = vadd.f32 %v136, %v187
  %v189 = vpop.f32.mrb[0].mxu0
  %v190 = vpop.f32.mrb[0].mxu0
  %v191 = vadd.f32 %v136, %v190
  %v192 = vpop.f32.mrb[0].mxu0
  %193 = vdwg.mxu0
  %194 = vst [vmem:[%s8] sm:$0xff] %v188
  %195 = vst [vmem:[%s8 + $0x8] sm:$0xff] %v191
  // Predicated region
  $region34: #{vanilla_transformer_forward.27} parent=0 // pred_check
    _
  $region35: #{vanilla_transformer_forward.27} parent=0 // pred_check_branch
    %197 = sbr.rel (0) target = $region37
  $region36: #{vanilla_transformer_forward.27} parent=0 // pred_region
    _
  $region37: #{vanilla_transformer_forward.27} parent=0 // pred_fallthru
    _
  // Predicated region
  $region38: #{vanilla_transformer_forward.27} parent=0 // pred_check
    _
  $region39: #{vanilla_transformer_forward.27} parent=0 // pred_check_branch
    %199 = sbr.rel (0) target = $region41
  $region40: #{vanilla_transformer_forward.27} parent=0 // pred_region
    _
  $region41: #{vanilla_transformer_forward.27} parent=0 // pred_fallthru
    _

// kernel: vanilla_transformer_forward.22
$region0: #{vanilla_transformer_forward.22}
  #allocation0 [shape = 'u32[]', space=smem, size = 0x4, offset = 0x4, fixed_abs, tag = 'smem constant byte address 0x4 - core index']
  #allocation1 [shape = 'u32[144,128]{1,0:T(1,128)}', space=vmem, size = 0x12000, scoped, tag = 'internal scratch']
  %s0 = inlined_call_operand.vmem [shape: f32[2,8,32], index: 0, kind: input, shape index: {}]
  %s1 = inlined_call_operand.vmem [shape: f32[2,8,32], index: 1, kind: input, shape index: {}]
  %s2 = inlined_call_operand.vmem [shape: bf16[32,32], index: 2, kind: input, shape index: {}]
  %s3 = inlined_call_operand.vmem [shape: f32[1,32], index: 3, kind: input, shape index: {}]
  %s4 = inlined_call_operand.vmem [shape: bf16[32,64], index: 4, kind: input, shape index: {}]
  %s5 = inlined_call_operand.vmem [shape: f32[1,64], index: 5, kind: input, shape index: {}]
  %s6 = inlined_call_operand.vmem [shape: bf16[32,32], index: 6, kind: input, shape index: {}]
  %s7 = inlined_call_operand.vmem [shape: f32[1,32], index: 7, kind: input, shape index: {}]
  %s8 = inlined_call_operand.vmem [shape: f32[1,32], index: 8, kind: input, shape index: {}]
  %s9 = inlined_call_operand.vmem [shape: f32[1,32], index: 9, kind: input, shape index: {}]
  %s10 = inlined_call_operand.vmem [shape: f32[2,8,32], index: 10, kind: output, shape index: {}]
  %s11 = sld [smem:[#allocation0]]
  $region73: #{vanilla_transformer_forward.22} parent=0
    _
  %s13 = ssub.s32 1, %s11
  %s14 = scalar_select 0, %s13, %s11
  loop: start=0, step=1, limit=4
  $region2: #{vanilla_transformer_forward.22} parent=0 // loop_pre_header
    _
  $region3: #{vanilla_transformer_forward.22} parent=0 // loop_header
    %s16 = sphi 0, %s20
    %p17 = scmp.ge.s32.totalorder %s16, 4
    %s26 = sphi 0, %s28
    %s29 = sphi 0, %s26
    %s30 = sphi 0, %s29
    %s46 = sphi 0, %s30
    %s52 = sphi 0, %s54
    %s55 = sphi 0, %s52
    %s56 = sphi 0, %s55
    %s72 = sphi 0, %s56
    %s76 = sphi 0, %s76
    %s78 = sphi 0, %s76
    %s79 = sphi 0, %s78
    %s93 = sphi 0, %s79
    %s97 = sphi 0, %s97
    %s99 = sphi 0, %s97
    %s100 = sphi 0, %s99
    %s114 = sphi 0, %s100
    %s118 = sphi 0, %s118
    %s120 = sphi 0, %s118
    %s121 = sphi 0, %s120
    %s135 = sphi 0, %s121
    %s139 = sphi 0, %s139
    %s141 = sphi 0, %s139
    %s142 = sphi 0, %s141
    %s156 = sphi 0, %s142
    %s160 = sphi 0, %s160
    %s162 = sphi 0, %s160
    %s163 = sphi 0, %s162
    %s177 = sphi 0, %s163
    %s181 = sphi 0, %s181
    %s183 = sphi 0, %s181
    %s184 = sphi 0, %s183
    %s198 = sphi 0, %s184
    %s202 = sphi 0, %s202
    %s204 = sphi 0, %s202
    %s205 = sphi 0, %s204
    %s219 = sphi 0, %s205
    %s223 = sphi 0, %s223
    %s225 = sphi 0, %s223
    %s226 = sphi 0, %s225
    %s240 = sphi 0, %s226
    %s246 = sphi 0, %s248
    %s249 = sphi 0, %s246
    %s250 = sphi 0, %s249
    %s266 = sphi 0, %s250
  $region4: #{vanilla_transformer_forward.22} parent=0 // loop_header_branch
    %19 = sbr.rel (%p17) target = $region8
  $region5: #{vanilla_transformer_forward.22} parent=0 // loop_body
    %s21 = ssub.s32 %s16, 1
    %s22 = ssub.s32 %s16, 2
    %s23 = sadd.s32 %s16, 1
    %s24 = ssub.s32 %s16, %s23
    %p25 = scmp.eq.s32.totalorder %s24, 0
    %s27 = sadd.s32 %s26, 1
    %s28 = scalar_select %p25, %s26, %s27
    %p31 = pneg %p25
    %p32 = scmp.eq.s32.totalorder %s16, 1
    %p33 = por %p31, %p32
    %p34 = scmp.ne.s32.totalorder %s26, %s29
    %p35 = scmp.eq.s32.totalorder %s16, 0
    %p36 = por %p34, %p35
    %p37 = scmp.ne.s32.totalorder %s26, %s29
    %p38 = scmp.eq.s32.totalorder %s21, 1
    %p39 = por %p37, %p38
    %p40 = scmp.ne.s32.totalorder %s29, %s30
    %p41 = scmp.eq.s32.totalorder %s21, 0
    %p42 = por %p40, %p41
    %p43 = scmp.ne.s32.totalorder %s29, %s30
    %p44 = scmp.eq.s32.totalorder %s22, 1
    %p45 = por %p43, %p44
    %p47 = scmp.ne.s32.totalorder %s30, %s46
    %p48 = scmp.eq.s32.totalorder %s22, 0
    %p49 = por %p47, %p48
    %s50 = ssub.s32 %s16, %s23
    %p51 = scmp.eq.s32.totalorder %s50, 0
    %s53 = sadd.s32 %s52, 1
    %s54 = scalar_select %p51, %s52, %s53
    %p57 = pneg %p51
    %p58 = scmp.eq.s32.totalorder %s16, 1
    %p59 = por %p57, %p58
    %p60 = scmp.ne.s32.totalorder %s52, %s55
    %p61 = scmp.eq.s32.totalorder %s16, 0
    %p62 = por %p60, %p61
    %p63 = scmp.ne.s32.totalorder %s52, %s55
    %p64 = scmp.eq.s32.totalorder %s21, 1
    %p65 = por %p63, %p64
    %p66 = scmp.ne.s32.totalorder %s55, %s56
    %p67 = scmp.eq.s32.totalorder %s21, 0
    %p68 = por %p66, %p67
    %p69 = scmp.ne.s32.totalorder %s55, %s56
    %p70 = scmp.eq.s32.totalorder %s22, 1
    %p71 = por %p69, %p70
    %p73 = scmp.ne.s32.totalorder %s56, %s72
    %p74 = scmp.eq.s32.totalorder %s22, 0
    %p75 = por %p73, %p74
    %s77 = sadd.s32 %s76, 1
    %p80 = scmp.eq.s32.totalorder %s16, 1
    %p81 = scmp.ne.s32.totalorder %s76, %s78
    %p82 = scmp.eq.s32.totalorder %s16, 0
    %p83 = por %p81, %p82
    %p84 = scmp.ne.s32.totalorder %s76, %s78
    %p85 = scmp.eq.s32.totalorder %s21, 1
    %p86 = por %p84, %p85
    %p87 = scmp.ne.s32.totalorder %s78, %s79
    %p88 = scmp.eq.s32.totalorder %s21, 0
    %p89 = por %p87, %p88
    %p90 = scmp.ne.s32.totalorder %s78, %s79
    %p91 = scmp.eq.s32.totalorder %s22, 1
    %p92 = por %p90, %p91
    %p94 = scmp.ne.s32.totalorder %s79, %s93
    %p95 = scmp.eq.s32.totalorder %s22, 0
    %p96 = por %p94, %p95
    %s98 = sadd.s32 %s97, 1
    %p101 = scmp.eq.s32.totalorder %s16, 1
    %p102 = scmp.ne.s32.totalorder %s97, %s99
    %p103 = scmp.eq.s32.totalorder %s16, 0
    %p104 = por %p102, %p103
    %p105 = scmp.ne.s32.totalorder %s97, %s99
    %p106 = scmp.eq.s32.totalorder %s21, 1
    %p107 = por %p105, %p106
    %p108 = scmp.ne.s32.totalorder %s99, %s100
    %p109 = scmp.eq.s32.totalorder %s21, 0
    %p110 = por %p108, %p109
    %p111 = scmp.ne.s32.totalorder %s99, %s100
    %p112 = scmp.eq.s32.totalorder %s22, 1
    %p113 = por %p111, %p112
    %p115 = scmp.ne.s32.totalorder %s100, %s114
    %p116 = scmp.eq.s32.totalorder %s22, 0
    %p117 = por %p115, %p116
    %s119 = sadd.s32 %s118, 1
    %p122 = scmp.eq.s32.totalorder %s16, 1
    %p123 = scmp.ne.s32.totalorder %s118, %s120
    %p124 = scmp.eq.s32.totalorder %s16, 0
    %p125 = por %p123, %p124
    %p126 = scmp.ne.s32.totalorder %s118, %s120
    %p127 = scmp.eq.s32.totalorder %s21, 1
    %p128 = por %p126, %p127
    %p129 = scmp.ne.s32.totalorder %s120, %s121
    %p130 = scmp.eq.s32.totalorder %s21, 0
    %p131 = por %p129, %p130
    %p132 = scmp.ne.s32.totalorder %s120, %s121
    %p133 = scmp.eq.s32.totalorder %s22, 1
    %p134 = por %p132, %p133
    %p136 = scmp.ne.s32.totalorder %s121, %s135
    %p137 = scmp.eq.s32.totalorder %s22, 0
    %p138 = por %p136, %p137
    %s140 = sadd.s32 %s139, 1
    %p143 = scmp.eq.s32.totalorder %s16, 1
    %p144 = scmp.ne.s32.totalorder %s139, %s141
    %p145 = scmp.eq.s32.totalorder %s16, 0
    %p146 = por %p144, %p145
    %p147 = scmp.ne.s32.totalorder %s139, %s141
    %p148 = scmp.eq.s32.totalorder %s21, 1
    %p149 = por %p147, %p148
    %p150 = scmp.ne.s32.totalorder %s141, %s142
    %p151 = scmp.eq.s32.totalorder %s21, 0
    %p152 = por %p150, %p151
    %p153 = scmp.ne.s32.totalorder %s141, %s142
    %p154 = scmp.eq.s32.totalorder %s22, 1
    %p155 = por %p153, %p154
    %p157 = scmp.ne.s32.totalorder %s142, %s156
    %p158 = scmp.eq.s32.totalorder %s22, 0
    %p159 = por %p157, %p158
    %s161 = sadd.s32 %s160, 1
    %p164 = scmp.eq.s32.totalorder %s16, 1
    %p165 = scmp.ne.s32.totalorder %s160, %s162
    %p166 = scmp.eq.s32.totalorder %s16, 0
    %p167 = por %p165, %p166
    %p168 = scmp.ne.s32.totalorder %s160, %s162
    %p169 = scmp.eq.s32.totalorder %s21, 1
    %p170 = por %p168, %p169
    %p171 = scmp.ne.s32.totalorder %s162, %s163
    %p172 = scmp.eq.s32.totalorder %s21, 0
    %p173 = por %p171, %p172
    %p174 = scmp.ne.s32.totalorder %s162, %s163
    %p175 = scmp.eq.s32.totalorder %s22, 1
    %p176 = por %p174, %p175
    %p178 = scmp.ne.s32.totalorder %s163, %s177
    %p179 = scmp.eq.s32.totalorder %s22, 0
    %p180 = por %p178, %p179
    %s182 = sadd.s32 %s181, 1
    %p185 = scmp.eq.s32.totalorder %s16, 1
    %p186 = scmp.ne.s32.totalorder %s181, %s183
    %p187 = scmp.eq.s32.totalorder %s16, 0
    %p188 = por %p186, %p187
    %p189 = scmp.ne.s32.totalorder %s181, %s183
    %p190 = scmp.eq.s32.totalorder %s21, 1
    %p191 = por %p189, %p190
    %p192 = scmp.ne.s32.totalorder %s183, %s184
    %p193 = scmp.eq.s32.totalorder %s21, 0
    %p194 = por %p192, %p193
    %p195 = scmp.ne.s32.totalorder %s183, %s184
    %p196 = scmp.eq.s32.totalorder %s22, 1
    %p197 = por %p195, %p196
    %p199 = scmp.ne.s32.totalorder %s184, %s198
    %p200 = scmp.eq.s32.totalorder %s22, 0
    %p201 = por %p199, %p200
    %s203 = sadd.s32 %s202, 1
    %p206 = scmp.eq.s32.totalorder %s16, 1
    %p207 = scmp.ne.s32.totalorder %s202, %s204
    %p208 = scmp.eq.s32.totalorder %s16, 0
    %p209 = por %p207, %p208
    %p210 = scmp.ne.s32.totalorder %s202, %s204
    %p211 = scmp.eq.s32.totalorder %s21, 1
    %p212 = por %p210, %p211
    %p213 = scmp.ne.s32.totalorder %s204, %s205
    %p214 = scmp.eq.s32.totalorder %s21, 0
    %p215 = por %p213, %p214
    %p216 = scmp.ne.s32.totalorder %s204, %s205
    %p217 = scmp.eq.s32.totalorder %s22, 1
    %p218 = por %p216, %p217
    %p220 = scmp.ne.s32.totalorder %s205, %s219
    %p221 = scmp.eq.s32.totalorder %s22, 0
    %p222 = por %p220, %p221
    %s224 = sadd.s32 %s223, 1
    %p227 = scmp.eq.s32.totalorder %s16, 1
    %p228 = scmp.ne.s32.totalorder %s223, %s225
    %p229 = scmp.eq.s32.totalorder %s16, 0
    %p230 = por %p228, %p229
    %p231 = scmp.ne.s32.totalorder %s223, %s225
    %p232 = scmp.eq.s32.totalorder %s21, 1
    %p233 = por %p231, %p232
    %p234 = scmp.ne.s32.totalorder %s225, %s226
    %p235 = scmp.eq.s32.totalorder %s21, 0
    %p236 = por %p234, %p235
    %p237 = scmp.ne.s32.totalorder %s225, %s226
    %p238 = scmp.eq.s32.totalorder %s22, 1
    %p239 = por %p237, %p238
    %p241 = scmp.ne.s32.totalorder %s226, %s240
    %p242 = scmp.eq.s32.totalorder %s22, 0
    %p243 = por %p241, %p242
    %s244 = ssub.s32 %s16, %s23
    %p245 = scmp.eq.s32.totalorder %s244, 0
    %s247 = sadd.s32 %s246, 1
    %s248 = scalar_select %p245, %s246, %s247
    %p251 = pneg %p245
    %p252 = scmp.eq.s32.totalorder %s16, 1
    %p253 = por %p251, %p252
    %p254 = scmp.ne.s32.totalorder %s246, %s249
    %p255 = scmp.eq.s32.totalorder %s16, 0
    %p256 = por %p254, %p255
    %p257 = scmp.ne.s32.totalorder %s246, %s249
    %p258 = scmp.eq.s32.totalorder %s21, 1
    %p259 = por %p257, %p258
    %p260 = scmp.ne.s32.totalorder %s249, %s250
    %p261 = scmp.eq.s32.totalorder %s21, 0
    %p262 = por %p260, %p261
    %p263 = scmp.ne.s32.totalorder %s249, %s250
    %p264 = scmp.eq.s32.totalorder %s22, 1
    %p265 = por %p263, %p264
    %p267 = scmp.ne.s32.totalorder %s250, %s266
    %p268 = scmp.eq.s32.totalorder %s22, 0
    %p269 = por %p267, %p268
    %p270 = scmp.le.s32.totalorder 1, %s16
    %p271 = scmp.lt.s32.totalorder %s16, 3
    %p272 = pnand %p270, %p271
    %p273 = pneg %p272
    // Predicated region
    $region9: #{vanilla_transformer_forward.22} parent=5 // pred_check
      _
    $region10: #{vanilla_transformer_forward.22} parent=5 // pred_check_branch
      %275 = sbr.rel (%p272) target = $region12
    $region11: #{vanilla_transformer_forward.22} parent=5 // pred_region
      %s276 = ssub.s32 %s16, 1
      // Predicated region
      $region13: #{vanilla_transformer_forward.22} parent=11 // pred_check
        %p277 = pneg %p89
      $region14: #{vanilla_transformer_forward.22} parent=11 // pred_check_branch
        %279 = sbr.rel (%p277) target = $region16
      $region15: #{vanilla_transformer_forward.22} parent=11 // pred_region
        _
      $region16: #{vanilla_transformer_forward.22} parent=11 // pred_fallthru
        _
      // Predicated region
      $region17: #{vanilla_transformer_forward.22} parent=11 // pred_check
        %p280 = pneg %p110
      $region18: #{vanilla_transformer_forward.22} parent=11 // pred_check_branch
        %282 = sbr.rel (%p280) target = $region20
      $region19: #{vanilla_transformer_forward.22} parent=11 // pred_region
        _
      $region20: #{vanilla_transformer_forward.22} parent=11 // pred_fallthru
        _
      // Predicated region
      $region21: #{vanilla_transformer_forward.22} parent=11 // pred_check
        %p283 = pneg %p131
      $region22: #{vanilla_transformer_forward.22} parent=11 // pred_check_branch
        %285 = sbr.rel (%p283) target = $region24
      $region23: #{vanilla_transformer_forward.22} parent=11 // pred_region
        _
      $region24: #{vanilla_transformer_forward.22} parent=11 // pred_fallthru
        _
      // Predicated region
      $region25: #{vanilla_transformer_forward.22} parent=11 // pred_check
        %p286 = pneg %p152
      $region26: #{vanilla_transformer_forward.22} parent=11 // pred_check_branch
        %288 = sbr.rel (%p286) target = $region28
      $region27: #{vanilla_transformer_forward.22} parent=11 // pred_region
        _
      $region28: #{vanilla_transformer_forward.22} parent=11 // pred_fallthru
        _
      // Predicated region
      $region29: #{vanilla_transformer_forward.22} parent=11 // pred_check
        %p289 = pneg %p173
      $region30: #{vanilla_transformer_forward.22} parent=11 // pred_check_branch
        %291 = sbr.rel (%p289) target = $region32
      $region31: #{vanilla_transformer_forward.22} parent=11 // pred_region
        _
      $region32: #{vanilla_transformer_forward.22} parent=11 // pred_fallthru
        _
      // Predicated region
      $region33: #{vanilla_transformer_forward.22} parent=11 // pred_check
        %p292 = pneg %p194
      $region34: #{vanilla_transformer_forward.22} parent=11 // pred_check_branch
        %294 = sbr.rel (%p292) target = $region36
      $region35: #{vanilla_transformer_forward.22} parent=11 // pred_region
        _
      $region36: #{vanilla_transformer_forward.22} parent=11 // pred_fallthru
        _
      // Predicated region
      $region37: #{vanilla_transformer_forward.22} parent=11 // pred_check
        %p295 = pneg %p215
      $region38: #{vanilla_transformer_forward.22} parent=11 // pred_check_branch
        %297 = sbr.rel (%p295) target = $region40
      $region39: #{vanilla_transformer_forward.22} parent=11 // pred_region
        _
      $region40: #{vanilla_transformer_forward.22} parent=11 // pred_fallthru
        _
      // Predicated region
      $region41: #{vanilla_transformer_forward.22} parent=11 // pred_check
        %p298 = pneg %p236
      $region42: #{vanilla_transformer_forward.22} parent=11 // pred_check_branch
        %300 = sbr.rel (%p298) target = $region44
      $region43: #{vanilla_transformer_forward.22} parent=11 // pred_region
        _
      $region44: #{vanilla_transformer_forward.22} parent=11 // pred_fallthru
        _
    $region12: #{vanilla_transformer_forward.22} parent=5 // pred_fallthru
      _
    %p301 = scmp.lt.s32.totalorder %s16, 2
    // Predicated region
    $region45: #{vanilla_transformer_forward.22} parent=5 // pred_check
      %p302 = pneg %p301
    $region46: #{vanilla_transformer_forward.22} parent=5 // pred_check_branch
      %304 = sbr.rel (%p302) target = $region48
    $region47: #{vanilla_transformer_forward.22} parent=5 // pred_region
      // Predicated region
      $region49: #{vanilla_transformer_forward.22} parent=47 // pred_check
        %p305 = pneg %p36
      $region50: #{vanilla_transformer_forward.22} parent=47 // pred_check_branch
        %307 = sbr.rel (%p305) target = $region52
      $region51: #{vanilla_transformer_forward.22} parent=47 // pred_region
        %p308 = scmp.lt.s32.totalorder %s16, 1
        %s309 = scalar_select %p308, %s16, 1
        %s310 = smul.addr %s309, 8
        %s311 = scalar_lea.vmem %s0, %s310
      $region52: #{vanilla_transformer_forward.22} parent=47 // pred_fallthru
        _
      // Predicated region
      $region53: #{vanilla_transformer_forward.22} parent=47 // pred_check
        %p312 = pneg %p62
      $region54: #{vanilla_transformer_forward.22} parent=47 // pred_check_branch
        %314 = sbr.rel (%p312) target = $region56
      $region55: #{vanilla_transformer_forward.22} parent=47 // pred_region
        %p315 = scmp.lt.s32.totalorder %s16, 1
        %s316 = scalar_select %p315, %s16, 1
        %s317 = smul.addr %s316, 8
        %s318 = scalar_lea.vmem %s1, %s317
      $region56: #{vanilla_transformer_forward.22} parent=47 // pred_fallthru
        _
    $region48: #{vanilla_transformer_forward.22} parent=5 // pred_fallthru
      _
    %p319 = scmp.le.s32.totalorder 1, %s16
    %p320 = scmp.lt.s32.totalorder %s16, 3
    %p321 = pnand %p319, %p320
    %p322 = pneg %p321
    // Predicated region
    $region57: #{vanilla_transformer_forward.22} parent=5 // pred_check
      _
    $region58: #{vanilla_transformer_forward.22} parent=5 // pred_check_branch
      %324 = sbr.rel (%p321) target = $region60
    $region59: #{vanilla_transformer_forward.22} parent=5 // pred_region
      %s325 = ssub.s32 %s16, 1
      %p326 = scmp.lt.s32.totalorder %s21, 1
      %s327 = scalar_select %p326, %s21, 1
      %s328 = smul.addr %s327, 8
      %s329 = scalar_lea.vmem %s0, %s328
      %p330 = pneg %p42
      %p331 = pneg %p39
      %p332 = scmp.lt.s32.totalorder %s21, 1
      %s333 = scalar_select %p332, %s21, 1
      %s334 = smul.addr %s333, 8
      %s335 = scalar_lea.vmem %s1, %s334
      %p336 = pneg %p68
      %p337 = pneg %p65
      %p338 = pneg %p89
      %p339 = pneg %p86
      %p340 = pneg %p110
      %p341 = pneg %p107
      %p342 = pneg %p131
      %p343 = pneg %p128
      %p344 = pneg %p152
      %p345 = pneg %p149
      %p346 = pneg %p173
      %p347 = pneg %p170
      %p348 = pneg %p194
      %p349 = pneg %p191
      %p350 = pneg %p215
      %p351 = pneg %p212
      %p352 = pneg %p236
      %p353 = pneg %p233
      %p354 = pneg %p262
      %p355 = pneg %p259
      %p356 = scmp.lt.s32.totalorder %s21, 1
      %s357 = scalar_select %p356, %s21, 1
      %s358 = smul.addr %s357, 8
      %s359 = scalar_lea.vmem %s10, %s358
      %p360 = scmp.lt.s32.totalorder %s21, 1
      %s361 = scalar_select %p360, %s21, 1
      %s362 = smul.addr %s361, 8
      %s363 = scalar_lea.vmem %s0, %s362
      %p364 = scmp.lt.s32.totalorder %s21, 1
      %s365 = scalar_select %p364, %s21, 1
      %s366 = smul.addr %s365, 8
      %s367 = scalar_lea.vmem %s1, %s366
      %p368 = scmp.lt.s32.totalorder %s21, 1
      %s369 = scalar_select %p368, %s21, 1
      %s370 = smul.addr %s369, 8
      %s371 = scalar_lea.vmem %s10, %s370
      %v373 = vld [vmem:[%s363] sm:$0xff]
      %v374 = vld [vmem:[%s367] sm:$0xff]
      %v375 = vpack.c.bf16 %v373, %v373
      %v376 = vld [vmem:[%s2] sm:$0xf]
      %v377 = vld [vmem:[%s2 + $0x4] sm:$0xf]
      %v378 = vld [vmem:[%s2 + $0x8] sm:$0xf]
      %v379 = vld [vmem:[%s2 + $0xc] sm:$0xf]
      %v380 = vld [vmem:[%s3] sm:$0x1]
      %v382 = vlaneseq
      %v383 = vshrl.u32 %v382, 7
      %v384 = vsub.s32 0, %v383
      %v385 = vrot.slane %v380, %v384
      %v391 = vunpack.c.l.b16 %v376
      %v392 = vunpack.c.l.b16 %v377
      %v393 = vunpack.c.l.b16 %v378
      %v394 = vunpack.c.l.b16 %v379
      %v395 = vpack.c.b16 %v392, %v391
      %v396 = vpack.c.b16 %v394, %v393
      %vm399 = vcmask 261120
      %v401 = vsel %vm399, %v375, 0
      %403 = vmatprep.subr.bf16.mxu0 0
      %404 = vmatpush1.bf16.msra.mxu0 %v395
      %405 = vmatprep.subr.bf16.mxu0 0
      %406 = vmatpush1.bf16.msra.mxu0 %v396
      %407 = vmatprep.subr.bf16.mxu0 0
      %408 = vmatpush1.bf16.msra.mxu0 0
      %409 = vmatprep.subr.bf16.mxu0 0
      %410 = vmatpush1.bf16.msra.mxu0 0
      %411 = vmatprep.subr.bf16.mxu0 0
      %412 = vmatpush1.bf16.msra.mxu0 0
      %413 = vmatprep.subr.bf16.mxu0 0
      %414 = vmatpush1.bf16.msra.mxu0 0
      %415 = vmatprep.subr.bf16.mxu0 0
      %416 = vmatpush1.bf16.msra.mxu0 0
      %417 = vmatprep.subr.bf16.mxu0 0
      %418 = vmatpush1.bf16.msra.mxu0 0
      %419 = vmatprep.subr.bf16.mxu0 0
      %420 = vmatpush1.bf16.msra.mxu0 0
      %421 = vmatprep.subr.bf16.mxu0 0
      %422 = vmatpush1.bf16.msra.mxu0 0
      %423 = vmatprep.subr.bf16.mxu0 0
      %424 = vmatpush1.bf16.msra.mxu0 0
      %425 = vmatprep.subr.bf16.mxu0 0
      %426 = vmatpush1.bf16.msra.mxu0 0
      %427 = vmatprep.subr.bf16.mxu0 0
      %428 = vmatpush1.bf16.msra.mxu0 0
      %429 = vmatprep.subr.bf16.mxu0 0
      %430 = vmatpush1.bf16.msra.mxu0 0
      %431 = vmatprep.subr.bf16.mxu0 0
      %432 = vmatpush1.bf16.msra.mxu0 0
      %433 = vmatprep.subr.bf16.mxu0 0
      %434 = vmatpush1.bf16.msra.mxu0 0
      %435 = vmatprep.mubr.bf16.mxu0 0
      %436 = vmatmul.mubr.bf16.gmra.mrb[0].mxu0 %v401
      %v437 = vpop.f32.mrb[0].mxu0
      %v438 = vadd.f32 %v385, %v437
      %v439 = vpop.f32.mrb[0].mxu0
      %v440 = vpop.f32.mrb[0].mxu0
      %v441 = vpop.f32.mrb[0].mxu0
      %442 = vdwg.mxu0
      %v443 = vpack.c.bf16 %v374, %v374
      %v444 = vld [vmem:[%s4] sm:$0xf]
      %v445 = vld [vmem:[%s4 + $0x4] sm:$0xf]
      %v446 = vld [vmem:[%s4 + $0x8] sm:$0xf]
      %v447 = vld [vmem:[%s4 + $0xc] sm:$0xf]
      %v448 = vld [vmem:[%s5] sm:$0x1]
      %v450 = vlaneseq
      %v451 = vshrl.u32 %v450, 7
      %v452 = vsub.s32 0, %v451
      %v453 = vrot.slane %v448, %v452
      %v459 = vunpack.c.l.b16 %v444
      %v460 = vunpack.c.l.b16 %v445
      %v461 = vunpack.c.l.b16 %v446
      %v462 = vunpack.c.l.b16 %v447
      %v463 = vpack.c.b16 %v460, %v459
      %v464 = vpack.c.b16 %v462, %v461
      %v468 = vsel %vm399, %v443, 0
      %470 = vmatprep.subr.bf16.mxu0 0
      %471 = vmatpush1.bf16.msra.mxu0 %v463
      %472 = vmatprep.subr.bf16.mxu0 0
      %473 = vmatpush1.bf16.msra.mxu0 %v464
      %474 = vmatprep.subr.bf16.mxu0 0
      %475 = vmatpush1.bf16.msra.mxu0 0
      %476 = vmatprep.subr.bf16.mxu0 0
      %477 = vmatpush1.bf16.msra.mxu0 0
      %478 = vmatprep.subr.bf16.mxu0 0
      %479 = vmatpush1.bf16.msra.mxu0 0
      %480 = vmatprep.subr.bf16.mxu0 0
      %481 = vmatpush1.bf16.msra.mxu0 0
      %482 = vmatprep.subr.bf16.mxu0 0
      %483 = vmatpush1.bf16.msra.mxu0 0
      %484 = vmatprep.subr.bf16.mxu0 0
      %485 = vmatpush1.bf16.msra.mxu0 0
      %486 = vmatprep.subr.bf16.mxu0 0
      %487 = vmatpush1.bf16.msra.mxu0 0
      %488 = vmatprep.subr.bf16.mxu0 0
      %489 = vmatpush1.bf16.msra.mxu0 0
      %490 = vmatprep.subr.bf16.mxu0 0
      %491 = vmatpush1.bf16.msra.mxu0 0
      %492 = vmatprep.subr.bf16.mxu0 0
      %493 = vmatpush1.bf16.msra.mxu0 0
      %494 = vmatprep.subr.bf16.mxu0 0
      %495 = vmatpush1.bf16.msra.mxu0 0
      %496 = vmatprep.subr.bf16.mxu0 0
      %497 = vmatpush1.bf16.msra.mxu0 0
      %498 = vmatprep.subr.bf16.mxu0 0
      %499 = vmatpush1.bf16.msra.mxu0 0
      %500 = vmatprep.subr.bf16.mxu0 0
      %501 = vmatpush1.bf16.msra.mxu0 0
      %502 = vmatprep.mubr.bf16.mxu0 0
      %503 = vmatmul.mubr.bf16.gmra.mrb[0].mxu0 %v468
      %v504 = vpop.f32.mrb[0].mxu0
      %v505 = vadd.f32 %v453, %v504
      %v506 = vpop.f32.mrb[0].mxu0
      %v507 = vpop.f32.mrb[0].mxu0
      %v508 = vpop.f32.mrb[0].mxu0
      %509 = vdwg.mxu0
      %v510 = vpack.c.bf16 %v438, %v438
      %v511 = vpack.c.bf16 %v505, %v505
      %vm512 = vcmask 64512
      %v514 = vsel %vm512, %v510, 0
      %v517 = vsel %vm512, %v511, 0
      %519 = vmatprep.subr.bf16.mxu0 0
      %520 = vmatpush1.bf16.xpose.msra.mxu0 %v517
      %521 = vmatprep.subr.bf16.mxu0 0
      %522 = vmatpush1.bf16.xpose.msra.mxu0 0
      %523 = vmatprep.subr.bf16.mxu0 0
      %524 = vmatpush1.bf16.xpose.msra.mxu0 0
      %525 = vmatprep.subr.bf16.mxu0 0
      %526 = vmatpush1.bf16.xpose.msra.mxu0 0
      %527 = vmatprep.subr.bf16.mxu0 0
      %528 = vmatpush1.bf16.xpose.msra.mxu0 0
      %529 = vmatprep.subr.bf16.mxu0 0
      %530 = vmatpush1.bf16.xpose.msra.mxu0 0
      %531 = vmatprep.subr.bf16.mxu0 0
      %532 = vmatpush1.bf16.xpose.msra.mxu0 0
      %533 = vmatprep.subr.bf16.mxu0 0
      %534 = vmatpush1.bf16.xpose.msra.mxu0 0
      %535 = vmatprep.subr.bf16.mxu0 0
      %536 = vmatpush1.bf16.xpose.msra.mxu0 0
      %537 = vmatprep.subr.bf16.mxu0 0
      %538 = vmatpush1.bf16.xpose.msra.mxu0 0
      %539 = vmatprep.subr.bf16.mxu0 0
      %540 = vmatpush1.bf16.xpose.msra.mxu0 0
      %541 = vmatprep.subr.bf16.mxu0 0
      %542 = vmatpush1.bf16.xpose.msra.mxu0 0
      %543 = vmatprep.subr.bf16.mxu0 0
      %544 = vmatpush1.bf16.xpose.msra.mxu0 0
      %545 = vmatprep.subr.bf16.mxu0 0
      %546 = vmatpush1.bf16.xpose.msra.mxu0 0
      %547 = vmatprep.subr.bf16.mxu0 0
      %548 = vmatpush1.bf16.xpose.msra.mxu0 0
      %549 = vmatprep.subr.bf16.mxu0 0
      %550 = vmatpush1.bf16.xpose.msra.mxu0 0
      %551 = vmatprep.mubr.bf16.mxu0 0
      %552 = vmatmul.mubr.bf16.gmra.mrb[0].mxu0 %v514
      %v553 = vpop.f32.mrb[0].mxu0
      %v554 = vadd.f32 0.0, %v553
      %v555 = vpop.f32.mrb[0].mxu0
      %v556 = vpop.f32.mrb[0].mxu0
      %v557 = vpop.f32.mrb[0].mxu0
      %558 = vdwg.mxu0
      %v559 = vsel %vm512, %v554, -inf
      %560 = vmax.xlane.f32.xlu0 %v559
      %v561 = vpop.xlane.xlu0 %560
      %v562 = vsub.f32 %v554, %v561
      %v563 = vmul.f32 %v562, 1.442695
      %v564 = vpow.pop %v563
      %v565 = vsel %vm512, %v564, 0.0
      %566 = vadd.xlane.f32.xlu0 %v565
      %v567 = vpop.xlane.xlu0 %566
      %v568 = vrcp.pop %v567
      %v569 = vpack.c.bf16 %v564, %v564
      %571 = vrot.lane.b32.xlu0 %v511, 96
      %v572 = vpop.permute.xlu0 %571
      %v574 = vsel %vm512, %v569, 0
      %vm576 = vcmask 1043456
      %v578 = vsel %vm576, %v572, 0
      %580 = vmatprep.subr.bf16.mxu0 0
      %581 = vmatpush1.bf16.msra.mxu0 %v578
      %582 = vmatprep.subr.bf16.mxu0 0
      %583 = vmatpush1.bf16.msra.mxu0 0
      %584 = vmatprep.subr.bf16.mxu0 0
      %585 = vmatpush1.bf16.msra.mxu0 0
      %586 = vmatprep.subr.bf16.mxu0 0
      %587 = vmatpush1.bf16.msra.mxu0 0
      %588 = vmatprep.subr.bf16.mxu0 0
      %589 = vmatpush1.bf16.msra.mxu0 0
      %590 = vmatprep.subr.bf16.mxu0 0
      %591 = vmatpush1.bf16.msra.mxu0 0
      %592 = vmatprep.subr.bf16.mxu0 0
      %593 = vmatpush1.bf16.msra.mxu0 0
      %594 = vmatprep.subr.bf16.mxu0 0
      %595 = vmatpush1.bf16.msra.mxu0 0
      %596 = vmatprep.subr.bf16.mxu0 0
      %597 = vmatpush1.bf16.msra.mxu0 0
      %598 = vmatprep.subr.bf16.mxu0 0
      %599 = vmatpush1.bf16.msra.mxu0 0
      %600 = vmatprep.subr.bf16.mxu0 0
      %601 = vmatpush1.bf16.msra.mxu0 0
      %602 = vmatprep.subr.bf16.mxu0 0
      %603 = vmatpush1.bf16.msra.mxu0 0
      %604 = vmatprep.subr.bf16.mxu0 0
      %605 = vmatpush1.bf16.msra.mxu0 0
      %606 = vmatprep.subr.bf16.mxu0 0
      %607 = vmatpush1.bf16.msra.mxu0 0
      %608 = vmatprep.subr.bf16.mxu0 0
      %609 = vmatpush1.bf16.msra.mxu0 0
      %610 = vmatprep.subr.bf16.mxu0 0
      %611 = vmatpush1.bf16.msra.mxu0 0
      %612 = vmatprep.mubr.bf16.mxu0 0
      %613 = vmatmul.mubr.bf16.gmra.mrb[0].mxu0 %v574
      %v614 = vpop.f32.mrb[0].mxu0
      %v615 = vadd.f32 0.0, %v614
      %v616 = vpop.f32.mrb[0].mxu0
      %v617 = vpop.f32.mrb[0].mxu0
      %v618 = vpop.f32.mrb[0].mxu0
      %619 = vdwg.mxu0
      %v620 = vmul.f32 %v615, %v568
      %v621 = vpack.c.bf16 %v620, %v620
      %v622 = vld [vmem:[%s6] sm:$0xf]
      %624 = vrot.lane.b32.xlu0 %v510, 120
      %v625 = vpop.permute.xlu0 %624
      %626 = vrot.lane.b32.xlu0 %v511, 120
      %v627 = vpop.permute.xlu0 %626
      %v629 = vsel %vm512, %v625, 0
      %v632 = vsel %vm512, %v627, 0
      %634 = vmatprep.subr.bf16.mxu0 0
      %635 = vmatpush1.bf16.xpose.msra.mxu0 %v632
      %636 = vmatprep.subr.bf16.mxu0 0
      %637 = vmatpush1.bf16.xpose.msra.mxu0 0
      %638 = vmatprep.subr.bf16.mxu0 0
      %639 = vmatpush1.bf16.xpose.msra.mxu0 0
      %640 = vmatprep.subr.bf16.mxu0 0
      %641 = vmatpush1.bf16.xpose.msra.mxu0 0
      %642 = vmatprep.subr.bf16.mxu0 0
      %643 = vmatpush1.bf16.xpose.msra.mxu0 0
      %644 = vmatprep.subr.bf16.mxu0 0
      %645 = vmatpush1.bf16.xpose.msra.mxu0 0
      %646 = vmatprep.subr.bf16.mxu0 0
      %647 = vmatpush1.bf16.xpose.msra.mxu0 0
      %648 = vmatprep.subr.bf16.mxu0 0
      %649 = vmatpush1.bf16.xpose.msra.mxu0 0
      %650 = vmatprep.subr.bf16.mxu0 0
      %651 = vmatpush1.bf16.xpose.msra.mxu0 0
      %652 = vmatprep.subr.bf16.mxu0 0
      %653 = vmatpush1.bf16.xpose.msra.mxu0 0
      %654 = vmatprep.subr.bf16.mxu0 0
      %655 = vmatpush1.bf16.xpose.msra.mxu0 0
      %656 = vmatprep.subr.bf16.mxu0 0
      %657 = vmatpush1.bf16.xpose.msra.mxu0 0
      %658 = vmatprep.subr.bf16.mxu0 0
      %659 = vmatpush1.bf16.xpose.msra.mxu0 0
      %660 = vmatprep.subr.bf16.mxu0 0
      %661 = vmatpush1.bf16.xpose.msra.mxu0 0
      %662 = vmatprep.subr.bf16.mxu0 0
      %663 = vmatpush1.bf16.xpose.msra.mxu0 0
      %664 = vmatprep.subr.bf16.mxu0 0
      %665 = vmatpush1.bf16.xpose.msra.mxu0 0
      %666 = vmatprep.mubr.bf16.mxu0 0
      %667 = vmatmul.mubr.bf16.gmra.mrb[0].mxu0 %v629
      %v668 = vpop.f32.mrb[0].mxu0
      %v669 = vadd.f32 0.0, %v668
      %v670 = vpop.f32.mrb[0].mxu0
      %v671 = vpop.f32.mrb[0].mxu0
      %v672 = vpop.f32.mrb[0].mxu0
      %673 = vdwg.mxu0
      %v674 = vsel %vm512, %v669, -inf
      %675 = vmax.xlane.f32.xlu0 %v674
      %v676 = vpop.xlane.xlu0 %675
      %v677 = vsub.f32 %v669, %v676
      %v678 = vmul.f32 %v677, 1.442695
      %v679 = vpow.pop %v678
      %v680 = vsel %vm512, %v679, 0.0
      %681 = vadd.xlane.f32.xlu0 %v680
      %v682 = vpop.xlane.xlu0 %681
      %v683 = vrcp.pop %v682
      %v684 = vpack.c.bf16 %v679, %v679
      %685 = vrot.lane.b32.xlu0 %v511, 88
      %v686 = vpop.permute.xlu0 %685
      %v688 = vsel %vm512, %v684, 0
      %v691 = vsel %vm576, %v686, 0
      %693 = vmatprep.subr.bf16.mxu0 0
      %694 = vmatpush1.bf16.msra.mxu0 %v691
      %695 = vmatprep.subr.bf16.mxu0 0
      %696 = vmatpush1.bf16.msra.mxu0 0
      %697 = vmatprep.subr.bf16.mxu0 0
      %698 = vmatpush1.bf16.msra.mxu0 0
      %699 = vmatprep.subr.bf16.mxu0 0
      %700 = vmatpush1.bf16.msra.mxu0 0
      %701 = vmatprep.subr.bf16.mxu0 0
      %702 = vmatpush1.bf16.msra.mxu0 0
      %703 = vmatprep.subr.bf16.mxu0 0
      %704 = vmatpush1.bf16.msra.mxu0 0
      %705 = vmatprep.subr.bf16.mxu0 0
      %706 = vmatpush1.bf16.msra.mxu0 0
      %707 = vmatprep.subr.bf16.mxu0 0
      %708 = vmatpush1.bf16.msra.mxu0 0
      %709 = vmatprep.subr.bf16.mxu0 0
      %710 = vmatpush1.bf16.msra.mxu0 0
      %711 = vmatprep.subr.bf16.mxu0 0
      %712 = vmatpush1.bf16.msra.mxu0 0
      %713 = vmatprep.subr.bf16.mxu0 0
      %714 = vmatpush1.bf16.msra.mxu0 0
      %715 = vmatprep.subr.bf16.mxu0 0
      %716 = vmatpush1.bf16.msra.mxu0 0
      %717 = vmatprep.subr.bf16.mxu0 0
      %718 = vmatpush1.bf16.msra.mxu0 0
      %719 = vmatprep.subr.bf16.mxu0 0
      %720 = vmatpush1.bf16.msra.mxu0 0
      %721 = vmatprep.subr.bf16.mxu0 0
      %722 = vmatpush1.bf16.msra.mxu0 0
      %723 = vmatprep.subr.bf16.mxu0 0
      %724 = vmatpush1.bf16.msra.mxu0 0
      %725 = vmatprep.mubr.bf16.mxu0 0
      %726 = vmatmul.mubr.bf16.gmra.mrb[0].mxu0 %v688
      %v727 = vpop.f32.mrb[0].mxu0
      %v728 = vadd.f32 0.0, %v727
      %v729 = vpop.f32.mrb[0].mxu0
      %v730 = vpop.f32.mrb[0].mxu0
      %v731 = vpop.f32.mrb[0].mxu0
      %732 = vdwg.mxu0
      %v733 = vmul.f32 %v728, %v683
      %v734 = vpack.c.bf16 %v733, %v733
      %v735 = vld [vmem:[%s6 + $0x4] sm:$0xf]
      %v737 = vsel %vm512, %v734, 0
      %v740 = vsel %vm576, %v735, 0
      %742 = vmatprep.subr.bf16.mxu0 0
      %743 = vmatpush1.bf16.msra.mxu0 %v740
      %744 = vmatprep.subr.bf16.mxu0 0
      %745 = vmatpush1.bf16.msra.mxu0 0
      %746 = vmatprep.subr.bf16.mxu0 0
      %747 = vmatpush1.bf16.msra.mxu0 0
      %748 = vmatprep.subr.bf16.mxu0 0
      %749 = vmatpush1.bf16.msra.mxu0 0
      %750 = vmatprep.subr.bf16.mxu0 0
      %751 = vmatpush1.bf16.msra.mxu0 0
      %752 = vmatprep.subr.bf16.mxu0 0
      %753 = vmatpush1.bf16.msra.mxu0 0
      %754 = vmatprep.subr.bf16.mxu0 0
      %755 = vmatpush1.bf16.msra.mxu0 0
      %756 = vmatprep.subr.bf16.mxu0 0
      %757 = vmatpush1.bf16.msra.mxu0 0
      %758 = vmatprep.subr.bf16.mxu0 0
      %759 = vmatpush1.bf16.msra.mxu0 0
      %760 = vmatprep.subr.bf16.mxu0 0
      %761 = vmatpush1.bf16.msra.mxu0 0
      %762 = vmatprep.subr.bf16.mxu0 0
      %763 = vmatpush1.bf16.msra.mxu0 0
      %764 = vmatprep.subr.bf16.mxu0 0
      %765 = vmatpush1.bf16.msra.mxu0 0
      %766 = vmatprep.subr.bf16.mxu0 0
      %767 = vmatpush1.bf16.msra.mxu0 0
      %768 = vmatprep.subr.bf16.mxu0 0
      %769 = vmatpush1.bf16.msra.mxu0 0
      %770 = vmatprep.subr.bf16.mxu0 0
      %771 = vmatpush1.bf16.msra.mxu0 0
      %772 = vmatprep.subr.bf16.mxu0 0
      %773 = vmatpush1.bf16.msra.mxu0 0
      %774 = vmatprep.mubr.bf16.mxu0 0
      %775 = vmatmul.mubr.bf16.gmra.mrb[0].mxu0 %v737
      %v776 = vpop.f32.mrb[0].mxu0
      %v777 = vadd.f32 0.0, %v776
      %v778 = vpop.f32.mrb[0].mxu0
      %v779 = vpop.f32.mrb[0].mxu0
      %v780 = vpop.f32.mrb[0].mxu0
      %781 = vdwg.mxu0
      %v783 = vsel %vm512, %v621, 0
      %v786 = vsel %vm576, %v622, 0
      %788 = vmatprep.subr.bf16.mxu0 0
      %789 = vmatpush1.bf16.msra.mxu0 %v786
      %790 = vmatprep.subr.bf16.mxu0 0
      %791 = vmatpush1.bf16.msra.mxu0 0
      %792 = vmatprep.subr.bf16.mxu0 0
      %793 = vmatpush1.bf16.msra.mxu0 0
      %794 = vmatprep.subr.bf16.mxu0 0
      %795 = vmatpush1.bf16.msra.mxu0 0
      %796 = vmatprep.subr.bf16.mxu0 0
      %797 = vmatpush1.bf16.msra.mxu0 0
      %798 = vmatprep.subr.bf16.mxu0 0
      %799 = vmatpush1.bf16.msra.mxu0 0
      %800 = vmatprep.subr.bf16.mxu0 0
      %801 = vmatpush1.bf16.msra.mxu0 0
      %802 = vmatprep.subr.bf16.mxu0 0
      %803 = vmatpush1.bf16.msra.mxu0 0
      %804 = vmatprep.subr.bf16.mxu0 0
      %805 = vmatpush1.bf16.msra.mxu0 0
      %806 = vmatprep.subr.bf16.mxu0 0
      %807 = vmatpush1.bf16.msra.mxu0 0
      %808 = vmatprep.subr.bf16.mxu0 0
      %809 = vmatpush1.bf16.msra.mxu0 0
      %810 = vmatprep.subr.bf16.mxu0 0
      %811 = vmatpush1.bf16.msra.mxu0 0
      %812 = vmatprep.subr.bf16.mxu0 0
      %813 = vmatpush1.bf16.msra.mxu0 0
      %814 = vmatprep.subr.bf16.mxu0 0
      %815 = vmatpush1.bf16.msra.mxu0 0
      %816 = vmatprep.subr.bf16.mxu0 0
      %817 = vmatpush1.bf16.msra.mxu0 0
      %818 = vmatprep.subr.bf16.mxu0 0
      %819 = vmatpush1.bf16.msra.mxu0 0
      %820 = vmatprep.mubr.bf16.mxu0 0
      %821 = vmatmul.mubr.bf16.gmra.mrb[0].mxu0 %v783
      %v822 = vpop.f32.mrb[0].mxu0
      %v823 = vadd.f32 %v777, %v822
      %v824 = vpop.f32.mrb[0].mxu0
      %v825 = vpop.f32.mrb[0].mxu0
      %v826 = vpop.f32.mrb[0].mxu0
      %827 = vdwg.mxu0
      %828 = vrot.lane.b32.xlu0 %v510, 112
      %v829 = vpop.permute.xlu0 %828
      %830 = vrot.lane.b32.xlu0 %v511, 112
      %v831 = vpop.permute.xlu0 %830
      %v833 = vsel %vm512, %v829, 0
      %v836 = vsel %vm512, %v831, 0
      %838 = vmatprep.subr.bf16.mxu0 0
      %839 = vmatpush1.bf16.xpose.msra.mxu0 %v836
      %840 = vmatprep.subr.bf16.mxu0 0
      %841 = vmatpush1.bf16.xpose.msra.mxu0 0
      %842 = vmatprep.subr.bf16.mxu0 0
      %843 = vmatpush1.bf16.xpose.msra.mxu0 0
      %844 = vmatprep.subr.bf16.mxu0 0
      %845 = vmatpush1.bf16.xpose.msra.mxu0 0
      %846 = vmatprep.subr.bf16.mxu0 0
      %847 = vmatpush1.bf16.xpose.msra.mxu0 0
      %848 = vmatprep.subr.bf16.mxu0 0
      %849 = vmatpush1.bf16.xpose.msra.mxu0 0
      %850 = vmatprep.subr.bf16.mxu0 0
      %851 = vmatpush1.bf16.xpose.msra.mxu0 0
      %852 = vmatprep.subr.bf16.mxu0 0
      %853 = vmatpush1.bf16.xpose.msra.mxu0 0
      %854 = vmatprep.subr.bf16.mxu0 0
      %855 = vmatpush1.bf16.xpose.msra.mxu0 0
      %856 = vmatprep.subr.bf16.mxu0 0
      %857 = vmatpush1.bf16.xpose.msra.mxu0 0
      %858 = vmatprep.subr.bf16.mxu0 0
      %859 = vmatpush1.bf16.xpose.msra.mxu0 0
      %860 = vmatprep.subr.bf16.mxu0 0
      %861 = vmatpush1.bf16.xpose.msra.mxu0 0
      %862 = vmatprep.subr.bf16.mxu0 0
      %863 = vmatpush1.bf16.xpose.msra.mxu0 0
      %864 = vmatprep.subr.bf16.mxu0 0
      %865 = vmatpush1.bf16.xpose.msra.mxu0 0
      %866 = vmatprep.subr.bf16.mxu0 0
      %867 = vmatpush1.bf16.xpose.msra.mxu0 0
      %868 = vmatprep.subr.bf16.mxu0 0
      %869 = vmatpush1.bf16.xpose.msra.mxu0 0
      %870 = vmatprep.mubr.bf16.mxu0 0
      %871 = vmatmul.mubr.bf16.gmra.mrb[0].mxu0 %v833
      %v872 = vpop.f32.mrb[0].mxu0
      %v873 = vadd.f32 0.0, %v872
      %v874 = vpop.f32.mrb[0].mxu0
      %v875 = vpop.f32.mrb[0].mxu0
      %v876 = vpop.f32.mrb[0].mxu0
      %877 = vdwg.mxu0
      %v878 = vsel %vm512, %v873, -inf
      %879 = vmax.xlane.f32.xlu0 %v878
      %v880 = vpop.xlane.xlu0 %879
      %v881 = vsub.f32 %v873, %v880
      %v882 = vmul.f32 %v881, 1.442695
      %v883 = vpow.pop %v882
      %v884 = vsel %vm512, %v883, 0.0
      %885 = vadd.xlane.f32.xlu0 %v884
      %v886 = vpop.xlane.xlu0 %885
      %v887 = vrcp.pop %v886
      %v888 = vpack.c.bf16 %v883, %v883
      %889 = vrot.lane.b32.xlu0 %v511, 80
      %v890 = vpop.permute.xlu0 %889
      %v892 = vsel %vm512, %v888, 0
      %v895 = vsel %vm576, %v890, 0
      %897 = vmatprep.subr.bf16.mxu0 0
      %898 = vmatpush1.bf16.msra.mxu0 %v895
      %899 = vmatprep.subr.bf16.mxu0 0
      %900 = vmatpush1.bf16.msra.mxu0 0
      %901 = vmatprep.subr.bf16.mxu0 0
      %902 = vmatpush1.bf16.msra.mxu0 0
      %903 = vmatprep.subr.bf16.mxu0 0
      %904 = vmatpush1.bf16.msra.mxu0 0
      %905 = vmatprep.subr.bf16.mxu0 0
      %906 = vmatpush1.bf16.msra.mxu0 0
      %907 = vmatprep.subr.bf16.mxu0 0
      %908 = vmatpush1.bf16.msra.mxu0 0
      %909 = vmatprep.subr.bf16.mxu0 0
      %910 = vmatpush1.bf16.msra.mxu0 0
      %911 = vmatprep.subr.bf16.mxu0 0
      %912 = vmatpush1.bf16.msra.mxu0 0
      %913 = vmatprep.subr.bf16.mxu0 0
      %914 = vmatpush1.bf16.msra.mxu0 0
      %915 = vmatprep.subr.bf16.mxu0 0
      %916 = vmatpush1.bf16.msra.mxu0 0
      %917 = vmatprep.subr.bf16.mxu0 0
      %918 = vmatpush1.bf16.msra.mxu0 0
      %919 = vmatprep.subr.bf16.mxu0 0
      %920 = vmatpush1.bf16.msra.mxu0 0
      %921 = vmatprep.subr.bf16.mxu0 0
      %922 = vmatpush1.bf16.msra.mxu0 0
      %923 = vmatprep.subr.bf16.mxu0 0
      %924 = vmatpush1.bf16.msra.mxu0 0
      %925 = vmatprep.subr.bf16.mxu0 0
      %926 = vmatpush1.bf16.msra.mxu0 0
      %927 = vmatprep.subr.bf16.mxu0 0
      %928 = vmatpush1.bf16.msra.mxu0 0
      %929 = vmatprep.mubr.bf16.mxu0 0
      %930 = vmatmul.mubr.bf16.gmra.mrb[0].mxu0 %v892
      %v931 = vpop.f32.mrb[0].mxu0
      %v932 = vadd.f32 0.0, %v931
      %v933 = vpop.f32.mrb[0].mxu0
      %v934 = vpop.f32.mrb[0].mxu0
      %v935 = vpop.f32.mrb[0].mxu0
      %936 = vdwg.mxu0
      %v937 = vmul.f32 %v932, %v887
      %v938 = vpack.c.bf16 %v937, %v937
      %v939 = vld [vmem:[%s6 + $0x8] sm:$0xf]
      %v941 = vsel %vm512, %v938, 0
      %v944 = vsel %vm576, %v939, 0
      %946 = vmatprep.subr.bf16.mxu0 0
      %947 = vmatpush1.bf16.msra.mxu0 %v944
      %948 = vmatprep.subr.bf16.mxu0 0
      %949 = vmatpush1.bf16.msra.mxu0 0
      %950 = vmatprep.subr.bf16.mxu0 0
      %951 = vmatpush1.bf16.msra.mxu0 0
      %952 = vmatprep.subr.bf16.mxu0 0
      %953 = vmatpush1.bf16.msra.mxu0 0
      %954 = vmatprep.subr.bf16.mxu0 0
      %955 = vmatpush1.bf16.msra.mxu0 0
      %956 = vmatprep.subr.bf16.mxu0 0
      %957 = vmatpush1.bf16.msra.mxu0 0
      %958 = vmatprep.subr.bf16.mxu0 0
      %959 = vmatpush1.bf16.msra.mxu0 0
      %960 = vmatprep.subr.bf16.mxu0 0
      %961 = vmatpush1.bf16.msra.mxu0 0
      %962 = vmatprep.subr.bf16.mxu0 0
      %963 = vmatpush1.bf16.msra.mxu0 0
      %964 = vmatprep.subr.bf16.mxu0 0
      %965 = vmatpush1.bf16.msra.mxu0 0
      %966 = vmatprep.subr.bf16.mxu0 0
      %967 = vmatpush1.bf16.msra.mxu0 0
      %968 = vmatprep.subr.bf16.mxu0 0
      %969 = vmatpush1.bf16.msra.mxu0 0
      %970 = vmatprep.subr.bf16.mxu0 0
      %971 = vmatpush1.bf16.msra.mxu0 0
      %972 = vmatprep.subr.bf16.mxu0 0
      %973 = vmatpush1.bf16.msra.mxu0 0
      %974 = vmatprep.subr.bf16.mxu0 0
      %975 = vmatpush1.bf16.msra.mxu0 0
      %976 = vmatprep.subr.bf16.mxu0 0
      %977 = vmatpush1.bf16.msra.mxu0 0
      %978 = vmatprep.mubr.bf16.mxu0 0
      %979 = vmatmul.mubr.bf16.gmra.mrb[0].mxu0 %v941
      %v980 = vpop.f32.mrb[0].mxu0
      %v981 = vadd.f32 0.0, %v980
      %v982 = vpop.f32.mrb[0].mxu0
      %v983 = vpop.f32.mrb[0].mxu0
      %v984 = vpop.f32.mrb[0].mxu0
      %985 = vdwg.mxu0
      %v986 = vadd.f32 %v823, %v981
      %987 = vrot.lane.b32.xlu0 %v510, 104
      %v988 = vpop.permute.xlu0 %987
      %989 = vrot.lane.b32.xlu0 %v511, 104
      %v990 = vpop.permute.xlu0 %989
      %v992 = vsel %vm512, %v988, 0
      %v995 = vsel %vm512, %v990, 0
      %997 = vmatprep.subr.bf16.mxu0 0
      %998 = vmatpush1.bf16.xpose.msra.mxu0 %v995
      %999 = vmatprep.subr.bf16.mxu0 0
      %1000 = vmatpush1.bf16.xpose.msra.mxu0 0
      %1001 = vmatprep.subr.bf16.mxu0 0
      %1002 = vmatpush1.bf16.xpose.msra.mxu0 0
      %1003 = vmatprep.subr.bf16.mxu0 0
      %1004 = vmatpush1.bf16.xpose.msra.mxu0 0
      %1005 = vmatprep.subr.bf16.mxu0 0
      %1006 = vmatpush1.bf16.xpose.msra.mxu0 0
      %1007 = vmatprep.subr.bf16.mxu0 0
      %1008 = vmatpush1.bf16.xpose.msra.mxu0 0
      %1009 = vmatprep.subr.bf16.mxu0 0
      %1010 = vmatpush1.bf16.xpose.msra.mxu0 0
      %1011 = vmatprep.subr.bf16.mxu0 0
      %1012 = vmatpush1.bf16.xpose.msra.mxu0 0
      %1013 = vmatprep.subr.bf16.mxu0 0
      %1014 = vmatpush1.bf16.xpose.msra.mxu0 0
      %1015 = vmatprep.subr.bf16.mxu0 0
      %1016 = vmatpush1.bf16.xpose.msra.mxu0 0
      %1017 = vmatprep.subr.bf16.mxu0 0
      %1018 = vmatpush1.bf16.xpose.msra.mxu0 0
      %1019 = vmatprep.subr.bf16.mxu0 0
      %1020 = vmatpush1.bf16.xpose.msra.mxu0 0
      %1021 = vmatprep.subr.bf16.mxu0 0
      %1022 = vmatpush1.bf16.xpose.msra.mxu0 0
      %1023 = vmatprep.subr.bf16.mxu0 0
      %1024 = vmatpush1.bf16.xpose.msra.mxu0 0
      %1025 = vmatprep.subr.bf16.mxu0 0
      %1026 = vmatpush1.bf16.xpose.msra.mxu0 0
      %1027 = vmatprep.subr.bf16.mxu0 0
      %1028 = vmatpush1.bf16.xpose.msra.mxu0 0
      %1029 = vmatprep.mubr.bf16.mxu0 0
      %1030 = vmatmul.mubr.bf16.gmra.mrb[0].mxu0 %v992
      %v1031 = vpop.f32.mrb[0].mxu0
      %v1032 = vadd.f32 0.0, %v1031
      %v1033 = vpop.f32.mrb[0].mxu0
      %v1034 = vpop.f32.mrb[0].mxu0
      %v1035 = vpop.f32.mrb[0].mxu0
      %1036 = vdwg.mxu0
      %v1037 = vsel %vm512, %v1032, -inf
      %1038 = vmax.xlane.f32.xlu0 %v1037
      %v1039 = vpop.xlane.xlu0 %1038
      %v1040 = vsub.f32 %v1032, %v1039
      %v1041 = vmul.f32 %v1040, 1.442695
      %v1042 = vpow.pop %v1041
      %v1043 = vsel %vm512, %v1042, 0.0
      %1044 = vadd.xlane.f32.xlu0 %v1043
      %v1045 = vpop.xlane.xlu0 %1044
      %v1046 = vrcp.pop %v1045
      %v1047 = vpack.c.bf16 %v1042, %v1042
      %1048 = vrot.lane.b32.xlu0 %v511, 72
      %v1049 = vpop.permute.xlu0 %1048
      %v1051 = vsel %vm512, %v1047, 0
      %v1054 = vsel %vm576, %v1049, 0
      %1056 = vmatprep.subr.bf16.mxu0 0
      %1057 = vmatpush1.bf16.msra.mxu0 %v1054
      %1058 = vmatprep.subr.bf16.mxu0 0
      %1059 = vmatpush1.bf16.msra.mxu0 0
      %1060 = vmatprep.subr.bf16.mxu0 0
      %1061 = vmatpush1.bf16.msra.mxu0 0
      %1062 = vmatprep.subr.bf16.mxu0 0
      %1063 = vmatpush1.bf16.msra.mxu0 0
      %1064 = vmatprep.subr.bf16.mxu0 0
      %1065 = vmatpush1.bf16.msra.mxu0 0
      %1066 = vmatprep.subr.bf16.mxu0 0
      %1067 = vmatpush1.bf16.msra.mxu0 0
      %1068 = vmatprep.subr.bf16.mxu0 0
      %1069 = vmatpush1.bf16.msra.mxu0 0
      %1070 = vmatprep.subr.bf16.mxu0 0
      %1071 = vmatpush1.bf16.msra.mxu0 0
      %1072 = vmatprep.subr.bf16.mxu0 0
      %1073 = vmatpush1.bf16.msra.mxu0 0
      %1074 = vmatprep.subr.bf16.mxu0 0
      %1075 = vmatpush1.bf16.msra.mxu0 0
      %1076 = vmatprep.subr.bf16.mxu0 0
      %1077 = vmatpush1.bf16.msra.mxu0 0
      %1078 = vmatprep.subr.bf16.mxu0 0
      %1079 = vmatpush1.bf16.msra.mxu0 0
      %1080 = vmatprep.subr.bf16.mxu0 0
      %1081 = vmatpush1.bf16.msra.mxu0 0
      %1082 = vmatprep.subr.bf16.mxu0 0
      %1083 = vmatpush1.bf16.msra.mxu0 0
      %1084 = vmatprep.subr.bf16.mxu0 0
      %1085 = vmatpush1.bf16.msra.mxu0 0
      %1086 = vmatprep.subr.bf16.mxu0 0
      %1087 = vmatpush1.bf16.msra.mxu0 0
      %1088 = vmatprep.mubr.bf16.mxu0 0
      %1089 = vmatmul.mubr.bf16.gmra.mrb[0].mxu0 %v1051
      %v1090 = vpop.f32.mrb[0].mxu0
      %v1091 = vadd.f32 0.0, %v1090
      %v1092 = vpop.f32.mrb[0].mxu0
      %v1093 = vpop.f32.mrb[0].mxu0
      %v1094 = vpop.f32.mrb[0].mxu0
      %1095 = vdwg.mxu0
      %v1096 = vmul.f32 %v1091, %v1046
      %v1097 = vpack.c.bf16 %v1096, %v1096
      %v1098 = vld [vmem:[%s6 + $0xc] sm:$0xf]
      %v1100 = vsel %vm512, %v1097, 0
      %v1103 = vsel %vm576, %v1098, 0
      %1105 = vmatprep.subr.bf16.mxu0 0
      %1106 = vmatpush1.bf16.msra.mxu0 %v1103
      %1107 = vmatprep.subr.bf16.mxu0 0
      %1108 = vmatpush1.bf16.msra.mxu0 0
      %1109 = vmatprep.subr.bf16.mxu0 0
      %1110 = vmatpush1.bf16.msra.mxu0 0
      %1111 = vmatprep.subr.bf16.mxu0 0
      %1112 = vmatpush1.bf16.msra.mxu0 0
      %1113 = vmatprep.subr.bf16.mxu0 0
      %1114 = vmatpush1.bf16.msra.mxu0 0
      %1115 = vmatprep.subr.bf16.mxu0 0
      %1116 = vmatpush1.bf16.msra.mxu0 0
      %1117 = vmatprep.subr.bf16.mxu0 0
      %1118 = vmatpush1.bf16.msra.mxu0 0
      %1119 = vmatprep.subr.bf16.mxu0 0
      %1120 = vmatpush1.bf16.msra.mxu0 0
      %1121 = vmatprep.subr.bf16.mxu0 0
      %1122 = vmatpush1.bf16.msra.mxu0 0
      %1123 = vmatprep.subr.bf16.mxu0 0
      %1124 = vmatpush1.bf16.msra.mxu0 0
      %1125 = vmatprep.subr.bf16.mxu0 0
      %1126 = vmatpush1.bf16.msra.mxu0 0
      %1127 = vmatprep.subr.bf16.mxu0 0
      %1128 = vmatpush1.bf16.msra.mxu0 0
      %1129 = vmatprep.subr.bf16.mxu0 0
      %1130 = vmatpush1.bf16.msra.mxu0 0
      %1131 = vmatprep.subr.bf16.mxu0 0
      %1132 = vmatpush1.bf16.msra.mxu0 0
      %1133 = vmatprep.subr.bf16.mxu0 0
      %1134 = vmatpush1.bf16.msra.mxu0 0
      %1135 = vmatprep.subr.bf16.mxu0 0
      %1136 = vmatpush1.bf16.msra.mxu0 0
      %1137 = vmatprep.mubr.bf16.mxu0 0
      %1138 = vmatmul.mubr.bf16.gmra.mrb[0].mxu0 %v1100
      %v1139 = vpop.f32.mrb[0].mxu0
      %v1140 = vadd.f32 0.0, %v1139
      %v1141 = vpop.f32.mrb[0].mxu0
      %v1142 = vpop.f32.mrb[0].mxu0
      %v1143 = vpop.f32.mrb[0].mxu0
      %1144 = vdwg.mxu0
      %v1145 = vadd.f32 %v986, %v1140
      %v1146 = vadd.f32 %v373, %v1145
      %v1147 = vld [vmem:[%s7] sm:$0x1]
      %v1149 = vlaneseq
      %v1150 = vshrl.u32 %v1149, 7
      %v1151 = vsub.s32 0, %v1150
      %v1152 = vrot.slane %v1147, %v1151
      %v1154 = vadd.f32 %v1146, %v1152
      %v1155 = vld [vmem:[%s8] sm:$0x1]
      %v1156 = vld [vmem:[%s9] sm:$0x1]
      %v1157 = vsel %vm399, %v1154, 0.0
      %1158 = vadd.xlane.f32.xlu0 %v1157
      %v1159 = vpop.xlane.xlu0 %1158
      %v1160 = vrcp.pop 32.0
      %v1161 = vmul.f32 %v1159, %v1160
      %v1162 = vsub.f32 %v1154, %v1161
      %v1163 = vmul.f32 %v1162, %v1162
      %v1164 = vsel %vm399, %v1163, 0.0
      %1165 = vadd.xlane.f32.xlu0 %v1164
      %v1166 = vpop.xlane.xlu0 %1165
      %v1167 = vmul.f32 %v1166, %v1160
      %v1168 = vadd.f32 %v1167, 1e-05
      %v1169 = vrsqrt.pop %v1168
      %v1170 = vmul.f32 %v1162, %v1169
      %v1172 = vlaneseq
      %v1173 = vshrl.u32 %v1172, 7
      %v1174 = vsub.s32 0, %v1173
      %v1175 = vrot.slane %v1155, %v1174
      %v1177 = vmul.f32 %v1170, %v1175
      %v1179 = vlaneseq
      %v1180 = vshrl.u32 %v1179, 7
      %v1181 = vsub.s32 0, %v1180
      %v1182 = vrot.slane %v1156, %v1181
      %v1184 = vadd.f32 %v1177, %v1182
      %1185 = vst.msk [vmem:[%s371] sm:$0xff] %vm399, %v1184
      %p1186 = scmp.lt.s32.totalorder %s21, 1
      %s1187 = scalar_select %p1186, %s21, 1
      %s1188 = smul.addr %s1187, 8
      %s1189 = scalar_lea.vmem %s10, %s1188
      // Predicated region
      $region61: #{vanilla_transformer_forward.22} parent=59 // pred_check
        %p1190 = pneg %p259
      $region62: #{vanilla_transformer_forward.22} parent=59 // pred_check_branch
        %1192 = sbr.rel (%p1190) target = $region64
      $region63: #{vanilla_transformer_forward.22} parent=59 // pred_region
        _
      $region64: #{vanilla_transformer_forward.22} parent=59 // pred_fallthru
        _
    $region60: #{vanilla_transformer_forward.22} parent=5 // pred_fallthru
      _
    %p1193 = scmp.le.s32.totalorder 2, %s16
    // Predicated region
    $region65: #{vanilla_transformer_forward.22} parent=5 // pred_check
      %p1194 = pneg %p1193
    $region66: #{vanilla_transformer_forward.22} parent=5 // pred_check_branch
      %1196 = sbr.rel (%p1194) target = $region68
    $region67: #{vanilla_transformer_forward.22} parent=5 // pred_region
      %s1197 = ssub.s32 %s16, 2
      // Predicated region
      $region69: #{vanilla_transformer_forward.22} parent=67 // pred_check
        %p1198 = pneg %p265
      $region70: #{vanilla_transformer_forward.22} parent=67 // pred_check_branch
        %1200 = sbr.rel (%p1198) target = $region72
      $region71: #{vanilla_transformer_forward.22} parent=67 // pred_region
        %p1201 = scmp.lt.s32.totalorder %s22, 1
        %s1202 = scalar_select %p1201, %s22, 1
        %s1203 = smul.addr %s1202, 8
        %s1204 = scalar_lea.vmem %s10, %s1203
      $region72: #{vanilla_transformer_forward.22} parent=67 // pred_fallthru
        _
    $region68: #{vanilla_transformer_forward.22} parent=5 // pred_fallthru
      _
  $region6: #{vanilla_transformer_forward.22} parent=0 // loop_footer
    %s20 = sadd.s32 1, %s16
  $region7: #{vanilla_transformer_forward.22} parent=0 // loop_footer_branch
    %15 = sbr.rel target = $region3
  $region8: #{vanilla_transformer_forward.22} parent=0 // loop_exit
    _

</llo_original>
